<compile_context>
chip_gen: v5e
topology: v5e:2x2
jax: 0.10.0
libtpu: 0.0.40
codegen_flags: <defaults>
</compile_context>

<pallas_src>
import functools

import numpy as np
import jax
import jax.numpy as jnp
from jax import lax
from jax.experimental import pallas as pl
from jax.experimental.pallas import tpu as pltpu

# Large negative finite constant used as "-inf" so padded rows/columns stay
# NaN-free through the online logsumexp updates.
_NEG = -1.0e30


def _l2_normalize(x):
    # F.normalize(p=2, dim=-1): x / max(||x||, 1e-12) == x * rsqrt(max(||x||^2, 1e-24))
    sumsq = jnp.sum(x * x, axis=-1, keepdims=True)
    return x * lax.rsqrt(jnp.maximum(sumsq, 1e-24))


def _cl_kernel(log_scale_ref,    # SMEM (1, 1)        f32 : logit_scale (log space)
               seq_ref,          # VMEM (TILE, Ds)    f32 : row tile of seq embeddings
               struc_ref,        # VMEM (Np, Dt)      f32 : full struc embeddings (resident)
               w_seq_ref,        # VMEM (Ds, O)       f32
               b_seq_ref,        # VMEM (1, O)        f32
               w_str_ref,        # VMEM (Dt, O)       f32
               b_str_ref,        # VMEM (1, O)        f32
               loss_row_ref,     # VMEM out (1, TILE) f32 : seq->struct loss for this tile
               loss_col_ref,     # VMEM out (1, Np)   f32 : struct->seq loss (last step)
               p_str_ref,        # VMEM scratch (Np, O)   : normalized struct projection
               col_m_ref,        # VMEM scratch (1, Np)   : running column max
               col_l_ref,        # VMEM scratch (1, Np)   : running column sum (shifted)
               diag_ref,         # VMEM scratch (Np, 1)   : diagonal of similarity matrix
               *, tile, n_valid, n_pad):
    i = pl.program_id(0)

    # ---- step 0: project + normalize struct once; init online column stats ---
    @pl.when(i == 0)
    def _init():
        p = jnp.dot(struc_ref[...], w_str_ref[...],
                    preferred_element_type=jnp.float32) + b_str_ref[...]
        p_str_ref[...] = _l2_normalize(p)
        col_m_ref[...] = jnp.zeros_like(col_m_ref) + _NEG
        col_l_ref[...] = jnp.zeros_like(col_l_ref)

    # ---- per-tile: project + normalize the seq row tile ----------------------
    p_seq = _l2_normalize(
        jnp.dot(seq_ref[...], w_seq_ref[...],
                preferred_element_type=jnp.float32) + b_seq_ref[...])       # (T, O)

    # logit_scale.exp().clip(min=0.01)
    scale = jnp.maximum(jnp.exp(log_scale_ref[0, 0]), 0.01)

    start = pl.multiple_of(i * tile, tile)
    p_str_tile = p_str_ref[pl.ds(start, tile), :]                           # (T, O)
    p_str_all = p_str_ref[...]                                              # (Np, O)

    # Similarity tile: contract the feature axes directly (no transposed copy).
    s = scale * lax.dot_general(p_seq, p_str_all,
                                dimension_numbers=(((1,), (1,)), ((), ())),
                                preferred_element_type=jnp.float32)         # (T, Np)

    # diag[j] = S[j, j] as a rowwise dot (no NxN iota masks).
    diag = scale * jnp.sum(p_seq * p_str_tile, axis=-1, keepdims=True)      # (T, 1)
    diag_ref[pl.ds(start, tile), :] = diag

    needs_mask = n_valid != n_pad  # static python bool
    if needs_mask:
        col_ids = lax.broadcasted_iota(jnp.int32, (1, n_pad), 1)
        s = s + jnp.where(col_ids < n_valid, 0.0, _NEG)                     # mask padded cols

    # ---- row (seq -> struct) loss: finished per tile --------------------------
    row_max = jnp.max(s, axis=1, keepdims=True)                             # (T, 1)
    e = jnp.exp(s - row_max)                                                # (T, Np) single N^2 exp
    row_sum = jnp.sum(e, axis=1, keepdims=True)                             # (T, 1)
    loss_row_ref[...] = jnp.transpose(row_max + jnp.log(row_sum) - diag)    # (1, T)

    # ---- column (struct -> seq) stats: online accumulation --------------------
    # Reuse E (single exp pass):  sum_i exp(s_ij - m0) = sum_i a_i * e_ij,
    # with a_i = exp(row_max_i - m0) <= 1 and m0 the tile-global max.
    m0 = jnp.max(row_max)                                                   # scalar
    a = jnp.exp(row_max - m0)                                               # (T, 1)
    ae = a * e                                                              # (T, Np) VALU
    s_for_colmax = s
    if needs_mask:
        row_ids = start + lax.broadcasted_iota(jnp.int32, (tile, 1), 0)
        ae = ae * (row_ids < n_valid).astype(jnp.float32)                   # drop padded rows
        s_for_colmax = s + jnp.where(row_ids < n_valid, 0.0, _NEG)

    tile_col_max = jnp.max(s_for_colmax, axis=0, keepdims=True)             # (1, Np)
    t_sum = jnp.sum(ae, axis=0, keepdims=True)                              # (1, Np)

    new_m = jnp.maximum(col_m_ref[...], tile_col_max)
    # Log-space contribution: exp(m0 + log(t_sum) - new_m) is in [0, TILE] for
    # every valid column, so this stays f32-safe for any logit_scale value.
    contrib = jnp.exp(m0 + jnp.log(t_sum) - new_m)
    col_l_ref[...] = col_l_ref[...] * jnp.exp(col_m_ref[...] - new_m) + contrib
    col_m_ref[...] = new_m

    # ---- last step: finalize the column loss ---------------------------------
    @pl.when(i == pl.num_programs(0) - 1)
    def _finalize():
        col_lse = col_m_ref[...] + jnp.log(col_l_ref[...])                  # (1, Np)
        loss_col_ref[...] = col_lse - jnp.transpose(diag_ref[...])


def _pick_tile(n_pad, budget_bytes=8 << 20):
    # Largest 128-multiple tile dividing n_pad with S-tile (TILE*Np*4B) under
    # the budget (keeps v7x's 64 MiB physical / 32 MiB scoped VMEM comfortable).
    for cand in (512, 256, 128):
        if n_pad % cand == 0 and cand * n_pad * 4 <= budget_bytes:
            return cand
    return 128


def contrastive_forward(seq_embeddings, struc_embeddings, weights, params,
                        *, tile=None, vmem_limit_bytes=None):
    """Pallas TPU equivalent of ContrastiveLearningModel.forward.

    Returns (loss_seq_to_struct [N], loss_struct_to_seq [N]).
    `weights` is accepted for API parity but unused (as in the torch forward).
    """
    del weights  # unused by the reference forward pass
    f32 = jnp.float32
    seq = seq_embeddings.astype(f32)
    struc = struc_embeddings.astype(f32)
    n, seq_dim = seq.shape
    struc_dim = struc.shape[1]

    w_seq = params["w_seq"].astype(f32)                    # (Ds, O)  [in, out]
    b_seq = params["b_seq"].astype(f32).reshape(1, -1)     # (1, O)
    w_str = params["w_struct"].astype(f32)                 # (Dt, O)
    b_str = params["b_struct"].astype(f32).reshape(1, -1)  # (1, O)
    out_dim = w_seq.shape[1]
    log_scale = params["logit_scale"].reshape(1, 1).astype(f32)

    # Pad the batch axis to a 128-multiple so the similarity lane dim and the
    # loss outputs are lane-dense; padded rows/cols are masked in-kernel.
    n_pad = max(128, ((n + 127) // 128) * 128)
    if n_pad != n:
        seq = jnp.pad(seq, ((0, n_pad - n), (0, 0)))
        struc = jnp.pad(struc, ((0, n_pad - n), (0, 0)))

    if tile is None:
        tile = _pick_tile(n_pad)
    tile = min(tile, n_pad)
    assert n_pad % tile == 0 and tile % 128 == 0
    num_tiles = n_pad // tile

    # Rough VMEM footprint estimate (bytes) -> scoped VMEM limit with headroom.
    vmem_estimate = 4 * (
        2 * tile * seq_dim                       # seq tile (double-buffered)
        + n_pad * struc_dim                      # resident struc embeddings
        + (seq_dim + struc_dim + 2) * out_dim    # weights + biases
        + n_pad * out_dim                        # p_str scratch
        + tile * out_dim                         # p_seq temporary
        + 4 * tile * n_pad                       # S / E / AE temporaries
        + 8 * n_pad)                             # column stats, diag, outputs
    if vmem_limit_bytes is None:
        vmem_limit_bytes = int(min(max(3 * vmem_estimate // 2, 32 << 20), 100 << 20))

    cost = pl.CostEstimate(
        flops=int(2 * n_pad * out_dim * (seq_dim + struc_dim + n_pad)
                  + 8 * n_pad * n_pad),
        transcendentals=int(n_pad * n_pad + 8 * n_pad),
        bytes_accessed=int(4 * (n_pad * (seq_dim + struc_dim)
                                + (seq_dim + struc_dim + 2) * out_dim
                                + 2 * n_pad + 1)))

    kernel = functools.partial(_cl_kernel, tile=tile, n_valid=n, n_pad=n_pad)

    grid_spec = pltpu.PrefetchScalarGridSpec(
        num_scalar_prefetch=0,
        grid=(num_tiles,),
        in_specs=[
            pl.BlockSpec(memory_space=pltpu.MemorySpace.SMEM),          # log_scale
            pl.BlockSpec((tile, seq_dim), lambda i: (i, 0)),            # seq tile (pipelined)
            pl.BlockSpec((n_pad, struc_dim), lambda i: (0, 0)),         # struc (resident)
            pl.BlockSpec((seq_dim, out_dim), lambda i: (0, 0)),         # w_seq
            pl.BlockSpec((1, out_dim), lambda i: (0, 0)),               # b_seq
            pl.BlockSpec((struc_dim, out_dim), lambda i: (0, 0)),       # w_struct
            pl.BlockSpec((1, out_dim), lambda i: (0, 0)),               # b_struct
        ],
        out_specs=[
            pl.BlockSpec((1, tile), lambda i: (0, i)),                  # loss seq->struct
            pl.BlockSpec((1, n_pad), lambda i: (0, 0)),                 # loss struct->seq
        ],
        scratch_shapes=[
            pltpu.VMEM((n_pad, out_dim), f32),   # normalized struct projection
            pltpu.VMEM((1, n_pad), f32),         # running column max
            pltpu.VMEM((1, n_pad), f32),         # running column sum
            pltpu.VMEM((n_pad, 1), f32),         # similarity diagonal
        ],
    )

    # TODO(synk): on v7x (2 TensorCores), split the row-tile axis into per-core
    # column-LSE partials plus a tiny combine so this axis can be "parallel".
    loss_row, loss_col = pl.pallas_call(
        kernel,
        grid_spec=grid_spec,
        out_shape=(jax.ShapeDtypeStruct((1, n_pad), f32),
                   jax.ShapeDtypeStruct((1, n_pad), f32)),
        compiler_params=pltpu.CompilerParams(
            dimension_semantics=("arbitrary",),   # online column stats carried across tiles
            vmem_limit_bytes=vmem_limit_bytes),
        cost_estimate=cost,
    )(log_scale, seq, struc, w_seq, b_seq, w_str, b_str)

    return loss_row[0, :n], loss_col[0, :n]


def init_params(key, seq_dim, struc_dim, output_dim):
    """Deterministic parameter init (mimics nn.Linear uniform init shapes)."""
    k1, k2, k3, k4 = jax.random.split(key, 4)
    bound_seq = 1.0 / np.sqrt(seq_dim)
    bound_str = 1.0 / np.sqrt(struc_dim)
    return {
        # stored as [in, out] (transposed vs torch's [out, in])
        "w_seq": jax.random.uniform(k1, (seq_dim, output_dim), jnp.float32,
                                    -bound_seq, bound_seq),
        "b_seq": jax.random.uniform(k2, (1, output_dim), jnp.float32,
                                    -bound_seq, bound_seq),
        "w_struct": jax.random.uniform(k3, (struc_dim, output_dim), jnp.float32,
                                       -bound_str, bound_str),
        "b_struct": jax.random.uniform(k4, (1, output_dim), jnp.float32,
                                       -bound_str, bound_str),
        "logit_scale": jnp.array(np.log(1.0 / 0.07), jnp.float32),
    }


def _reference_forward(seq_embeddings, struc_embeddings, params):
    """Pure-JAX reference for correctness checking."""
    hi = jax.lax.Precision.HIGHEST
    p_seq = jnp.dot(seq_embeddings, params["w_seq"], precision=hi) + params["b_seq"]
    p_str = jnp.dot(struc_embeddings, params["w_struct"], precision=hi) + params["b_struct"]
    p_seq = p_seq / jnp.maximum(jnp.linalg.norm(p_seq, axis=-1, keepdims=True), 1e-12)
    p_str = p_str / jnp.maximum(jnp.linalg.norm(p_str, axis=-1, keepdims=True), 1e-12)
    scale = jnp.maximum(jnp.exp(params["logit_scale"]), 0.01)
    S = scale * jnp.dot(p_seq, p_str.T, precision=hi)
    diag = jnp.diagonal(S)
    lse_row = jax.scipy.special.logsumexp(S, axis=1)
    lse_col = jax.scipy.special.logsumexp(S, axis=0)
    return lse_row - diag, lse_col - diag


if __name__ == "__main__":
    # N = 300 pads to 384 -> three 128-row tiles: exercises the online column
    # logsumexp across tiles and the padded-row/column masking.
    N, SEQ_DIM, STRUC_DIM, OUT_DIM = 300, 48, 40, 32

    key = jax.random.PRNGKey(0)
    k_seq, k_str, k_w, k_param = jax.random.split(key, 4)

    seq_embeddings = jax.random.normal(k_seq, (N, SEQ_DIM), jnp.float32)
    struc_embeddings = jax.random.normal(k_str, (N, STRUC_DIM), jnp.float32)
    weights = jax.random.uniform(k_w, (N,), jnp.float32)  # unused by forward

    params = init_params(k_param, SEQ_DIM, STRUC_DIM, OUT_DIM)

    loss_s2t, loss_t2s = contrastive_forward(seq_embeddings, struc_embeddings,
                                             weights, params)
    jax.block_until_ready((loss_s2t, loss_t2s))

    ref_s2t, ref_t2s = _reference_forward(seq_embeddings, struc_embeddings, params)
    np.testing.assert_allclose(np.asarray(loss_s2t), np.asarray(ref_s2t),
                               rtol=2e-3, atol=2e-3)
    np.testing.assert_allclose(np.asarray(loss_t2s), np.asarray(ref_t2s),
                               rtol=2e-3, atol=2e-3)

    print("KERNEL_OK")
</pallas_src>

<mosaic_0001>
module attributes {stable_mosaic.version = 11 : i64} {
  func.func @_cl_kernel(%arg0: i32, %arg1: memref<1x1xf32, #tpu.memory_space<smem>>, %arg2: memref<128x48xf32, #tpu.memory_space<vmem>>, %arg3: memref<384x40xf32, #tpu.memory_space<vmem>>, %arg4: memref<48x32xf32, #tpu.memory_space<vmem>>, %arg5: memref<1x32xf32, #tpu.memory_space<vmem>>, %arg6: memref<40x32xf32, #tpu.memory_space<vmem>>, %arg7: memref<1x32xf32, #tpu.memory_space<vmem>>, %arg8: memref<1x128xf32, #tpu.memory_space<vmem>>, %arg9: memref<1x384xf32, #tpu.memory_space<vmem>>, %arg10: memref<384x32xf32, #tpu.memory_space<vmem>>, %arg11: memref<1x384xf32, #tpu.memory_space<vmem>>, %arg12: memref<1x384xf32, #tpu.memory_space<vmem>>, %arg13: memref<384x1xf32, #tpu.memory_space<vmem>>) attributes {dimension_semantics = [#tpu.dimension_semantics<arbitrary>], iteration_bounds = array<i64: 3>, scalar_prefetch = 0 : i64, scratch_operands = 4 : i64, tpu.core_type = #tpu.core_type<tc>, window_params = [{transform_indices = @transform_0, window_bounds = array<i64: 1, 1>}, {transform_indices = @transform_1, window_bounds = array<i64: 128, 48>}, {pipeline_mode = #tpu.pipeline_mode<synchronous>, transform_indices = @transform_2, window_bounds = array<i64: 384, 40>}, {pipeline_mode = #tpu.pipeline_mode<synchronous>, transform_indices = @transform_3, window_bounds = array<i64: 48, 32>}, {pipeline_mode = #tpu.pipeline_mode<synchronous>, transform_indices = @transform_4, window_bounds = array<i64: 1, 32>}, {pipeline_mode = #tpu.pipeline_mode<synchronous>, transform_indices = @transform_5, window_bounds = array<i64: 40, 32>}, {pipeline_mode = #tpu.pipeline_mode<synchronous>, transform_indices = @transform_6, window_bounds = array<i64: 1, 32>}, {transform_indices = @transform_7, window_bounds = array<i64: 1, 128>}, {pipeline_mode = #tpu.pipeline_mode<synchronous>, transform_indices = @transform_8, window_bounds = array<i64: 1, 384>}]} {
    %c0_i32 = arith.constant 0 : i32
    %0 = arith.cmpi eq, %arg0, %c0_i32 : i32
    %1 = arith.extui %0 : i1 to i32
    %c0_i32_0 = arith.constant 0 : i32
    %2 = arith.cmpi ne, %1, %c0_i32_0 : i32
    scf.if %2 {
      %c0_41 = arith.constant 0 : index
      %c0_42 = arith.constant 0 : index
      %102 = vector.load %arg3[%c0_41, %c0_42] : memref<384x40xf32, #tpu.memory_space<vmem>>, vector<384x40xf32>
      %c0_43 = arith.constant 0 : index
      %c0_44 = arith.constant 0 : index
      %103 = vector.load %arg6[%c0_43, %c0_44] : memref<40x32xf32, #tpu.memory_space<vmem>>, vector<40x32xf32>
      %cst_45 = arith.constant dense<0.000000e+00> : vector<384x32xf32>
      %104 = tpu.matmul %102, %103, %cst_45 {dimension_numbers = #tpu.dot_dimension_numbers<[1], [0], [0], [1], [0, 0, 1, 1], [], []>} : vector<384x40xf32>, vector<40x32xf32>, vector<384x32xf32> -> vector<384x32xf32>
      %c0_46 = arith.constant 0 : index
      %c0_47 = arith.constant 0 : index
      %105 = vector.load %arg7[%c0_46, %c0_47] : memref<1x32xf32, #tpu.memory_space<vmem>>, vector<1x32xf32>
      %106 = vector.broadcast %105 : vector<1x32xf32> to vector<384x32xf32>
      %107 = arith.addf %104, %106 : vector<384x32xf32>
      %108 = arith.mulf %107, %107 : vector<384x32xf32>
      %cst_48 = arith.constant dense<0.000000e+00> : vector<384xf32>
      %109 = vector.multi_reduction <add>, %108, %cst_48 [1] : vector<384x32xf32> to vector<384xf32>
      %110 = vector.shape_cast %109 : vector<384xf32> to vector<384x1xf32>
      %cst_49 = arith.constant 1.000000e-24 : f32
      %111 = vector.broadcast %cst_49 : f32 to vector<384x1xf32>
      %112 = arith.maximumf %110, %111 : vector<384x1xf32>
      %113 = math.rsqrt %112 : vector<384x1xf32>
      %114 = vector.broadcast %113 : vector<384x1xf32> to vector<384x32xf32>
      %115 = arith.mulf %107, %114 : vector<384x32xf32>
      %c0_50 = arith.constant 0 : index
      %c0_51 = arith.constant 0 : index
      %116 = vector.load %arg10[%c0_50, %c0_51] : memref<384x32xf32, #tpu.memory_space<vmem>>, vector<384x32xf32>
      tpu.vector_store %arg10[%c0_50, %c0_51], %115 {strides = array<i32>} : memref<384x32xf32, #tpu.memory_space<vmem>>, vector<384x32xf32>,
      %cst_52 = arith.constant 0.000000e+00 : f32
      %117 = vector.broadcast %cst_52 : f32 to vector<1x384xf32>
      %cst_53 = arith.constant -1.000000e+30 : f32
      %118 = vector.broadcast %cst_53 : f32 to vector<1x384xf32>
      %119 = arith.addf %117, %118 : vector<1x384xf32>
      %c0_54 = arith.constant 0 : index
      %c0_55 = arith.constant 0 : index
      %120 = vector.load %arg11[%c0_54, %c0_55] : memref<1x384xf32, #tpu.memory_space<vmem>>, vector<1x384xf32>
      tpu.vector_store %arg11[%c0_54, %c0_55], %119 {strides = array<i32>} : memref<1x384xf32, #tpu.memory_space<vmem>>, vector<1x384xf32>,
      %cst_56 = arith.constant 0.000000e+00 : f32
      %121 = vector.broadcast %cst_56 : f32 to vector<1x384xf32>
      %c0_57 = arith.constant 0 : index
      %c0_58 = arith.constant 0 : index
      %122 = vector.load %arg12[%c0_57, %c0_58] : memref<1x384xf32, #tpu.memory_space<vmem>>, vector<1x384xf32>
      tpu.vector_store %arg12[%c0_57, %c0_58], %121 {strides = array<i32>} : memref<1x384xf32, #tpu.memory_space<vmem>>, vector<1x384xf32>,
    } else {
    }
    %c0 = arith.constant 0 : index
    %c0_1 = arith.constant 0 : index
    %3 = vector.load %arg2[%c0, %c0_1] : memref<128x48xf32, #tpu.memory_space<vmem>>, vector<128x48xf32>
    %c0_2 = arith.constant 0 : index
    %c0_3 = arith.constant 0 : index
    %4 = vector.load %arg4[%c0_2, %c0_3] : memref<48x32xf32, #tpu.memory_space<vmem>>, vector<48x32xf32>
    %cst = arith.constant dense<0.000000e+00> : vector<128x32xf32>
    %5 = tpu.matmul %3, %4, %cst {dimension_numbers = #tpu.dot_dimension_numbers<[1], [0], [0], [1], [0, 0, 1, 1], [], []>} : vector<128x48xf32>, vector<48x32xf32>, vector<128x32xf32> -> vector<128x32xf32>
    %c0_4 = arith.constant 0 : index
    %c0_5 = arith.constant 0 : index
    %6 = vector.load %arg5[%c0_4, %c0_5] : memref<1x32xf32, #tpu.memory_space<vmem>>, vector<1x32xf32>
    %7 = vector.broadcast %6 : vector<1x32xf32> to vector<128x32xf32>
    %8 = arith.addf %5, %7 : vector<128x32xf32>
    %9 = arith.mulf %8, %8 : vector<128x32xf32>
    %cst_6 = arith.constant dense<0.000000e+00> : vector<128xf32>
    %10 = vector.multi_reduction <add>, %9, %cst_6 [1] : vector<128x32xf32> to vector<128xf32>
    %11 = vector.shape_cast %10 : vector<128xf32> to vector<128x1xf32>
    %cst_7 = arith.constant 1.000000e-24 : f32
    %12 = vector.broadcast %cst_7 : f32 to vector<128x1xf32>
    %13 = arith.maximumf %11, %12 : vector<128x1xf32>
    %14 = math.rsqrt %13 : vector<128x1xf32>
    %15 = vector.broadcast %14 : vector<128x1xf32> to vector<128x32xf32>
    %16 = arith.mulf %8, %15 : vector<128x32xf32>
    %c0_8 = arith.constant 0 : index
    %c0_9 = arith.constant 0 : index
    %17 = memref.load %arg1[%c0_8, %c0_9] : memref<1x1xf32, #tpu.memory_space<smem>>
    %18 = math.exp %17 : f32
    %cst_10 = arith.constant 0.00999999977 : f32
    %19 = arith.maximumf %18, %cst_10 : f32
    %c128_i32 = arith.constant 128 : i32
    %20 = arith.muli %arg0, %c128_i32 : i32
    %21 = tpu.assume_multiple %20, 128 : i32
    %22 = arith.index_cast %21 : i32 to index
    %c0_11 = arith.constant 0 : index
    %23 = vector.load %arg10[%22, %c0_11] : memref<384x32xf32, #tpu.memory_space<vmem>>, vector<128x32xf32>
    %c0_12 = arith.constant 0 : index
    %c0_13 = arith.constant 0 : index
    %24 = vector.load %arg10[%c0_12, %c0_13] : memref<384x32xf32, #tpu.memory_space<vmem>>, vector<384x32xf32>
    %cst_14 = arith.constant dense<0.000000e+00> : vector<128x384xf32>
    %25 = tpu.matmul %16, %24, %cst_14 {dimension_numbers = #tpu.dot_dimension_numbers<[1], [1], [0], [0], [0, 0, 1, 0], [], []>} : vector<128x32xf32>, vector<384x32xf32>, vector<128x384xf32> -> vector<128x384xf32>
    %26 = vector.broadcast %19 : f32 to vector<128x384xf32>
    %27 = arith.mulf %26, %25 : vector<128x384xf32>
    %28 = arith.mulf %16, %23 : vector<128x32xf32>
    %cst_15 = arith.constant dense<0.000000e+00> : vector<128xf32>
    %29 = vector.multi_reduction <add>, %28, %cst_15 [1] : vector<128x32xf32> to vector<128xf32>
    %30 = vector.shape_cast %29 : vector<128xf32> to vector<128x1xf32>
    %31 = vector.broadcast %19 : f32 to vector<128x1xf32>
    %32 = arith.mulf %31, %30 : vector<128x1xf32>
    %33 = arith.index_cast %21 : i32 to index
    %c0_16 = arith.constant 0 : index
    %34 = vector.load %arg13[%33, %c0_16] : memref<384x1xf32, #tpu.memory_space<vmem>>, vector<128x1xf32>
    tpu.vector_store %arg13[%33, %c0_16], %32 {strides = array<i32>} : memref<384x1xf32, #tpu.memory_space<vmem>>, vector<128x1xf32>,
    %35 = tpu.iota {dimensions = array<i32: 1>} : vector<1x384xi32>
    %c300_i32 = arith.constant 300 : i32
    %36 = vector.broadcast %c300_i32 : i32 to vector<1x384xi32>
    %37 = arith.cmpi slt, %35, %36 : vector<1x384xi32>
    %cst_17 = arith.constant 0.000000e+00 : f32
    %cst_18 = arith.constant -1.000000e+30 : f32
    %38 = vector.broadcast %cst_17 : f32 to vector<1x384xf32>
    %39 = vector.broadcast %cst_18 : f32 to vector<1x384xf32>
    %40 = arith.select %37, %38, %39 : vector<1x384xi1>, vector<1x384xf32>
    %41 = vector.broadcast %40 : vector<1x384xf32> to vector<128x384xf32>
    %42 = arith.addf %27, %41 : vector<128x384xf32>
    %cst_19 = arith.constant dense<0xFF800000> : vector<128xf32>
    %43 = vector.multi_reduction <maximumf>, %42, %cst_19 [1] : vector<128x384xf32> to vector<128xf32>
    %44 = vector.shape_cast %43 : vector<128xf32> to vector<128x1xf32>
    %45 = vector.broadcast %44 : vector<128x1xf32> to vector<128x384xf32>
    %46 = arith.subf %42, %45 : vector<128x384xf32>
    %47 = math.exp %46 : vector<128x384xf32>
    %cst_20 = arith.constant dense<0.000000e+00> : vector<128xf32>
    %48 = vector.multi_reduction <add>, %47, %cst_20 [1] : vector<128x384xf32> to vector<128xf32>
    %49 = vector.shape_cast %48 : vector<128xf32> to vector<128x1xf32>
    %50 = math.log %49 : vector<128x1xf32>
    %51 = arith.addf %44, %50 : vector<128x1xf32>
    %52 = arith.subf %51, %32 : vector<128x1xf32>
    %53 = tpu.transpose %52, [1, 0] : vector<128x1xf32> -> vector<1x128xf32>
    %c0_21 = arith.constant 0 : index
    %c0_22 = arith.constant 0 : index
    %54 = vector.load %arg8[%c0_21, %c0_22] : memref<1x128xf32, #tpu.memory_space<vmem>>, vector<1x128xf32>
    tpu.vector_store %arg8[%c0_21, %c0_22], %53 {strides = array<i32>} : memref<1x128xf32, #tpu.memory_space<vmem>>, vector<1x128xf32>,
    %55 = vector.shape_cast %44 : vector<128x1xf32> to vector<1x128x1xf32>
    %cst_23 = arith.constant dense<0xFF800000> : vector<1xf32>
    %56 = vector.multi_reduction <maximumf>, %55, %cst_23 [1, 2] : vector<1x128x1xf32> to vector<1xf32>
    %57 = vector.shape_cast %56 : vector<1xf32> to vector<1x1x1xf32>
    %58 = vector.extract %57[0, 0, 0] : f32 from vector<1x1x1xf32>
    %59 = vector.broadcast %58 : f32 to vector<128x1xf32>
    %60 = arith.subf %44, %59 : vector<128x1xf32>
    %61 = math.exp %60 : vector<128x1xf32>
    %62 = vector.broadcast %61 : vector<128x1xf32> to vector<128x384xf32>
    %63 = arith.mulf %62, %47 : vector<128x384xf32>
    %64 = tpu.iota {dimensions = array<i32: 0>} : vector<128x1xi32>
    %65 = vector.broadcast %21 : i32 to vector<128x1xi32>
    %66 = arith.addi %65, %64 : vector<128x1xi32>
    %c300_i32_24 = arith.constant 300 : i32
    %67 = vector.broadcast %c300_i32_24 : i32 to vector<128x1xi32>
    %68 = arith.cmpi slt, %66, %67 : vector<128x1xi32>
    %69 = arith.extui %68 : vector<128x1xi1> to vector<128x1xi32>
    %70 = arith.sitofp %69 : vector<128x1xi32> to vector<128x1xf32>
    %71 = vector.broadcast %70 : vector<128x1xf32> to vector<128x384xf32>
    %72 = arith.mulf %63, %71 : vector<128x384xf32>
    %c300_i32_25 = arith.constant 300 : i32
    %73 = vector.broadcast %c300_i32_25 : i32 to vector<128x1xi32>
    %74 = arith.cmpi slt, %66, %73 : vector<128x1xi32>
    %cst_26 = arith.constant 0.000000e+00 : f32
    %cst_27 = arith.constant -1.000000e+30 : f32
    %75 = vector.broadcast %cst_26 : f32 to vector<128x1xf32>
    %76 = vector.broadcast %cst_27 : f32 to vector<128x1xf32>
    %77 = arith.select %74, %75, %76 : vector<128x1xi1>, vector<128x1xf32>
    %78 = vector.broadcast %77 : vector<128x1xf32> to vector<128x384xf32>
    %79 = arith.addf %42, %78 : vector<128x384xf32>
    %cst_28 = arith.constant dense<0xFF800000> : vector<384xf32>
    %80 = vector.multi_reduction <maximumf>, %79, %cst_28 [0] : vector<128x384xf32> to vector<384xf32>
    %81 = vector.shape_cast %80 : vector<384xf32> to vector<1x384xf32>
    %cst_29 = arith.constant dense<0.000000e+00> : vector<384xf32>
    %82 = vector.multi_reduction <add>, %72, %cst_29 [0] : vector<128x384xf32> to vector<384xf32>
    %83 = vector.shape_cast %82 : vector<384xf32> to vector<1x384xf32>
    %c0_30 = arith.constant 0 : index
    %c0_31 = arith.constant 0 : index
    %84 = vector.load %arg11[%c0_30, %c0_31] : memref<1x384xf32, #tpu.memory_space<vmem>>, vector<1x384xf32>
    %85 = arith.maximumf %84, %81 : vector<1x384xf32>
    %86 = math.log %83 : vector<1x384xf32>
    %87 = vector.broadcast %58 : f32 to vector<1x384xf32>
    %88 = arith.addf %87, %86 : vector<1x384xf32>
    %89 = arith.subf %88, %85 : vector<1x384xf32>
    %90 = math.exp %89 : vector<1x384xf32>
    %c0_32 = arith.constant 0 : index
    %c0_33 = arith.constant 0 : index
    %91 = vector.load %arg12[%c0_32, %c0_33] : memref<1x384xf32, #tpu.memory_space<vmem>>, vector<1x384xf32>
    %c0_34 = arith.constant 0 : index
    %c0_35 = arith.constant 0 : index
    %92 = vector.load %arg11[%c0_34, %c0_35] : memref<1x384xf32, #tpu.memory_space<vmem>>, vector<1x384xf32>
    %93 = arith.subf %92, %85 : vector<1x384xf32>
    %94 = math.exp %93 : vector<1x384xf32>
    %95 = arith.mulf %91, %94 : vector<1x384xf32>
    %96 = arith.addf %95, %90 : vector<1x384xf32>
    %c0_36 = arith.constant 0 : index
    %c0_37 = arith.constant 0 : index
    %97 = vector.load %arg12[%c0_36, %c0_37] : memref<1x384xf32, #tpu.memory_space<vmem>>, vector<1x384xf32>
    tpu.vector_store %arg12[%c0_36, %c0_37], %96 {strides = array<i32>} : memref<1x384xf32, #tpu.memory_space<vmem>>, vector<1x384xf32>,
    %c0_38 = arith.constant 0 : index
    %c0_39 = arith.constant 0 : index
    %98 = vector.load %arg11[%c0_38, %c0_39] : memref<1x384xf32, #tpu.memory_space<vmem>>, vector<1x384xf32>
    tpu.vector_store %arg11[%c0_38, %c0_39], %85 {strides = array<i32>} : memref<1x384xf32, #tpu.memory_space<vmem>>, vector<1x384xf32>,
    %c2_i32 = arith.constant 2 : i32
    %99 = arith.cmpi eq, %arg0, %c2_i32 : i32
    %100 = arith.extui %99 : i1 to i32
    %c0_i32_40 = arith.constant 0 : i32
    %101 = arith.cmpi ne, %100, %c0_i32_40 : i32
    scf.if %101 {
      %c0_41 = arith.constant 0 : index
      %c0_42 = arith.constant 0 : index
      %102 = vector.load %arg11[%c0_41, %c0_42] : memref<1x384xf32, #tpu.memory_space<vmem>>, vector<1x384xf32>
      %c0_43 = arith.constant 0 : index
      %c0_44 = arith.constant 0 : index
      %103 = vector.load %arg12[%c0_43, %c0_44] : memref<1x384xf32, #tpu.memory_space<vmem>>, vector<1x384xf32>
      %104 = math.log %103 : vector<1x384xf32>
      %105 = arith.addf %102, %104 : vector<1x384xf32>
      %c0_45 = arith.constant 0 : index
      %c0_46 = arith.constant 0 : index
      %106 = vector.load %arg13[%c0_45, %c0_46] : memref<384x1xf32, #tpu.memory_space<vmem>>, vector<384x1xf32>
      %107 = tpu.transpose %106, [1, 0] : vector<384x1xf32> -> vector<1x384xf32>
      %108 = arith.subf %105, %107 : vector<1x384xf32>
      %c0_47 = arith.constant 0 : index
      %c0_48 = arith.constant 0 : index
      %109 = vector.load %arg9[%c0_47, %c0_48] : memref<1x384xf32, #tpu.memory_space<vmem>>, vector<1x384xf32>
      tpu.vector_store %arg9[%c0_47, %c0_48], %108 {strides = array<i32>} : memref<1x384xf32, #tpu.memory_space<vmem>>, vector<1x384xf32>,
    } else {
    }
    return
  }
  func.func @transform_0(%arg0: i32) -> (i32, i32) {
    %c0_i32 = arith.constant 0 : i32
    %c0_i32_0 = arith.constant 0 : i32
    %c0_i32_1 = arith.constant 0 : i32
    return %c0_i32, %c0_i32_0 : i32, i32
  }
  func.func @transform_1(%arg0: i32) -> (i32, i32) {
    %c0_i32 = arith.constant 0 : i32
    %c0_i32_0 = arith.constant 0 : i32
    return %arg0, %c0_i32 : i32, i32
  }
  func.func @transform_2(%arg0: i32) -> (i32, i32) {
    %c0_i32 = arith.constant 0 : i32
    %c0_i32_0 = arith.constant 0 : i32
    %c0_i32_1 = arith.constant 0 : i32
    return %c0_i32, %c0_i32_0 : i32, i32
  }
  func.func @transform_3(%arg0: i32) -> (i32, i32) {
    %c0_i32 = arith.constant 0 : i32
    %c0_i32_0 = arith.constant 0 : i32
    %c0_i32_1 = arith.constant 0 : i32
    return %c0_i32, %c0_i32_0 : i32, i32
  }
  func.func @transform_4(%arg0: i32) -> (i32, i32) {
    %c0_i32 = arith.constant 0 : i32
    %c0_i32_0 = arith.constant 0 : i32
    %c0_i32_1 = arith.constant 0 : i32
    return %c0_i32, %c0_i32_0 : i32, i32
  }
  func.func @transform_5(%arg0: i32) -> (i32, i32) {
    %c0_i32 = arith.constant 0 : i32
    %c0_i32_0 = arith.constant 0 : i32
    %c0_i32_1 = arith.constant 0 : i32
    return %c0_i32, %c0_i32_0 : i32, i32
  }
  func.func @transform_6(%arg0: i32) -> (i32, i32) {
    %c0_i32 = arith.constant 0 : i32
    %c0_i32_0 = arith.constant 0 : i32
    %c0_i32_1 = arith.constant 0 : i32
    return %c0_i32, %c0_i32_0 : i32, i32
  }
  func.func @transform_7(%arg0: i32) -> (i32, i32) {
    %c0_i32 = arith.constant 0 : i32
    %c0_i32_0 = arith.constant 0 : i32
    return %c0_i32, %arg0 : i32, i32
  }
  func.func @transform_8(%arg0: i32) -> (i32, i32) {
    %c0_i32 = arith.constant 0 : i32
    %c0_i32_0 = arith.constant 0 : i32
    %c0_i32_1 = arith.constant 0 : i32
    return %c0_i32, %c0_i32_0 : i32, i32
  }
}

</mosaic_0001>

<llo_original>
// kernel: tpu_custom_call.1
$region0: #{tpu_custom_call.1}
  #allocation0 [shape = 'u32[]', space=smem, size = 0x4, offset = 0x4, fixed_abs, tag = 'smem constant byte address 0x4 - core index']
  #allocation1 [shape = 'u32[72,128]{1,0:T(1,128)}', space=vmem, size = 0x9000, scoped, tag = 'internal scratch']
  #allocation2 [shape = 'f32[384,32]{1,0:T(8,128)}', space=vmem, size = 0x30000, scoped, tag = 'scratch operand']
  #allocation3 [shape = 'f32[1,384]{1,0:T(1,128)}', space=vmem, size = 0x600, scoped, tag = 'scratch operand']
  #allocation4 [shape = 'f32[1,384]{1,0:T(1,128)}', space=vmem, size = 0x600, scoped, tag = 'scratch operand']
  #allocation5 [shape = 'f32[384,1]{1,0:T(8,128)}', space=vmem, size = 0x30000, scoped, tag = 'scratch operand']
  #allocation6 [shape = 'f32[1,1]{1,0:T(1,128)S(6)}', space=smem, size = 0x200, scoped, tag = 'scoped memory for tpu_custom_call.1']
  %s0 = inlined_call_operand.<no memory space> [shape: f32[1,1], index: 0, kind: input, shape index: {}]
  %s1 = inlined_call_operand.vmem [shape: f32[384,48], index: 1, kind: input, shape index: {}]
  %s2 = inlined_call_operand.vmem [shape: f32[384,40], index: 2, kind: input, shape index: {}]
  %s3 = inlined_call_operand.vmem [shape: f32[48,32], index: 3, kind: input, shape index: {}]
  %s4 = inlined_call_operand.vmem [shape: f32[1,32], index: 4, kind: input, shape index: {}]
  %s5 = inlined_call_operand.vmem [shape: f32[40,32], index: 5, kind: input, shape index: {}]
  %s6 = inlined_call_operand.vmem [shape: f32[1,32], index: 6, kind: input, shape index: {}]
  %s7 = inlined_call_operand.hbm [shape: f32[1,384], index: 7, kind: output, shape index: {0}]
  %s8 = inlined_call_operand.hbm [shape: f32[1,384], index: 8, kind: output, shape index: {1}]
  %9 = xla_tuple %s7, %s8
  %s10 = sld [smem:[#allocation0]]
  $region77: #{tpu_custom_call.1} parent=0
    _
  %s12 = ssub.s32 1, %s10
  %s13 = scalar_select 0, %s12, %s10
  %14 = sst [smem:[#allocation6]] %s0
  $region1: #{tpu_custom_call.1} parent=0
    #allocation7 [shape = 'u8[1024]{0}', space=vmem, size = 0x400, scoped, tag = 'output window, operand 0']
    #allocation8 [shape = 's32[2]{0}', space=sflag, size = 0x8, scoped, tag = 'scoped memory for tpu_custom_call.1']
    #allocation9 [shape = 'u8[1536]{0}', space=vmem, size = 0x800, scoped, tag = 'output window, operand 1, single buffered']
    #allocation10 [shape = 's32[1]{0}', space=sflag, size = 0x4, scoped, tag = 'scoped memory for tpu_custom_call.1']
    %15 = vsyncpa [#allocation8], 0
    %s16 = scalar_lea.sflag [#allocation8], 1
    %17 = vsyncpa %s16, 0
    %18 = vsyncpa [#allocation10], 0
    loop: start=0, step=1, limit=5
    $region2: #{tpu_custom_call.1} parent=1 // loop_pre_header
      _
    $region3: #{tpu_custom_call.1} parent=1 // loop_header
      %s20 = sphi 0, %s24
      %p21 = scmp.ge.s32.totalorder %s20, 5
      %s28 = sphi 0, %s28
      %s30 = sphi 0, %s28
      %s31 = sphi 0, %s30
      %s45 = sphi 0, %s31
      %s51 = sphi 0, %s53
      %s54 = sphi 0, %s51
      %s55 = sphi 0, %s54
      %s71 = sphi 0, %s55
      %s75 = sphi 0, %s75
      %s77 = sphi 0, %s75
      %s78 = sphi 0, %s77
      %s92 = sphi 0, %s78
      %s96 = sphi 0, %s96
      %s98 = sphi 0, %s96
      %s99 = sphi 0, %s98
      %s113 = sphi 0, %s99
      %s117 = sphi 0, %s117
      %s119 = sphi 0, %s117
      %s120 = sphi 0, %s119
      %s134 = sphi 0, %s120
      %s138 = sphi 0, %s138
      %s140 = sphi 0, %s138
      %s141 = sphi 0, %s140
      %s155 = sphi 0, %s141
      %s159 = sphi 0, %s159
      %s161 = sphi 0, %s159
      %s162 = sphi 0, %s161
      %s176 = sphi 0, %s162
      %s182 = sphi 0, %s184
      %s185 = sphi 0, %s182
      %s186 = sphi 0, %s185
      %s202 = sphi 0, %s186
      %s206 = sphi 0, %s206
      %s208 = sphi 0, %s206
      %s209 = sphi 0, %s208
      %s223 = sphi 0, %s209
    $region4: #{tpu_custom_call.1} parent=1 // loop_header_branch
      %23 = sbr.rel (%p21) target = $region8
    $region5: #{tpu_custom_call.1} parent=1 // loop_body
      %s25 = ssub.s32 %s20, 1
      %s26 = ssub.s32 %s20, 2
      %s27 = sadd.s32 %s20, 1
      %s29 = sadd.s32 %s28, 1
      %p32 = scmp.eq.s32.totalorder %s20, 2
      %p33 = scmp.ne.s32.totalorder %s28, %s30
      %p34 = scmp.eq.s32.totalorder %s20, 0
      %p35 = por %p33, %p34
      %p36 = scmp.ne.s32.totalorder %s28, %s30
      %p37 = scmp.eq.s32.totalorder %s25, 2
      %p38 = por %p36, %p37
      %p39 = scmp.ne.s32.totalorder %s30, %s31
      %p40 = scmp.eq.s32.totalorder %s25, 0
      %p41 = por %p39, %p40
      %p42 = scmp.ne.s32.totalorder %s30, %s31
      %p43 = scmp.eq.s32.totalorder %s26, 2
      %p44 = por %p42, %p43
      %p46 = scmp.ne.s32.totalorder %s31, %s45
      %p47 = scmp.eq.s32.totalorder %s26, 0
      %p48 = por %p46, %p47
      %s49 = ssub.s32 %s20, %s27
      %p50 = scmp.eq.s32.totalorder %s49, 0
      %s52 = sadd.s32 %s51, 1
      %s53 = scalar_select %p50, %s51, %s52
      %p56 = pneg %p50
      %p57 = scmp.eq.s32.totalorder %s20, 2
      %p58 = por %p56, %p57
      %p59 = scmp.ne.s32.totalorder %s51, %s54
      %p60 = scmp.eq.s32.totalorder %s20, 0
      %p61 = por %p59, %p60
      %p62 = scmp.ne.s32.totalorder %s51, %s54
      %p63 = scmp.eq.s32.totalorder %s25, 2
      %p64 = por %p62, %p63
      %p65 = scmp.ne.s32.totalorder %s54, %s55
      %p66 = scmp.eq.s32.totalorder %s25, 0
      %p67 = por %p65, %p66
      %p68 = scmp.ne.s32.totalorder %s54, %s55
      %p69 = scmp.eq.s32.totalorder %s26, 2
      %p70 = por %p68, %p69
      %p72 = scmp.ne.s32.totalorder %s55, %s71
      %p73 = scmp.eq.s32.totalorder %s26, 0
      %p74 = por %p72, %p73
      %s76 = sadd.s32 %s75, 1
      %p79 = scmp.eq.s32.totalorder %s20, 2
      %p80 = scmp.ne.s32.totalorder %s75, %s77
      %p81 = scmp.eq.s32.totalorder %s20, 0
      %p82 = por %p80, %p81
      %p83 = scmp.ne.s32.totalorder %s75, %s77
      %p84 = scmp.eq.s32.totalorder %s25, 2
      %p85 = por %p83, %p84
      %p86 = scmp.ne.s32.totalorder %s77, %s78
      %p87 = scmp.eq.s32.totalorder %s25, 0
      %p88 = por %p86, %p87
      %p89 = scmp.ne.s32.totalorder %s77, %s78
      %p90 = scmp.eq.s32.totalorder %s26, 2
      %p91 = por %p89, %p90
      %p93 = scmp.ne.s32.totalorder %s78, %s92
      %p94 = scmp.eq.s32.totalorder %s26, 0
      %p95 = por %p93, %p94
      %s97 = sadd.s32 %s96, 1
      %p100 = scmp.eq.s32.totalorder %s20, 2
      %p101 = scmp.ne.s32.totalorder %s96, %s98
      %p102 = scmp.eq.s32.totalorder %s20, 0
      %p103 = por %p101, %p102
      %p104 = scmp.ne.s32.totalorder %s96, %s98
      %p105 = scmp.eq.s32.totalorder %s25, 2
      %p106 = por %p104, %p105
      %p107 = scmp.ne.s32.totalorder %s98, %s99
      %p108 = scmp.eq.s32.totalorder %s25, 0
      %p109 = por %p107, %p108
      %p110 = scmp.ne.s32.totalorder %s98, %s99
      %p111 = scmp.eq.s32.totalorder %s26, 2
      %p112 = por %p110, %p111
      %p114 = scmp.ne.s32.totalorder %s99, %s113
      %p115 = scmp.eq.s32.totalorder %s26, 0
      %p116 = por %p114, %p115
      %s118 = sadd.s32 %s117, 1
      %p121 = scmp.eq.s32.totalorder %s20, 2
      %p122 = scmp.ne.s32.totalorder %s117, %s119
      %p123 = scmp.eq.s32.totalorder %s20, 0
      %p124 = por %p122, %p123
      %p125 = scmp.ne.s32.totalorder %s117, %s119
      %p126 = scmp.eq.s32.totalorder %s25, 2
      %p127 = por %p125, %p126
      %p128 = scmp.ne.s32.totalorder %s119, %s120
      %p129 = scmp.eq.s32.totalorder %s25, 0
      %p130 = por %p128, %p129
      %p131 = scmp.ne.s32.totalorder %s119, %s120
      %p132 = scmp.eq.s32.totalorder %s26, 2
      %p133 = por %p131, %p132
      %p135 = scmp.ne.s32.totalorder %s120, %s134
      %p136 = scmp.eq.s32.totalorder %s26, 0
      %p137 = por %p135, %p136
      %s139 = sadd.s32 %s138, 1
      %p142 = scmp.eq.s32.totalorder %s20, 2
      %p143 = scmp.ne.s32.totalorder %s138, %s140
      %p144 = scmp.eq.s32.totalorder %s20, 0
      %p145 = por %p143, %p144
      %p146 = scmp.ne.s32.totalorder %s138, %s140
      %p147 = scmp.eq.s32.totalorder %s25, 2
      %p148 = por %p146, %p147
      %p149 = scmp.ne.s32.totalorder %s140, %s141
      %p150 = scmp.eq.s32.totalorder %s25, 0
      %p151 = por %p149, %p150
      %p152 = scmp.ne.s32.totalorder %s140, %s141
      %p153 = scmp.eq.s32.totalorder %s26, 2
      %p154 = por %p152, %p153
      %p156 = scmp.ne.s32.totalorder %s141, %s155
      %p157 = scmp.eq.s32.totalorder %s26, 0
      %p158 = por %p156, %p157
      %s160 = sadd.s32 %s159, 1
      %p163 = scmp.eq.s32.totalorder %s20, 2
      %p164 = scmp.ne.s32.totalorder %s159, %s161
      %p165 = scmp.eq.s32.totalorder %s20, 0
      %p166 = por %p164, %p165
      %p167 = scmp.ne.s32.totalorder %s159, %s161
      %p168 = scmp.eq.s32.totalorder %s25, 2
      %p169 = por %p167, %p168
      %p170 = scmp.ne.s32.totalorder %s161, %s162
      %p171 = scmp.eq.s32.totalorder %s25, 0
      %p172 = por %p170, %p171
      %p173 = scmp.ne.s32.totalorder %s161, %s162
      %p174 = scmp.eq.s32.totalorder %s26, 2
      %p175 = por %p173, %p174
      %p177 = scmp.ne.s32.totalorder %s162, %s176
      %p178 = scmp.eq.s32.totalorder %s26, 0
      %p179 = por %p177, %p178
      %s180 = ssub.s32 %s20, %s27
      %p181 = scmp.eq.s32.totalorder %s180, 0
      %s183 = sadd.s32 %s182, 1
      %s184 = scalar_select %p181, %s182, %s183
      %p187 = pneg %p181
      %p188 = scmp.eq.s32.totalorder %s20, 2
      %p189 = por %p187, %p188
      %p190 = scmp.ne.s32.totalorder %s182, %s185
      %p191 = scmp.eq.s32.totalorder %s20, 0
      %p192 = por %p190, %p191
      %p193 = scmp.ne.s32.totalorder %s182, %s185
      %p194 = scmp.eq.s32.totalorder %s25, 2
      %p195 = por %p193, %p194
      %p196 = scmp.ne.s32.totalorder %s185, %s186
      %p197 = scmp.eq.s32.totalorder %s25, 0
      %p198 = por %p196, %p197
      %p199 = scmp.ne.s32.totalorder %s185, %s186
      %p200 = scmp.eq.s32.totalorder %s26, 2
      %p201 = por %p199, %p200
      %p203 = scmp.ne.s32.totalorder %s186, %s202
      %p204 = scmp.eq.s32.totalorder %s26, 0
      %p205 = por %p203, %p204
      %s207 = sadd.s32 %s206, 1
      %p210 = scmp.eq.s32.totalorder %s20, 2
      %p211 = scmp.ne.s32.totalorder %s206, %s208
      %p212 = scmp.eq.s32.totalorder %s20, 0
      %p213 = por %p211, %p212
      %p214 = scmp.ne.s32.totalorder %s206, %s208
      %p215 = scmp.eq.s32.totalorder %s25, 2
      %p216 = por %p214, %p215
      %p217 = scmp.ne.s32.totalorder %s208, %s209
      %p218 = scmp.eq.s32.totalorder %s25, 0
      %p219 = por %p217, %p218
      %p220 = scmp.ne.s32.totalorder %s208, %s209
      %p221 = scmp.eq.s32.totalorder %s26, 2
      %p222 = por %p220, %p221
      %p224 = scmp.ne.s32.totalorder %s209, %s223
      %p225 = scmp.eq.s32.totalorder %s26, 0
      %p226 = por %p224, %p225
      %p227 = scmp.le.s32.totalorder 1, %s20
      %p228 = scmp.lt.s32.totalorder %s20, 4
      %p229 = pnand %p227, %p228
      %p230 = pneg %p229
      // Predicated region
      $region9: #{tpu_custom_call.1} parent=5 // pred_check
        _
      $region10: #{tpu_custom_call.1} parent=5 // pred_check_branch
        %232 = sbr.rel (%p229) target = $region12
      $region11: #{tpu_custom_call.1} parent=5 // pred_region
        %s233 = ssub.s32 %s20, 1
        // Predicated region
        $region13: #{tpu_custom_call.1} parent=11 // pred_check
          %p234 = pneg %p41
        $region14: #{tpu_custom_call.1} parent=11 // pred_check_branch
          %236 = sbr.rel (%p234) target = $region16
        $region15: #{tpu_custom_call.1} parent=11 // pred_region
          _
        $region16: #{tpu_custom_call.1} parent=11 // pred_fallthru
          _
        // Predicated region
        $region17: #{tpu_custom_call.1} parent=11 // pred_check
          %p237 = pneg %p88
        $region18: #{tpu_custom_call.1} parent=11 // pred_check_branch
          %239 = sbr.rel (%p237) target = $region20
        $region19: #{tpu_custom_call.1} parent=11 // pred_region
          _
        $region20: #{tpu_custom_call.1} parent=11 // pred_fallthru
          _
        // Predicated region
        $region21: #{tpu_custom_call.1} parent=11 // pred_check
          %p240 = pneg %p109
        $region22: #{tpu_custom_call.1} parent=11 // pred_check_branch
          %242 = sbr.rel (%p240) target = $region24
        $region23: #{tpu_custom_call.1} parent=11 // pred_region
          _
        $region24: #{tpu_custom_call.1} parent=11 // pred_fallthru
          _
        // Predicated region
        $region25: #{tpu_custom_call.1} parent=11 // pred_check
          %p243 = pneg %p130
        $region26: #{tpu_custom_call.1} parent=11 // pred_check_branch
          %245 = sbr.rel (%p243) target = $region28
        $region27: #{tpu_custom_call.1} parent=11 // pred_region
          _
        $region28: #{tpu_custom_call.1} parent=11 // pred_fallthru
          _
        // Predicated region
        $region29: #{tpu_custom_call.1} parent=11 // pred_check
          %p246 = pneg %p151
        $region30: #{tpu_custom_call.1} parent=11 // pred_check_branch
          %248 = sbr.rel (%p246) target = $region32
        $region31: #{tpu_custom_call.1} parent=11 // pred_region
          _
        $region32: #{tpu_custom_call.1} parent=11 // pred_fallthru
          _
        // Predicated region
        $region33: #{tpu_custom_call.1} parent=11 // pred_check
          %p249 = pneg %p172
        $region34: #{tpu_custom_call.1} parent=11 // pred_check_branch
          %251 = sbr.rel (%p249) target = $region36
        $region35: #{tpu_custom_call.1} parent=11 // pred_region
          _
        $region36: #{tpu_custom_call.1} parent=11 // pred_fallthru
          _
      $region12: #{tpu_custom_call.1} parent=5 // pred_fallthru
        _
      %p252 = scmp.lt.s32.totalorder %s20, 3
      // Predicated region
      $region37: #{tpu_custom_call.1} parent=5 // pred_check
        %p253 = pneg %p252
      $region38: #{tpu_custom_call.1} parent=5 // pred_check_branch
        %255 = sbr.rel (%p253) target = $region40
      $region39: #{tpu_custom_call.1} parent=5 // pred_region
        // Predicated region
        $region41: #{tpu_custom_call.1} parent=39 // pred_check
          %p256 = pneg %p61
        $region42: #{tpu_custom_call.1} parent=39 // pred_check_branch
          %258 = sbr.rel (%p256) target = $region44
        $region43: #{tpu_custom_call.1} parent=39 // pred_region
          %s259 = smul.u32 16, %s20
          %p260 = scmp.lt.s32.totalorder %s259, 47
          %s261 = scalar_select %p260, %s259, 47
          %s262 = smul.addr %s261, 8
          %s263 = scalar_lea.vmem %s1, %s262
          %s264 = smul.u32 16, %s20
        $region44: #{tpu_custom_call.1} parent=39 // pred_fallthru
          _
      $region40: #{tpu_custom_call.1} parent=5 // pred_fallthru
        _
      %p265 = scmp.le.s32.totalorder 1, %s20
      %p266 = scmp.lt.s32.totalorder %s20, 4
      %p267 = pnand %p265, %p266
      %p268 = pneg %p267
      // Predicated region
      $region45: #{tpu_custom_call.1} parent=5 // pred_check
        _
      $region46: #{tpu_custom_call.1} parent=5 // pred_check_branch
        %270 = sbr.rel (%p267) target = $region48
      $region47: #{tpu_custom_call.1} parent=5 // pred_region
        %s271 = ssub.s32 %s20, 1
        %p272 = pneg %p41
        %p273 = pneg %p38
        %s274 = smul.u32 16, %s25
        %p275 = scmp.lt.s32.totalorder %s274, 47
        %s276 = scalar_select %p275, %s274, 47
        %s277 = smul.addr %s276, 8
        %s278 = scalar_lea.vmem %s1, %s277
        %p279 = pneg %p67
        %p280 = pneg %p64
        %p281 = pneg %p88
        %p282 = pneg %p85
        %p283 = pneg %p109
        %p284 = pneg %p106
        %p285 = pneg %p130
        %p286 = pneg %p127
        %p287 = pneg %p151
        %p288 = pneg %p148
        %p289 = pneg %p172
        %p290 = pneg %p169
        %p291 = pneg %p198
        %p292 = pneg %p195
        %s293 = sand.u32 %s185, 1
        %s294 = scalar_lea.sflag [#allocation8], %s293
        %s295 = sand.u32 %s185, 1
        %s296 = scalar_lea.vmem [#allocation7], %s295
        %p297 = pneg %p219
        %p298 = pneg %p216
        %s299 = smul.u32 16, %s25
        %p300 = scmp.lt.s32.totalorder %s299, 47
        %s301 = scalar_select %p300, %s299, 47
        %s302 = smul.addr %s301, 8
        %s303 = scalar_lea.vmem %s1, %s302
        %s304 = smul.u32 16, %s25
        %p305 = scmp.eq.s32.totalorder %s25, 0
        // Predicated region
        $region49: #{tpu_custom_call.1} parent=47 // pred_check
          %p306 = pneg %p305
        $region50: #{tpu_custom_call.1} parent=47 // pred_check_branch
          %308 = sbr.rel (%p306) target = $region52
        $region51: #{tpu_custom_call.1} parent=47 // pred_region
          %v309 = vld [vmem:[%s2] sm:$0xff]
          %v310 = vld [vmem:[%s2 + $0x8] sm:$0xff]
          %v311 = vld [vmem:[%s2 + $0x10] sm:$0xff]
          %v312 = vld [vmem:[%s2 + $0x18] sm:$0xff]
          %v313 = vld [vmem:[%s2 + $0x20] sm:$0xff]
          %v314 = vld [vmem:[%s2 + $0x28] sm:$0xff]
          %v315 = vld [vmem:[%s2 + $0x30] sm:$0xff]
          %v316 = vld [vmem:[%s2 + $0x38] sm:$0xff]
          %v317 = vld [vmem:[%s2 + $0x40] sm:$0xff]
          %v318 = vld [vmem:[%s2 + $0x48] sm:$0xff]
          %v319 = vld [vmem:[%s2 + $0x50] sm:$0xff]
          %v320 = vld [vmem:[%s2 + $0x58] sm:$0xff]
          %v321 = vld [vmem:[%s2 + $0x60] sm:$0xff]
          %v322 = vld [vmem:[%s2 + $0x68] sm:$0xff]
          %v323 = vld [vmem:[%s2 + $0x70] sm:$0xff]
          %v324 = vld [vmem:[%s2 + $0x78] sm:$0xff]
          %v325 = vld [vmem:[%s2 + $0x80] sm:$0xff]
          %v326 = vld [vmem:[%s2 + $0x88] sm:$0xff]
          %v327 = vld [vmem:[%s2 + $0x90] sm:$0xff]
          %v328 = vld [vmem:[%s2 + $0x98] sm:$0xff]
          %v329 = vld [vmem:[%s2 + $0xa0] sm:$0xff]
          %v330 = vld [vmem:[%s2 + $0xa8] sm:$0xff]
          %v331 = vld [vmem:[%s2 + $0xb0] sm:$0xff]
          %v332 = vld [vmem:[%s2 + $0xb8] sm:$0xff]
          %v333 = vld [vmem:[%s2 + $0xc0] sm:$0xff]
          %v334 = vld [vmem:[%s2 + $0xc8] sm:$0xff]
          %v335 = vld [vmem:[%s2 + $0xd0] sm:$0xff]
          %v336 = vld [vmem:[%s2 + $0xd8] sm:$0xff]
          %v337 = vld [vmem:[%s2 + $0xe0] sm:$0xff]
          %v338 = vld [vmem:[%s2 + $0xe8] sm:$0xff]
          %v339 = vld [vmem:[%s2 + $0xf0] sm:$0xff]
          %v340 = vld [vmem:[%s2 + $0xf8] sm:$0xff]
          %v341 = vld [vmem:[%s2 + $0x100] sm:$0xff]
          %v342 = vld [vmem:[%s2 + $0x108] sm:$0xff]
          %v343 = vld [vmem:[%s2 + $0x110] sm:$0xff]
          %v344 = vld [vmem:[%s2 + $0x118] sm:$0xff]
          %v345 = vld [vmem:[%s2 + $0x120] sm:$0xff]
          %v346 = vld [vmem:[%s2 + $0x128] sm:$0xff]
          %v347 = vld [vmem:[%s2 + $0x130] sm:$0xff]
          %v348 = vld [vmem:[%s2 + $0x138] sm:$0xff]
          %v349 = vld [vmem:[%s2 + $0x140] sm:$0xff]
          %v350 = vld [vmem:[%s2 + $0x148] sm:$0xff]
          %v351 = vld [vmem:[%s2 + $0x150] sm:$0xff]
          %v352 = vld [vmem:[%s2 + $0x158] sm:$0xff]
          %v353 = vld [vmem:[%s2 + $0x160] sm:$0xff]
          %v354 = vld [vmem:[%s2 + $0x168] sm:$0xff]
          %v355 = vld [vmem:[%s2 + $0x170] sm:$0xff]
          %v356 = vld [vmem:[%s2 + $0x178] sm:$0xff]
          %v357 = vld [vmem:[%s5] sm:$0xff]
          %v358 = vld [vmem:[%s5 + $0x8] sm:$0xff]
          %v359 = vld [vmem:[%s5 + $0x10] sm:$0xff]
          %v360 = vld [vmem:[%s5 + $0x18] sm:$0xff]
          %v361 = vld [vmem:[%s5 + $0x20] sm:$0xff]
          %v362 = vld [vmem:[%s6] sm:$0x1]
          %v364 = vperm.slane %v362, 0
          %vm366 = vcmask 326656
          %v368 = vsel %vm366, %v309, 0
          %v371 = vsel %vm366, %v310, 0
          %v374 = vsel %vm366, %v311, 0
          %v377 = vsel %vm366, %v312, 0
          %v380 = vsel %vm366, %v313, 0
          %v383 = vsel %vm366, %v314, 0
          %v386 = vsel %vm366, %v315, 0
          %v389 = vsel %vm366, %v316, 0
          %v392 = vsel %vm366, %v317, 0
          %v395 = vsel %vm366, %v318, 0
          %v398 = vsel %vm366, %v319, 0
          %v401 = vsel %vm366, %v320, 0
          %v404 = vsel %vm366, %v321, 0
          %v407 = vsel %vm366, %v322, 0
          %v410 = vsel %vm366, %v323, 0
          %v413 = vsel %vm366, %v324, 0
          %v416 = vsel %vm366, %v325, 0
          %v419 = vsel %vm366, %v326, 0
          %v422 = vsel %vm366, %v327, 0
          %v425 = vsel %vm366, %v328, 0
          %v428 = vsel %vm366, %v329, 0
          %v431 = vsel %vm366, %v330, 0
          %v434 = vsel %vm366, %v331, 0
          %v437 = vsel %vm366, %v332, 0
          %v440 = vsel %vm366, %v333, 0
          %v443 = vsel %vm366, %v334, 0
          %v446 = vsel %vm366, %v335, 0
          %v449 = vsel %vm366, %v336, 0
          %v452 = vsel %vm366, %v337, 0
          %v455 = vsel %vm366, %v338, 0
          %v458 = vsel %vm366, %v339, 0
          %v461 = vsel %vm366, %v340, 0
          %v464 = vsel %vm366, %v341, 0
          %v467 = vsel %vm366, %v342, 0
          %v470 = vsel %vm366, %v343, 0
          %v473 = vsel %vm366, %v344, 0
          %v476 = vsel %vm366, %v345, 0
          %v479 = vsel %vm366, %v346, 0
          %v482 = vsel %vm366, %v347, 0
          %v485 = vsel %vm366, %v348, 0
          %v488 = vsel %vm366, %v349, 0
          %v491 = vsel %vm366, %v350, 0
          %v494 = vsel %vm366, %v351, 0
          %v497 = vsel %vm366, %v352, 0
          %v500 = vsel %vm366, %v353, 0
          %v503 = vsel %vm366, %v354, 0
          %v506 = vsel %vm366, %v355, 0
          %v509 = vsel %vm366, %v356, 0
          %511 = vmatpush.msra.mxu0 0.0
          %512 = vmatpush.msra.mxu0 0.0
          %513 = vmatpush.msra.mxu0 0.0
          %514 = vmatpush.msra.mxu0 0.0
          %515 = vmatpush.msra.mxu0 0.0
          %516 = vmatpush.msra.mxu0 0.0
          %517 = vmatpush.msra.mxu0 0.0
          %518 = vmatpush.msra.mxu0 0.0
          %519 = vmatpush.msra.mxu0 0.0
          %520 = vmatpush.msra.mxu0 0.0
          %521 = vmatpush.msra.mxu0 0.0
          %522 = vmatpush.msra.mxu0 %v361
          %523 = vmatpush.msra.mxu0 %v360
          %524 = vmatpush.msra.mxu0 %v359
          %525 = vmatpush.msra.mxu0 %v358
          %526 = vmatpush.msra.mxu0 %v357
          %527 = vmatmul.f32.gmra.mxu0 %v368
          %v528 = vpop.f32.mrf.mxu0
          %v529 = vadd.f32 %v364, %v528
          %530 = vmatmul.f32.gmra.mxu0 %v371
          %v531 = vpop.f32.mrf.mxu0
          %v532 = vadd.f32 %v364, %v531
          %533 = vmatmul.f32.gmra.mxu0 %v374
          %v534 = vpop.f32.mrf.mxu0
          %v535 = vadd.f32 %v364, %v534
          %536 = vmatmul.f32.gmra.mxu0 %v377
          %v537 = vpop.f32.mrf.mxu0
          %v538 = vadd.f32 %v364, %v537
          %539 = vmatmul.f32.gmra.mxu0 %v380
          %v540 = vpop.f32.mrf.mxu0
          %v541 = vadd.f32 %v364, %v540
          %542 = vmatmul.f32.gmra.mxu0 %v383
          %v543 = vpop.f32.mrf.mxu0
          %v544 = vadd.f32 %v364, %v543
          %545 = vmatmul.f32.gmra.mxu0 %v386
          %v546 = vpop.f32.mrf.mxu0
          %v547 = vadd.f32 %v364, %v546
          %548 = vmatmul.f32.gmra.mxu0 %v389
          %v549 = vpop.f32.mrf.mxu0
          %v550 = vadd.f32 %v364, %v549
          %551 = vmatmul.f32.gmra.mxu0 %v392
          %v552 = vpop.f32.mrf.mxu0
          %v553 = vadd.f32 %v364, %v552
          %554 = vmatmul.f32.gmra.mxu0 %v395
          %v555 = vpop.f32.mrf.mxu0
          %v556 = vadd.f32 %v364, %v555
          %557 = vmatmul.f32.gmra.mxu0 %v398
          %v558 = vpop.f32.mrf.mxu0
          %v559 = vadd.f32 %v364, %v558
          %560 = vmatmul.f32.gmra.mxu0 %v401
          %v561 = vpop.f32.mrf.mxu0
          %v562 = vadd.f32 %v364, %v561
          %563 = vmatmul.f32.gmra.mxu0 %v404
          %v564 = vpop.f32.mrf.mxu0
          %v565 = vadd.f32 %v364, %v564
          %566 = vmatmul.f32.gmra.mxu0 %v407
          %v567 = vpop.f32.mrf.mxu0
          %v568 = vadd.f32 %v364, %v567
          %569 = vmatmul.f32.gmra.mxu0 %v410
          %v570 = vpop.f32.mrf.mxu0
          %v571 = vadd.f32 %v364, %v570
          %572 = vmatmul.f32.gmra.mxu0 %v413
          %v573 = vpop.f32.mrf.mxu0
          %v574 = vadd.f32 %v364, %v573
          %575 = vmatmul.f32.gmra.mxu0 %v416
          %v576 = vpop.f32.mrf.mxu0
          %v577 = vadd.f32 %v364, %v576
          %578 = vmatmul.f32.gmra.mxu0 %v419
          %v579 = vpop.f32.mrf.mxu0
          %v580 = vadd.f32 %v364, %v579
          %581 = vmatmul.f32.gmra.mxu0 %v422
          %v582 = vpop.f32.mrf.mxu0
          %v583 = vadd.f32 %v364, %v582
          %584 = vmatmul.f32.gmra.mxu0 %v425
          %v585 = vpop.f32.mrf.mxu0
          %v586 = vadd.f32 %v364, %v585
          %587 = vmatmul.f32.gmra.mxu0 %v428
          %v588 = vpop.f32.mrf.mxu0
          %v589 = vadd.f32 %v364, %v588
          %590 = vmatmul.f32.gmra.mxu0 %v431
          %v591 = vpop.f32.mrf.mxu0
          %v592 = vadd.f32 %v364, %v591
          %593 = vmatmul.f32.gmra.mxu0 %v434
          %v594 = vpop.f32.mrf.mxu0
          %v595 = vadd.f32 %v364, %v594
          %596 = vmatmul.f32.gmra.mxu0 %v437
          %v597 = vpop.f32.mrf.mxu0
          %v598 = vadd.f32 %v364, %v597
          %599 = vmatmul.f32.gmra.mxu0 %v440
          %v600 = vpop.f32.mrf.mxu0
          %v601 = vadd.f32 %v364, %v600
          %602 = vmatmul.f32.gmra.mxu0 %v443
          %v603 = vpop.f32.mrf.mxu0
          %v604 = vadd.f32 %v364, %v603
          %605 = vmatmul.f32.gmra.mxu0 %v446
          %v606 = vpop.f32.mrf.mxu0
          %v607 = vadd.f32 %v364, %v606
          %608 = vmatmul.f32.gmra.mxu0 %v449
          %v609 = vpop.f32.mrf.mxu0
          %v610 = vadd.f32 %v364, %v609
          %611 = vmatmul.f32.gmra.mxu0 %v452
          %v612 = vpop.f32.mrf.mxu0
          %v613 = vadd.f32 %v364, %v612
          %614 = vmatmul.f32.gmra.mxu0 %v455
          %v615 = vpop.f32.mrf.mxu0
          %v616 = vadd.f32 %v364, %v615
          %617 = vmatmul.f32.gmra.mxu0 %v458
          %v618 = vpop.f32.mrf.mxu0
          %v619 = vadd.f32 %v364, %v618
          %620 = vmatmul.f32.gmra.mxu0 %v461
          %v621 = vpop.f32.mrf.mxu0
          %v622 = vadd.f32 %v364, %v621
          %623 = vmatmul.f32.gmra.mxu0 %v464
          %v624 = vpop.f32.mrf.mxu0
          %v625 = vadd.f32 %v364, %v624
          %626 = vmatmul.f32.gmra.mxu0 %v467
          %v627 = vpop.f32.mrf.mxu0
          %v628 = vadd.f32 %v364, %v627
          %629 = vmatmul.f32.gmra.mxu0 %v470
          %v630 = vpop.f32.mrf.mxu0
          %v631 = vadd.f32 %v364, %v630
          %632 = vmatmul.f32.gmra.mxu0 %v473
          %v633 = vpop.f32.mrf.mxu0
          %v634 = vadd.f32 %v364, %v633
          %635 = vmatmul.f32.gmra.mxu0 %v476
          %v636 = vpop.f32.mrf.mxu0
          %v637 = vadd.f32 %v364, %v636
          %638 = vmatmul.f32.gmra.mxu0 %v479
          %v639 = vpop.f32.mrf.mxu0
          %v640 = vadd.f32 %v364, %v639
          %641 = vmatmul.f32.gmra.mxu0 %v482
          %v642 = vpop.f32.mrf.mxu0
          %v643 = vadd.f32 %v364, %v642
          %644 = vmatmul.f32.gmra.mxu0 %v485
          %v645 = vpop.f32.mrf.mxu0
          %v646 = vadd.f32 %v364, %v645
          %647 = vmatmul.f32.gmra.mxu0 %v488
          %v648 = vpop.f32.mrf.mxu0
          %v649 = vadd.f32 %v364, %v648
          %650 = vmatmul.f32.gmra.mxu0 %v491
          %v651 = vpop.f32.mrf.mxu0
          %v652 = vadd.f32 %v364, %v651
          %653 = vmatmul.f32.gmra.mxu0 %v494
          %v654 = vpop.f32.mrf.mxu0
          %v655 = vadd.f32 %v364, %v654
          %656 = vmatmul.f32.gmra.mxu0 %v497
          %v657 = vpop.f32.mrf.mxu0
          %v658 = vadd.f32 %v364, %v657
          %659 = vmatmul.f32.gmra.mxu0 %v500
          %v660 = vpop.f32.mrf.mxu0
          %v661 = vadd.f32 %v364, %v660
          %662 = vmatmul.f32.gmra.mxu0 %v503
          %v663 = vpop.f32.mrf.mxu0
          %v664 = vadd.f32 %v364, %v663
          %665 = vmatmul.f32.gmra.mxu0 %v506
          %v666 = vpop.f32.mrf.mxu0
          %v667 = vadd.f32 %v364, %v666
          %668 = vmatmul.f32.gmra.mxu0 %v509
          %v669 = vpop.f32.mrf.mxu0
          %v670 = vadd.f32 %v364, %v669
          %671 = vdwg.mxu0
          %v672 = vmul.f32 %v529, %v529
          %v673 = vmul.f32 %v532, %v532
          %v674 = vmul.f32 %v535, %v535
          %v675 = vmul.f32 %v538, %v538
          %v676 = vmul.f32 %v541, %v541
          %v677 = vmul.f32 %v544, %v544
          %v678 = vmul.f32 %v547, %v547
          %v679 = vmul.f32 %v550, %v550
          %v680 = vmul.f32 %v553, %v553
          %v681 = vmul.f32 %v556, %v556
          %v682 = vmul.f32 %v559, %v559
          %v683 = vmul.f32 %v562, %v562
          %v684 = vmul.f32 %v565, %v565
          %v685 = vmul.f32 %v568, %v568
          %v686 = vmul.f32 %v571, %v571
          %v687 = vmul.f32 %v574, %v574
          %v688 = vmul.f32 %v577, %v577
          %v689 = vmul.f32 %v580, %v580
          %v690 = vmul.f32 %v583, %v583
          %v691 = vmul.f32 %v586, %v586
          %v692 = vmul.f32 %v589, %v589
          %v693 = vmul.f32 %v592, %v592
          %v694 = vmul.f32 %v595, %v595
          %v695 = vmul.f32 %v598, %v598
          %v696 = vmul.f32 %v601, %v601
          %v697 = vmul.f32 %v604, %v604
          %v698 = vmul.f32 %v607, %v607
          %v699 = vmul.f32 %v610, %v610
          %v700 = vmul.f32 %v613, %v613
          %v701 = vmul.f32 %v616, %v616
          %v702 = vmul.f32 %v619, %v619
          %v703 = vmul.f32 %v622, %v622
          %v704 = vmul.f32 %v625, %v625
          %v705 = vmul.f32 %v628, %v628
          %v706 = vmul.f32 %v631, %v631
          %v707 = vmul.f32 %v634, %v634
          %v708 = vmul.f32 %v637, %v637
          %v709 = vmul.f32 %v640, %v640
          %v710 = vmul.f32 %v643, %v643
          %v711 = vmul.f32 %v646, %v646
          %v712 = vmul.f32 %v649, %v649
          %v713 = vmul.f32 %v652, %v652
          %v714 = vmul.f32 %v655, %v655
          %v715 = vmul.f32 %v658, %v658
          %v716 = vmul.f32 %v661, %v661
          %v717 = vmul.f32 %v664, %v664
          %v718 = vmul.f32 %v667, %v667
          %v719 = vmul.f32 %v670, %v670
          %vm720 = vcmask 261120
          %v721 = vsel %vm720, %v672, 0.0
          %722 = vadd.xlane.f32.xlu0 %v721
          %v723 = vpop.xlane.xlu0 %722
          %v724 = vsel %vm720, %v673, 0.0
          %725 = vadd.xlane.f32.xlu0 %v724
          %v726 = vpop.xlane.xlu0 %725
          %v727 = vsel %vm720, %v674, 0.0
          %728 = vadd.xlane.f32.xlu0 %v727
          %v729 = vpop.xlane.xlu0 %728
          %v730 = vsel %vm720, %v675, 0.0
          %731 = vadd.xlane.f32.xlu0 %v730
          %v732 = vpop.xlane.xlu0 %731
          %v733 = vsel %vm720, %v676, 0.0
          %734 = vadd.xlane.f32.xlu0 %v733
          %v735 = vpop.xlane.xlu0 %734
          %v736 = vsel %vm720, %v677, 0.0
          %737 = vadd.xlane.f32.xlu0 %v736
          %v738 = vpop.xlane.xlu0 %737
          %v739 = vsel %vm720, %v678, 0.0
          %740 = vadd.xlane.f32.xlu0 %v739
          %v741 = vpop.xlane.xlu0 %740
          %v742 = vsel %vm720, %v679, 0.0
          %743 = vadd.xlane.f32.xlu0 %v742
          %v744 = vpop.xlane.xlu0 %743
          %v745 = vsel %vm720, %v680, 0.0
          %746 = vadd.xlane.f32.xlu0 %v745
          %v747 = vpop.xlane.xlu0 %746
          %v748 = vsel %vm720, %v681, 0.0
          %749 = vadd.xlane.f32.xlu0 %v748
          %v750 = vpop.xlane.xlu0 %749
          %v751 = vsel %vm720, %v682, 0.0
          %752 = vadd.xlane.f32.xlu0 %v751
          %v753 = vpop.xlane.xlu0 %752
          %v754 = vsel %vm720, %v683, 0.0
          %755 = vadd.xlane.f32.xlu0 %v754
          %v756 = vpop.xlane.xlu0 %755
          %v757 = vsel %vm720, %v684, 0.0
          %758 = vadd.xlane.f32.xlu0 %v757
          %v759 = vpop.xlane.xlu0 %758
          %v760 = vsel %vm720, %v685, 0.0
          %761 = vadd.xlane.f32.xlu0 %v760
          %v762 = vpop.xlane.xlu0 %761
          %v763 = vsel %vm720, %v686, 0.0
          %764 = vadd.xlane.f32.xlu0 %v763
          %v765 = vpop.xlane.xlu0 %764
          %v766 = vsel %vm720, %v687, 0.0
          %767 = vadd.xlane.f32.xlu0 %v766
          %v768 = vpop.xlane.xlu0 %767
          %v769 = vsel %vm720, %v688, 0.0
          %770 = vadd.xlane.f32.xlu0 %v769
          %v771 = vpop.xlane.xlu0 %770
          %v772 = vsel %vm720, %v689, 0.0
          %773 = vadd.xlane.f32.xlu0 %v772
          %v774 = vpop.xlane.xlu0 %773
          %v775 = vsel %vm720, %v690, 0.0
          %776 = vadd.xlane.f32.xlu0 %v775
          %v777 = vpop.xlane.xlu0 %776
          %v778 = vsel %vm720, %v691, 0.0
          %779 = vadd.xlane.f32.xlu0 %v778
          %v780 = vpop.xlane.xlu0 %779
          %v781 = vsel %vm720, %v692, 0.0
          %782 = vadd.xlane.f32.xlu0 %v781
          %v783 = vpop.xlane.xlu0 %782
          %v784 = vsel %vm720, %v693, 0.0
          %785 = vadd.xlane.f32.xlu0 %v784
          %v786 = vpop.xlane.xlu0 %785
          %v787 = vsel %vm720, %v694, 0.0
          %788 = vadd.xlane.f32.xlu0 %v787
          %v789 = vpop.xlane.xlu0 %788
          %v790 = vsel %vm720, %v695, 0.0
          %791 = vadd.xlane.f32.xlu0 %v790
          %v792 = vpop.xlane.xlu0 %791
          %v793 = vsel %vm720, %v696, 0.0
          %794 = vadd.xlane.f32.xlu0 %v793
          %v795 = vpop.xlane.xlu0 %794
          %v796 = vsel %vm720, %v697, 0.0
          %797 = vadd.xlane.f32.xlu0 %v796
          %v798 = vpop.xlane.xlu0 %797
          %v799 = vsel %vm720, %v698, 0.0
          %800 = vadd.xlane.f32.xlu0 %v799
          %v801 = vpop.xlane.xlu0 %800
          %v802 = vsel %vm720, %v699, 0.0
          %803 = vadd.xlane.f32.xlu0 %v802
          %v804 = vpop.xlane.xlu0 %803
          %v805 = vsel %vm720, %v700, 0.0
          %806 = vadd.xlane.f32.xlu0 %v805
          %v807 = vpop.xlane.xlu0 %806
          %v808 = vsel %vm720, %v701, 0.0
          %809 = vadd.xlane.f32.xlu0 %v808
          %v810 = vpop.xlane.xlu0 %809
          %v811 = vsel %vm720, %v702, 0.0
          %812 = vadd.xlane.f32.xlu0 %v811
          %v813 = vpop.xlane.xlu0 %812
          %v814 = vsel %vm720, %v703, 0.0
          %815 = vadd.xlane.f32.xlu0 %v814
          %v816 = vpop.xlane.xlu0 %815
          %v817 = vsel %vm720, %v704, 0.0
          %818 = vadd.xlane.f32.xlu0 %v817
          %v819 = vpop.xlane.xlu0 %818
          %v820 = vsel %vm720, %v705, 0.0
          %821 = vadd.xlane.f32.xlu0 %v820
          %v822 = vpop.xlane.xlu0 %821
          %v823 = vsel %vm720, %v706, 0.0
          %824 = vadd.xlane.f32.xlu0 %v823
          %v825 = vpop.xlane.xlu0 %824
          %v826 = vsel %vm720, %v707, 0.0
          %827 = vadd.xlane.f32.xlu0 %v826
          %v828 = vpop.xlane.xlu0 %827
          %v829 = vsel %vm720, %v708, 0.0
          %830 = vadd.xlane.f32.xlu0 %v829
          %v831 = vpop.xlane.xlu0 %830
          %v832 = vsel %vm720, %v709, 0.0
          %833 = vadd.xlane.f32.xlu0 %v832
          %v834 = vpop.xlane.xlu0 %833
          %v835 = vsel %vm720, %v710, 0.0
          %836 = vadd.xlane.f32.xlu0 %v835
          %v837 = vpop.xlane.xlu0 %836
          %v838 = vsel %vm720, %v711, 0.0
          %839 = vadd.xlane.f32.xlu0 %v838
          %v840 = vpop.xlane.xlu0 %839
          %v841 = vsel %vm720, %v712, 0.0
          %842 = vadd.xlane.f32.xlu0 %v841
          %v843 = vpop.xlane.xlu0 %842
          %v844 = vsel %vm720, %v713, 0.0
          %845 = vadd.xlane.f32.xlu0 %v844
          %v846 = vpop.xlane.xlu0 %845
          %v847 = vsel %vm720, %v714, 0.0
          %848 = vadd.xlane.f32.xlu0 %v847
          %v849 = vpop.xlane.xlu0 %848
          %v850 = vsel %vm720, %v715, 0.0
          %851 = vadd.xlane.f32.xlu0 %v850
          %v852 = vpop.xlane.xlu0 %851
          %v853 = vsel %vm720, %v716, 0.0
          %854 = vadd.xlane.f32.xlu0 %v853
          %v855 = vpop.xlane.xlu0 %854
          %v856 = vsel %vm720, %v717, 0.0
          %857 = vadd.xlane.f32.xlu0 %v856
          %v858 = vpop.xlane.xlu0 %857
          %v859 = vsel %vm720, %v718, 0.0
          %860 = vadd.xlane.f32.xlu0 %v859
          %v861 = vpop.xlane.xlu0 %860
          %v862 = vsel %vm720, %v719, 0.0
          %863 = vadd.xlane.f32.xlu0 %v862
          %v864 = vpop.xlane.xlu0 %863
          %v865 = vmax.f32 %v723, 1e-24
          %v866 = vmax.f32 %v726, 1e-24
          %v867 = vmax.f32 %v729, 1e-24
          %v868 = vmax.f32 %v732, 1e-24
          %v869 = vmax.f32 %v735, 1e-24
          %v870 = vmax.f32 %v738, 1e-24
          %v871 = vmax.f32 %v741, 1e-24
          %v872 = vmax.f32 %v744, 1e-24
          %v873 = vmax.f32 %v747, 1e-24
          %v874 = vmax.f32 %v750, 1e-24
          %v875 = vmax.f32 %v753, 1e-24
          %v876 = vmax.f32 %v756, 1e-24
          %v877 = vmax.f32 %v759, 1e-24
          %v878 = vmax.f32 %v762, 1e-24
          %v879 = vmax.f32 %v765, 1e-24
          %v880 = vmax.f32 %v768, 1e-24
          %v881 = vmax.f32 %v771, 1e-24
          %v882 = vmax.f32 %v774, 1e-24
          %v883 = vmax.f32 %v777, 1e-24
          %v884 = vmax.f32 %v780, 1e-24
          %v885 = vmax.f32 %v783, 1e-24
          %v886 = vmax.f32 %v786, 1e-24
          %v887 = vmax.f32 %v789, 1e-24
          %v888 = vmax.f32 %v792, 1e-24
          %v889 = vmax.f32 %v795, 1e-24
          %v890 = vmax.f32 %v798, 1e-24
          %v891 = vmax.f32 %v801, 1e-24
          %v892 = vmax.f32 %v804, 1e-24
          %v893 = vmax.f32 %v807, 1e-24
          %v894 = vmax.f32 %v810, 1e-24
          %v895 = vmax.f32 %v813, 1e-24
          %v896 = vmax.f32 %v816, 1e-24
          %v897 = vmax.f32 %v819, 1e-24
          %v898 = vmax.f32 %v822, 1e-24
          %v899 = vmax.f32 %v825, 1e-24
          %v900 = vmax.f32 %v828, 1e-24
          %v901 = vmax.f32 %v831, 1e-24
          %v902 = vmax.f32 %v834, 1e-24
          %v903 = vmax.f32 %v837, 1e-24
          %v904 = vmax.f32 %v840, 1e-24
          %v905 = vmax.f32 %v843, 1e-24
          %v906 = vmax.f32 %v846, 1e-24
          %v907 = vmax.f32 %v849, 1e-24
          %v908 = vmax.f32 %v852, 1e-24
          %v909 = vmax.f32 %v855, 1e-24
          %v910 = vmax.f32 %v858, 1e-24
          %v911 = vmax.f32 %v861, 1e-24
          %v912 = vmax.f32 %v864, 1e-24
          %v913 = vrsqrt.pop %v865
          %v914 = vmul.f32 %v913, %v865
          %v915 = vmul.f32 %v914, %v913
          %v916 = vmul.f32 0.5, %v915
          %v917 = vsub.f32 1.5, %v916
          %v918 = vmul.f32 %v913, %v917
          %vm919 = vweird.f32 %v865
          %vm920 = vweird.f32 %v913
          %vm921 = vmor %vm919, %vm920
          %v922 = vsel %vm921, %v913, %v918
          %v923 = vrsqrt.pop %v866
          %v924 = vmul.f32 %v923, %v866
          %v925 = vmul.f32 %v924, %v923
          %v926 = vmul.f32 0.5, %v925
          %v927 = vsub.f32 1.5, %v926
          %v928 = vmul.f32 %v923, %v927
          %vm929 = vweird.f32 %v866
          %vm930 = vweird.f32 %v923
          %vm931 = vmor %vm929, %vm930
          %v932 = vsel %vm931, %v923, %v928
          %v933 = vrsqrt.pop %v867
          %v934 = vmul.f32 %v933, %v867
          %v935 = vmul.f32 %v934, %v933
          %v936 = vmul.f32 0.5, %v935
          %v937 = vsub.f32 1.5, %v936
          %v938 = vmul.f32 %v933, %v937
          %vm939 = vweird.f32 %v867
          %vm940 = vweird.f32 %v933
          %vm941 = vmor %vm939, %vm940
          %v942 = vsel %vm941, %v933, %v938
          %v943 = vrsqrt.pop %v868
          %v944 = vmul.f32 %v943, %v868
          %v945 = vmul.f32 %v944, %v943
          %v946 = vmul.f32 0.5, %v945
          %v947 = vsub.f32 1.5, %v946
          %v948 = vmul.f32 %v943, %v947
          %vm949 = vweird.f32 %v868
          %vm950 = vweird.f32 %v943
          %vm951 = vmor %vm949, %vm950
          %v952 = vsel %vm951, %v943, %v948
          %v953 = vrsqrt.pop %v869
          %v954 = vmul.f32 %v953, %v869
          %v955 = vmul.f32 %v954, %v953
          %v956 = vmul.f32 0.5, %v955
          %v957 = vsub.f32 1.5, %v956
          %v958 = vmul.f32 %v953, %v957
          %vm959 = vweird.f32 %v869
          %vm960 = vweird.f32 %v953
          %vm961 = vmor %vm959, %vm960
          %v962 = vsel %vm961, %v953, %v958
          %v963 = vrsqrt.pop %v870
          %v964 = vmul.f32 %v963, %v870
          %v965 = vmul.f32 %v964, %v963
          %v966 = vmul.f32 0.5, %v965
          %v967 = vsub.f32 1.5, %v966
          %v968 = vmul.f32 %v963, %v967
          %vm969 = vweird.f32 %v870
          %vm970 = vweird.f32 %v963
          %vm971 = vmor %vm969, %vm970
          %v972 = vsel %vm971, %v963, %v968
          %v973 = vrsqrt.pop %v871
          %v974 = vmul.f32 %v973, %v871
          %v975 = vmul.f32 %v974, %v973
          %v976 = vmul.f32 0.5, %v975
          %v977 = vsub.f32 1.5, %v976
          %v978 = vmul.f32 %v973, %v977
          %vm979 = vweird.f32 %v871
          %vm980 = vweird.f32 %v973
          %vm981 = vmor %vm979, %vm980
          %v982 = vsel %vm981, %v973, %v978
          %v983 = vrsqrt.pop %v872
          %v984 = vmul.f32 %v983, %v872
          %v985 = vmul.f32 %v984, %v983
          %v986 = vmul.f32 0.5, %v985
          %v987 = vsub.f32 1.5, %v986
          %v988 = vmul.f32 %v983, %v987
          %vm989 = vweird.f32 %v872
          %vm990 = vweird.f32 %v983
          %vm991 = vmor %vm989, %vm990
          %v992 = vsel %vm991, %v983, %v988
          %v993 = vrsqrt.pop %v873
          %v994 = vmul.f32 %v993, %v873
          %v995 = vmul.f32 %v994, %v993
          %v996 = vmul.f32 0.5, %v995
          %v997 = vsub.f32 1.5, %v996
          %v998 = vmul.f32 %v993, %v997
          %vm999 = vweird.f32 %v873
          %vm1000 = vweird.f32 %v993
          %vm1001 = vmor %vm999, %vm1000
          %v1002 = vsel %vm1001, %v993, %v998
          %v1003 = vrsqrt.pop %v874
          %v1004 = vmul.f32 %v1003, %v874
          %v1005 = vmul.f32 %v1004, %v1003
          %v1006 = vmul.f32 0.5, %v1005
          %v1007 = vsub.f32 1.5, %v1006
          %v1008 = vmul.f32 %v1003, %v1007
          %vm1009 = vweird.f32 %v874
          %vm1010 = vweird.f32 %v1003
          %vm1011 = vmor %vm1009, %vm1010
          %v1012 = vsel %vm1011, %v1003, %v1008
          %v1013 = vrsqrt.pop %v875
          %v1014 = vmul.f32 %v1013, %v875
          %v1015 = vmul.f32 %v1014, %v1013
          %v1016 = vmul.f32 0.5, %v1015
          %v1017 = vsub.f32 1.5, %v1016
          %v1018 = vmul.f32 %v1013, %v1017
          %vm1019 = vweird.f32 %v875
          %vm1020 = vweird.f32 %v1013
          %vm1021 = vmor %vm1019, %vm1020
          %v1022 = vsel %vm1021, %v1013, %v1018
          %v1023 = vrsqrt.pop %v876
          %v1024 = vmul.f32 %v1023, %v876
          %v1025 = vmul.f32 %v1024, %v1023
          %v1026 = vmul.f32 0.5, %v1025
          %v1027 = vsub.f32 1.5, %v1026
          %v1028 = vmul.f32 %v1023, %v1027
          %vm1029 = vweird.f32 %v876
          %vm1030 = vweird.f32 %v1023
          %vm1031 = vmor %vm1029, %vm1030
          %v1032 = vsel %vm1031, %v1023, %v1028
          %v1033 = vrsqrt.pop %v877
          %v1034 = vmul.f32 %v1033, %v877
          %v1035 = vmul.f32 %v1034, %v1033
          %v1036 = vmul.f32 0.5, %v1035
          %v1037 = vsub.f32 1.5, %v1036
          %v1038 = vmul.f32 %v1033, %v1037
          %vm1039 = vweird.f32 %v877
          %vm1040 = vweird.f32 %v1033
          %vm1041 = vmor %vm1039, %vm1040
          %v1042 = vsel %vm1041, %v1033, %v1038
          %v1043 = vrsqrt.pop %v878
          %v1044 = vmul.f32 %v1043, %v878
          %v1045 = vmul.f32 %v1044, %v1043
          %v1046 = vmul.f32 0.5, %v1045
          %v1047 = vsub.f32 1.5, %v1046
          %v1048 = vmul.f32 %v1043, %v1047
          %vm1049 = vweird.f32 %v878
          %vm1050 = vweird.f32 %v1043
          %vm1051 = vmor %vm1049, %vm1050
          %v1052 = vsel %vm1051, %v1043, %v1048
          %v1053 = vrsqrt.pop %v879
          %v1054 = vmul.f32 %v1053, %v879
          %v1055 = vmul.f32 %v1054, %v1053
          %v1056 = vmul.f32 0.5, %v1055
          %v1057 = vsub.f32 1.5, %v1056
          %v1058 = vmul.f32 %v1053, %v1057
          %vm1059 = vweird.f32 %v879
          %vm1060 = vweird.f32 %v1053
          %vm1061 = vmor %vm1059, %vm1060
          %v1062 = vsel %vm1061, %v1053, %v1058
          %v1063 = vrsqrt.pop %v880
          %v1064 = vmul.f32 %v1063, %v880
          %v1065 = vmul.f32 %v1064, %v1063
          %v1066 = vmul.f32 0.5, %v1065
          %v1067 = vsub.f32 1.5, %v1066
          %v1068 = vmul.f32 %v1063, %v1067
          %vm1069 = vweird.f32 %v880
          %vm1070 = vweird.f32 %v1063
          %vm1071 = vmor %vm1069, %vm1070
          %v1072 = vsel %vm1071, %v1063, %v1068
          %v1073 = vrsqrt.pop %v881
          %v1074 = vmul.f32 %v1073, %v881
          %v1075 = vmul.f32 %v1074, %v1073
          %v1076 = vmul.f32 0.5, %v1075
          %v1077 = vsub.f32 1.5, %v1076
          %v1078 = vmul.f32 %v1073, %v1077
          %vm1079 = vweird.f32 %v881
          %vm1080 = vweird.f32 %v1073
          %vm1081 = vmor %vm1079, %vm1080
          %v1082 = vsel %vm1081, %v1073, %v1078
          %v1083 = vrsqrt.pop %v882
          %v1084 = vmul.f32 %v1083, %v882
          %v1085 = vmul.f32 %v1084, %v1083
          %v1086 = vmul.f32 0.5, %v1085
          %v1087 = vsub.f32 1.5, %v1086
          %v1088 = vmul.f32 %v1083, %v1087
          %vm1089 = vweird.f32 %v882
          %vm1090 = vweird.f32 %v1083
          %vm1091 = vmor %vm1089, %vm1090
          %v1092 = vsel %vm1091, %v1083, %v1088
          %v1093 = vrsqrt.pop %v883
          %v1094 = vmul.f32 %v1093, %v883
          %v1095 = vmul.f32 %v1094, %v1093
          %v1096 = vmul.f32 0.5, %v1095
          %v1097 = vsub.f32 1.5, %v1096
          %v1098 = vmul.f32 %v1093, %v1097
          %vm1099 = vweird.f32 %v883
          %vm1100 = vweird.f32 %v1093
          %vm1101 = vmor %vm1099, %vm1100
          %v1102 = vsel %vm1101, %v1093, %v1098
          %v1103 = vrsqrt.pop %v884
          %v1104 = vmul.f32 %v1103, %v884
          %v1105 = vmul.f32 %v1104, %v1103
          %v1106 = vmul.f32 0.5, %v1105
          %v1107 = vsub.f32 1.5, %v1106
          %v1108 = vmul.f32 %v1103, %v1107
          %vm1109 = vweird.f32 %v884
          %vm1110 = vweird.f32 %v1103
          %vm1111 = vmor %vm1109, %vm1110
          %v1112 = vsel %vm1111, %v1103, %v1108
          %v1113 = vrsqrt.pop %v885
          %v1114 = vmul.f32 %v1113, %v885
          %v1115 = vmul.f32 %v1114, %v1113
          %v1116 = vmul.f32 0.5, %v1115
          %v1117 = vsub.f32 1.5, %v1116
          %v1118 = vmul.f32 %v1113, %v1117
          %vm1119 = vweird.f32 %v885
          %vm1120 = vweird.f32 %v1113
          %vm1121 = vmor %vm1119, %vm1120
          %v1122 = vsel %vm1121, %v1113, %v1118
          %v1123 = vrsqrt.pop %v886
          %v1124 = vmul.f32 %v1123, %v886
          %v1125 = vmul.f32 %v1124, %v1123
          %v1126 = vmul.f32 0.5, %v1125
          %v1127 = vsub.f32 1.5, %v1126
          %v1128 = vmul.f32 %v1123, %v1127
          %vm1129 = vweird.f32 %v886
          %vm1130 = vweird.f32 %v1123
          %vm1131 = vmor %vm1129, %vm1130
          %v1132 = vsel %vm1131, %v1123, %v1128
          %v1133 = vrsqrt.pop %v887
          %v1134 = vmul.f32 %v1133, %v887
          %v1135 = vmul.f32 %v1134, %v1133
          %v1136 = vmul.f32 0.5, %v1135
          %v1137 = vsub.f32 1.5, %v1136
          %v1138 = vmul.f32 %v1133, %v1137
          %vm1139 = vweird.f32 %v887
          %vm1140 = vweird.f32 %v1133
          %vm1141 = vmor %vm1139, %vm1140
          %v1142 = vsel %vm1141, %v1133, %v1138
          %v1143 = vrsqrt.pop %v888
          %v1144 = vmul.f32 %v1143, %v888
          %v1145 = vmul.f32 %v1144, %v1143
          %v1146 = vmul.f32 0.5, %v1145
          %v1147 = vsub.f32 1.5, %v1146
          %v1148 = vmul.f32 %v1143, %v1147
          %vm1149 = vweird.f32 %v888
          %vm1150 = vweird.f32 %v1143
          %vm1151 = vmor %vm1149, %vm1150
          %v1152 = vsel %vm1151, %v1143, %v1148
          %v1153 = vrsqrt.pop %v889
          %v1154 = vmul.f32 %v1153, %v889
          %v1155 = vmul.f32 %v1154, %v1153
          %v1156 = vmul.f32 0.5, %v1155
          %v1157 = vsub.f32 1.5, %v1156
          %v1158 = vmul.f32 %v1153, %v1157
          %vm1159 = vweird.f32 %v889
          %vm1160 = vweird.f32 %v1153
          %vm1161 = vmor %vm1159, %vm1160
          %v1162 = vsel %vm1161, %v1153, %v1158
          %v1163 = vrsqrt.pop %v890
          %v1164 = vmul.f32 %v1163, %v890
          %v1165 = vmul.f32 %v1164, %v1163
          %v1166 = vmul.f32 0.5, %v1165
          %v1167 = vsub.f32 1.5, %v1166
          %v1168 = vmul.f32 %v1163, %v1167
          %vm1169 = vweird.f32 %v890
          %vm1170 = vweird.f32 %v1163
          %vm1171 = vmor %vm1169, %vm1170
          %v1172 = vsel %vm1171, %v1163, %v1168
          %v1173 = vrsqrt.pop %v891
          %v1174 = vmul.f32 %v1173, %v891
          %v1175 = vmul.f32 %v1174, %v1173
          %v1176 = vmul.f32 0.5, %v1175
          %v1177 = vsub.f32 1.5, %v1176
          %v1178 = vmul.f32 %v1173, %v1177
          %vm1179 = vweird.f32 %v891
          %vm1180 = vweird.f32 %v1173
          %vm1181 = vmor %vm1179, %vm1180
          %v1182 = vsel %vm1181, %v1173, %v1178
          %v1183 = vrsqrt.pop %v892
          %v1184 = vmul.f32 %v1183, %v892
          %v1185 = vmul.f32 %v1184, %v1183
          %v1186 = vmul.f32 0.5, %v1185
          %v1187 = vsub.f32 1.5, %v1186
          %v1188 = vmul.f32 %v1183, %v1187
          %vm1189 = vweird.f32 %v892
          %vm1190 = vweird.f32 %v1183
          %vm1191 = vmor %vm1189, %vm1190
          %v1192 = vsel %vm1191, %v1183, %v1188
          %v1193 = vrsqrt.pop %v893
          %v1194 = vmul.f32 %v1193, %v893
          %v1195 = vmul.f32 %v1194, %v1193
          %v1196 = vmul.f32 0.5, %v1195
          %v1197 = vsub.f32 1.5, %v1196
          %v1198 = vmul.f32 %v1193, %v1197
          %vm1199 = vweird.f32 %v893
          %vm1200 = vweird.f32 %v1193
          %vm1201 = vmor %vm1199, %vm1200
          %v1202 = vsel %vm1201, %v1193, %v1198
          %v1203 = vrsqrt.pop %v894
          %v1204 = vmul.f32 %v1203, %v894
          %v1205 = vmul.f32 %v1204, %v1203
          %v1206 = vmul.f32 0.5, %v1205
          %v1207 = vsub.f32 1.5, %v1206
          %v1208 = vmul.f32 %v1203, %v1207
          %vm1209 = vweird.f32 %v894
          %vm1210 = vweird.f32 %v1203
          %vm1211 = vmor %vm1209, %vm1210
          %v1212 = vsel %vm1211, %v1203, %v1208
          %v1213 = vrsqrt.pop %v895
          %v1214 = vmul.f32 %v1213, %v895
          %v1215 = vmul.f32 %v1214, %v1213
          %v1216 = vmul.f32 0.5, %v1215
          %v1217 = vsub.f32 1.5, %v1216
          %v1218 = vmul.f32 %v1213, %v1217
          %vm1219 = vweird.f32 %v895
          %vm1220 = vweird.f32 %v1213
          %vm1221 = vmor %vm1219, %vm1220
          %v1222 = vsel %vm1221, %v1213, %v1218
          %v1223 = vrsqrt.pop %v896
          %v1224 = vmul.f32 %v1223, %v896
          %v1225 = vmul.f32 %v1224, %v1223
          %v1226 = vmul.f32 0.5, %v1225
          %v1227 = vsub.f32 1.5, %v1226
          %v1228 = vmul.f32 %v1223, %v1227
          %vm1229 = vweird.f32 %v896
          %vm1230 = vweird.f32 %v1223
          %vm1231 = vmor %vm1229, %vm1230
          %v1232 = vsel %vm1231, %v1223, %v1228
          %v1233 = vrsqrt.pop %v897
          %v1234 = vmul.f32 %v1233, %v897
          %v1235 = vmul.f32 %v1234, %v1233
          %v1236 = vmul.f32 0.5, %v1235
          %v1237 = vsub.f32 1.5, %v1236
          %v1238 = vmul.f32 %v1233, %v1237
          %vm1239 = vweird.f32 %v897
          %vm1240 = vweird.f32 %v1233
          %vm1241 = vmor %vm1239, %vm1240
          %v1242 = vsel %vm1241, %v1233, %v1238
          %v1243 = vrsqrt.pop %v898
          %v1244 = vmul.f32 %v1243, %v898
          %v1245 = vmul.f32 %v1244, %v1243
          %v1246 = vmul.f32 0.5, %v1245
          %v1247 = vsub.f32 1.5, %v1246
          %v1248 = vmul.f32 %v1243, %v1247
          %vm1249 = vweird.f32 %v898
          %vm1250 = vweird.f32 %v1243
          %vm1251 = vmor %vm1249, %vm1250
          %v1252 = vsel %vm1251, %v1243, %v1248
          %v1253 = vrsqrt.pop %v899
          %v1254 = vmul.f32 %v1253, %v899
          %v1255 = vmul.f32 %v1254, %v1253
          %v1256 = vmul.f32 0.5, %v1255
          %v1257 = vsub.f32 1.5, %v1256
          %v1258 = vmul.f32 %v1253, %v1257
          %vm1259 = vweird.f32 %v899
          %vm1260 = vweird.f32 %v1253
          %vm1261 = vmor %vm1259, %vm1260
          %v1262 = vsel %vm1261, %v1253, %v1258
          %v1263 = vrsqrt.pop %v900
          %v1264 = vmul.f32 %v1263, %v900
          %v1265 = vmul.f32 %v1264, %v1263
          %v1266 = vmul.f32 0.5, %v1265
          %v1267 = vsub.f32 1.5, %v1266
          %v1268 = vmul.f32 %v1263, %v1267
          %vm1269 = vweird.f32 %v900
          %vm1270 = vweird.f32 %v1263
          %vm1271 = vmor %vm1269, %vm1270
          %v1272 = vsel %vm1271, %v1263, %v1268
          %v1273 = vrsqrt.pop %v901
          %v1274 = vmul.f32 %v1273, %v901
          %v1275 = vmul.f32 %v1274, %v1273
          %v1276 = vmul.f32 0.5, %v1275
          %v1277 = vsub.f32 1.5, %v1276
          %v1278 = vmul.f32 %v1273, %v1277
          %vm1279 = vweird.f32 %v901
          %vm1280 = vweird.f32 %v1273
          %vm1281 = vmor %vm1279, %vm1280
          %v1282 = vsel %vm1281, %v1273, %v1278
          %v1283 = vrsqrt.pop %v902
          %v1284 = vmul.f32 %v1283, %v902
          %v1285 = vmul.f32 %v1284, %v1283
          %v1286 = vmul.f32 0.5, %v1285
          %v1287 = vsub.f32 1.5, %v1286
          %v1288 = vmul.f32 %v1283, %v1287
          %vm1289 = vweird.f32 %v902
          %vm1290 = vweird.f32 %v1283
          %vm1291 = vmor %vm1289, %vm1290
          %v1292 = vsel %vm1291, %v1283, %v1288
          %v1293 = vrsqrt.pop %v903
          %v1294 = vmul.f32 %v1293, %v903
          %v1295 = vmul.f32 %v1294, %v1293
          %v1296 = vmul.f32 0.5, %v1295
          %v1297 = vsub.f32 1.5, %v1296
          %v1298 = vmul.f32 %v1293, %v1297
          %vm1299 = vweird.f32 %v903
          %vm1300 = vweird.f32 %v1293
          %vm1301 = vmor %vm1299, %vm1300
          %v1302 = vsel %vm1301, %v1293, %v1298
          %v1303 = vrsqrt.pop %v904
          %v1304 = vmul.f32 %v1303, %v904
          %v1305 = vmul.f32 %v1304, %v1303
          %v1306 = vmul.f32 0.5, %v1305
          %v1307 = vsub.f32 1.5, %v1306
          %v1308 = vmul.f32 %v1303, %v1307
          %vm1309 = vweird.f32 %v904
          %vm1310 = vweird.f32 %v1303
          %vm1311 = vmor %vm1309, %vm1310
          %v1312 = vsel %vm1311, %v1303, %v1308
          %v1313 = vrsqrt.pop %v905
          %v1314 = vmul.f32 %v1313, %v905
          %v1315 = vmul.f32 %v1314, %v1313
          %v1316 = vmul.f32 0.5, %v1315
          %v1317 = vsub.f32 1.5, %v1316
          %v1318 = vmul.f32 %v1313, %v1317
          %vm1319 = vweird.f32 %v905
          %vm1320 = vweird.f32 %v1313
          %vm1321 = vmor %vm1319, %vm1320
          %v1322 = vsel %vm1321, %v1313, %v1318
          %v1323 = vrsqrt.pop %v906
          %v1324 = vmul.f32 %v1323, %v906
          %v1325 = vmul.f32 %v1324, %v1323
          %v1326 = vmul.f32 0.5, %v1325
          %v1327 = vsub.f32 1.5, %v1326
          %v1328 = vmul.f32 %v1323, %v1327
          %vm1329 = vweird.f32 %v906
          %vm1330 = vweird.f32 %v1323
          %vm1331 = vmor %vm1329, %vm1330
          %v1332 = vsel %vm1331, %v1323, %v1328
          %v1333 = vrsqrt.pop %v907
          %v1334 = vmul.f32 %v1333, %v907
          %v1335 = vmul.f32 %v1334, %v1333
          %v1336 = vmul.f32 0.5, %v1335
          %v1337 = vsub.f32 1.5, %v1336
          %v1338 = vmul.f32 %v1333, %v1337
          %vm1339 = vweird.f32 %v907
          %vm1340 = vweird.f32 %v1333
          %vm1341 = vmor %vm1339, %vm1340
          %v1342 = vsel %vm1341, %v1333, %v1338
          %v1343 = vrsqrt.pop %v908
          %v1344 = vmul.f32 %v1343, %v908
          %v1345 = vmul.f32 %v1344, %v1343
          %v1346 = vmul.f32 0.5, %v1345
          %v1347 = vsub.f32 1.5, %v1346
          %v1348 = vmul.f32 %v1343, %v1347
          %vm1349 = vweird.f32 %v908
          %vm1350 = vweird.f32 %v1343
          %vm1351 = vmor %vm1349, %vm1350
          %v1352 = vsel %vm1351, %v1343, %v1348
          %v1353 = vrsqrt.pop %v909
          %v1354 = vmul.f32 %v1353, %v909
          %v1355 = vmul.f32 %v1354, %v1353
          %v1356 = vmul.f32 0.5, %v1355
          %v1357 = vsub.f32 1.5, %v1356
          %v1358 = vmul.f32 %v1353, %v1357
          %vm1359 = vweird.f32 %v909
          %vm1360 = vweird.f32 %v1353
          %vm1361 = vmor %vm1359, %vm1360
          %v1362 = vsel %vm1361, %v1353, %v1358
          %v1363 = vrsqrt.pop %v910
          %v1364 = vmul.f32 %v1363, %v910
          %v1365 = vmul.f32 %v1364, %v1363
          %v1366 = vmul.f32 0.5, %v1365
          %v1367 = vsub.f32 1.5, %v1366
          %v1368 = vmul.f32 %v1363, %v1367
          %vm1369 = vweird.f32 %v910
          %vm1370 = vweird.f32 %v1363
          %vm1371 = vmor %vm1369, %vm1370
          %v1372 = vsel %vm1371, %v1363, %v1368
          %v1373 = vrsqrt.pop %v911
          %v1374 = vmul.f32 %v1373, %v911
          %v1375 = vmul.f32 %v1374, %v1373
          %v1376 = vmul.f32 0.5, %v1375
          %v1377 = vsub.f32 1.5, %v1376
          %v1378 = vmul.f32 %v1373, %v1377
          %vm1379 = vweird.f32 %v911
          %vm1380 = vweird.f32 %v1373
          %vm1381 = vmor %vm1379, %vm1380
          %v1382 = vsel %vm1381, %v1373, %v1378
          %v1383 = vrsqrt.pop %v912
          %v1384 = vmul.f32 %v1383, %v912
          %v1385 = vmul.f32 %v1384, %v1383
          %v1386 = vmul.f32 0.5, %v1385
          %v1387 = vsub.f32 1.5, %v1386
          %v1388 = vmul.f32 %v1383, %v1387
          %vm1389 = vweird.f32 %v912
          %vm1390 = vweird.f32 %v1383
          %vm1391 = vmor %vm1389, %vm1390
          %v1392 = vsel %vm1391, %v1383, %v1388
          %v1393 = vmul.f32 %v529, %v922
          %v1394 = vmul.f32 %v532, %v932
          %v1395 = vmul.f32 %v535, %v942
          %v1396 = vmul.f32 %v538, %v952
          %v1397 = vmul.f32 %v541, %v962
          %v1398 = vmul.f32 %v544, %v972
          %v1399 = vmul.f32 %v547, %v982
          %v1400 = vmul.f32 %v550, %v992
          %v1401 = vmul.f32 %v553, %v1002
          %v1402 = vmul.f32 %v556, %v1012
          %v1403 = vmul.f32 %v559, %v1022
          %v1404 = vmul.f32 %v562, %v1032
          %v1405 = vmul.f32 %v565, %v1042
          %v1406 = vmul.f32 %v568, %v1052
          %v1407 = vmul.f32 %v571, %v1062
          %v1408 = vmul.f32 %v574, %v1072
          %v1409 = vmul.f32 %v577, %v1082
          %v1410 = vmul.f32 %v580, %v1092
          %v1411 = vmul.f32 %v583, %v1102
          %v1412 = vmul.f32 %v586, %v1112
          %v1413 = vmul.f32 %v589, %v1122
          %v1414 = vmul.f32 %v592, %v1132
          %v1415 = vmul.f32 %v595, %v1142
          %v1416 = vmul.f32 %v598, %v1152
          %v1417 = vmul.f32 %v601, %v1162
          %v1418 = vmul.f32 %v604, %v1172
          %v1419 = vmul.f32 %v607, %v1182
          %v1420 = vmul.f32 %v610, %v1192
          %v1421 = vmul.f32 %v613, %v1202
          %v1422 = vmul.f32 %v616, %v1212
          %v1423 = vmul.f32 %v619, %v1222
          %v1424 = vmul.f32 %v622, %v1232
          %v1425 = vmul.f32 %v625, %v1242
          %v1426 = vmul.f32 %v628, %v1252
          %v1427 = vmul.f32 %v631, %v1262
          %v1428 = vmul.f32 %v634, %v1272
          %v1429 = vmul.f32 %v637, %v1282
          %v1430 = vmul.f32 %v640, %v1292
          %v1431 = vmul.f32 %v643, %v1302
          %v1432 = vmul.f32 %v646, %v1312
          %v1433 = vmul.f32 %v649, %v1322
          %v1434 = vmul.f32 %v652, %v1332
          %v1435 = vmul.f32 %v655, %v1342
          %v1436 = vmul.f32 %v658, %v1352
          %v1437 = vmul.f32 %v661, %v1362
          %v1438 = vmul.f32 %v664, %v1372
          %v1439 = vmul.f32 %v667, %v1382
          %v1440 = vmul.f32 %v670, %v1392
          %1441 = vst.msk [vmem:[#allocation2] sm:$0xff] %vm720, %v1393
          %1442 = vst.msk [vmem:[#allocation2 + $0x8] sm:$0xff] %vm720, %v1394
          %1443 = vst.msk [vmem:[#allocation2 + $0x10] sm:$0xff] %vm720, %v1395
          %1444 = vst.msk [vmem:[#allocation2 + $0x18] sm:$0xff] %vm720, %v1396
          %1445 = vst.msk [vmem:[#allocation2 + $0x20] sm:$0xff] %vm720, %v1397
          %1446 = vst.msk [vmem:[#allocation2 + $0x28] sm:$0xff] %vm720, %v1398
          %1447 = vst.msk [vmem:[#allocation2 + $0x30] sm:$0xff] %vm720, %v1399
          %1448 = vst.msk [vmem:[#allocation2 + $0x38] sm:$0xff] %vm720, %v1400
          %1449 = vst.msk [vmem:[#allocation2 + $0x40] sm:$0xff] %vm720, %v1401
          %1450 = vst.msk [vmem:[#allocation2 + $0x48] sm:$0xff] %vm720, %v1402
          %1451 = vst.msk [vmem:[#allocation2 + $0x50] sm:$0xff] %vm720, %v1403
          %1452 = vst.msk [vmem:[#allocation2 + $0x58] sm:$0xff] %vm720, %v1404
          %1453 = vst.msk [vmem:[#allocation2 + $0x60] sm:$0xff] %vm720, %v1405
          %1454 = vst.msk [vmem:[#allocation2 + $0x68] sm:$0xff] %vm720, %v1406
          %1455 = vst.msk [vmem:[#allocation2 + $0x70] sm:$0xff] %vm720, %v1407
          %1456 = vst.msk [vmem:[#allocation2 + $0x78] sm:$0xff] %vm720, %v1408
          %1457 = vst.msk [vmem:[#allocation2 + $0x80] sm:$0xff] %vm720, %v1409
          %1458 = vst.msk [vmem:[#allocation2 + $0x88] sm:$0xff] %vm720, %v1410
          %1459 = vst.msk [vmem:[#allocation2 + $0x90] sm:$0xff] %vm720, %v1411
          %1460 = vst.msk [vmem:[#allocation2 + $0x98] sm:$0xff] %vm720, %v1412
          %1461 = vst.msk [vmem:[#allocation2 + $0xa0] sm:$0xff] %vm720, %v1413
          %1462 = vst.msk [vmem:[#allocation2 + $0xa8] sm:$0xff] %vm720, %v1414
          %1463 = vst.msk [vmem:[#allocation2 + $0xb0] sm:$0xff] %vm720, %v1415
          %1464 = vst.msk [vmem:[#allocation2 + $0xb8] sm:$0xff] %vm720, %v1416
          %1465 = vst.msk [vmem:[#allocation2 + $0xc0] sm:$0xff] %vm720, %v1417
          %1466 = vst.msk [vmem:[#allocation2 + $0xc8] sm:$0xff] %vm720, %v1418
          %1467 = vst.msk [vmem:[#allocation2 + $0xd0] sm:$0xff] %vm720, %v1419
          %1468 = vst.msk [vmem:[#allocation2 + $0xd8] sm:$0xff] %vm720, %v1420
          %1469 = vst.msk [vmem:[#allocation2 + $0xe0] sm:$0xff] %vm720, %v1421
          %1470 = vst.msk [vmem:[#allocation2 + $0xe8] sm:$0xff] %vm720, %v1422
          %1471 = vst.msk [vmem:[#allocation2 + $0xf0] sm:$0xff] %vm720, %v1423
          %1472 = vst.msk [vmem:[#allocation2 + $0xf8] sm:$0xff] %vm720, %v1424
          %1473 = vst.msk [vmem:[#allocation2 + $0x100] sm:$0xff] %vm720, %v1425
          %1474 = vst.msk [vmem:[#allocation2 + $0x108] sm:$0xff] %vm720, %v1426
          %1475 = vst.msk [vmem:[#allocation2 + $0x110] sm:$0xff] %vm720, %v1427
          %1476 = vst.msk [vmem:[#allocation2 + $0x118] sm:$0xff] %vm720, %v1428
          %1477 = vst.msk [vmem:[#allocation2 + $0x120] sm:$0xff] %vm720, %v1429
          %1478 = vst.msk [vmem:[#allocation2 + $0x128] sm:$0xff] %vm720, %v1430
          %1479 = vst.msk [vmem:[#allocation2 + $0x130] sm:$0xff] %vm720, %v1431
          %1480 = vst.msk [vmem:[#allocation2 + $0x138] sm:$0xff] %vm720, %v1432
          %1481 = vst.msk [vmem:[#allocation2 + $0x140] sm:$0xff] %vm720, %v1433
          %1482 = vst.msk [vmem:[#allocation2 + $0x148] sm:$0xff] %vm720, %v1434
          %1483 = vst.msk [vmem:[#allocation2 + $0x150] sm:$0xff] %vm720, %v1435
          %1484 = vst.msk [vmem:[#allocation2 + $0x158] sm:$0xff] %vm720, %v1436
          %1485 = vst.msk [vmem:[#allocation2 + $0x160] sm:$0xff] %vm720, %v1437
          %1486 = vst.msk [vmem:[#allocation2 + $0x168] sm:$0xff] %vm720, %v1438
          %1487 = vst.msk [vmem:[#allocation2 + $0x170] sm:$0xff] %vm720, %v1439
          %1488 = vst.msk [vmem:[#allocation2 + $0x178] sm:$0xff] %vm720, %v1440
          %v1489 = vlaneseq
          %vm1490 = vcmp.ge.s32.totalorder %v1489, 0
          %vm1491 = vcmp.lt.s32.totalorder %v1489, 384
          %vm1492 = vmand %vm1490, %vm1491
          %1493 = vst.msk [vmem:[#allocation3] sm:$0x7] %vm1492, -1e+30
          %1494 = vst.msk [vmem:[#allocation4] sm:$0x7] %vm1492, 0.0
        $region52: #{tpu_custom_call.1} parent=47 // pred_fallthru
          _
        %v1495 = vld [vmem:[%s303] sm:$0xff]
        %v1496 = vld [vmem:[%s303 + $0x8] sm:$0xff]
        %v1497 = vld [vmem:[%s303 + $0x10] sm:$0xff]
        %v1498 = vld [vmem:[%s303 + $0x18] sm:$0xff]
        %v1499 = vld [vmem:[%s303 + $0x20] sm:$0xff]
        %v1500 = vld [vmem:[%s303 + $0x28] sm:$0xff]
        %v1501 = vld [vmem:[%s303 + $0x30] sm:$0xff]
        %v1502 = vld [vmem:[%s303 + $0x38] sm:$0xff]
        %v1503 = vld [vmem:[%s303 + $0x40] sm:$0xff]
        %v1504 = vld [vmem:[%s303 + $0x48] sm:$0xff]
        %v1505 = vld [vmem:[%s303 + $0x50] sm:$0xff]
        %v1506 = vld [vmem:[%s303 + $0x58] sm:$0xff]
        %v1507 = vld [vmem:[%s303 + $0x60] sm:$0xff]
        %v1508 = vld [vmem:[%s303 + $0x68] sm:$0xff]
        %v1509 = vld [vmem:[%s303 + $0x70] sm:$0xff]
        %v1510 = vld [vmem:[%s303 + $0x78] sm:$0xff]
        %v1511 = vld [vmem:[%s3] sm:$0xff]
        %v1512 = vld [vmem:[%s3 + $0x8] sm:$0xff]
        %v1513 = vld [vmem:[%s3 + $0x10] sm:$0xff]
        %v1514 = vld [vmem:[%s3 + $0x18] sm:$0xff]
        %v1515 = vld [vmem:[%s3 + $0x20] sm:$0xff]
        %v1516 = vld [vmem:[%s3 + $0x28] sm:$0xff]
        %v1517 = vld [vmem:[%s4] sm:$0x1]
        %v1519 = vperm.slane %v1517, 0
        %vm1521 = vcmask 392192
        %v1523 = vsel %vm1521, %v1495, 0
        %v1526 = vsel %vm1521, %v1496, 0
        %v1529 = vsel %vm1521, %v1497, 0
        %v1532 = vsel %vm1521, %v1498, 0
        %v1535 = vsel %vm1521, %v1499, 0
        %v1538 = vsel %vm1521, %v1500, 0
        %v1541 = vsel %vm1521, %v1501, 0
        %v1544 = vsel %vm1521, %v1502, 0
        %v1547 = vsel %vm1521, %v1503, 0
        %v1550 = vsel %vm1521, %v1504, 0
        %v1553 = vsel %vm1521, %v1505, 0
        %v1556 = vsel %vm1521, %v1506, 0
        %v1559 = vsel %vm1521, %v1507, 0
        %v1562 = vsel %vm1521, %v1508, 0
        %v1565 = vsel %vm1521, %v1509, 0
        %v1568 = vsel %vm1521, %v1510, 0
        %1570 = vmatpush.msra.mxu0 0.0
        %1571 = vmatpush.msra.mxu0 0.0
        %1572 = vmatpush.msra.mxu0 0.0
        %1573 = vmatpush.msra.mxu0 0.0
        %1574 = vmatpush.msra.mxu0 0.0
        %1575 = vmatpush.msra.mxu0 0.0
        %1576 = vmatpush.msra.mxu0 0.0
        %1577 = vmatpush.msra.mxu0 0.0
        %1578 = vmatpush.msra.mxu0 0.0
        %1579 = vmatpush.msra.mxu0 0.0
        %1580 = vmatpush.msra.mxu0 %v1516
        %1581 = vmatpush.msra.mxu0 %v1515
        %1582 = vmatpush.msra.mxu0 %v1514
        %1583 = vmatpush.msra.mxu0 %v1513
        %1584 = vmatpush.msra.mxu0 %v1512
        %1585 = vmatpush.msra.mxu0 %v1511
        %1586 = vmatmul.f32.gmra.mxu0 %v1523
        %v1587 = vpop.f32.mrf.mxu0
        %v1588 = vadd.f32 %v1519, %v1587
        %1589 = vmatmul.f32.gmra.mxu0 %v1526
        %v1590 = vpop.f32.mrf.mxu0
        %v1591 = vadd.f32 %v1519, %v1590
        %1592 = vmatmul.f32.gmra.mxu0 %v1529
        %v1593 = vpop.f32.mrf.mxu0
        %v1594 = vadd.f32 %v1519, %v1593
        %1595 = vmatmul.f32.gmra.mxu0 %v1532
        %v1596 = vpop.f32.mrf.mxu0
        %v1597 = vadd.f32 %v1519, %v1596
        %1598 = vmatmul.f32.gmra.mxu0 %v1535
        %v1599 = vpop.f32.mrf.mxu0
        %v1600 = vadd.f32 %v1519, %v1599
        %1601 = vmatmul.f32.gmra.mxu0 %v1538
        %v1602 = vpop.f32.mrf.mxu0
        %v1603 = vadd.f32 %v1519, %v1602
        %1604 = vmatmul.f32.gmra.mxu0 %v1541
        %v1605 = vpop.f32.mrf.mxu0
        %v1606 = vadd.f32 %v1519, %v1605
        %1607 = vmatmul.f32.gmra.mxu0 %v1544
        %v1608 = vpop.f32.mrf.mxu0
        %v1609 = vadd.f32 %v1519, %v1608
        %1610 = vmatmul.f32.gmra.mxu0 %v1547
        %v1611 = vpop.f32.mrf.mxu0
        %v1612 = vadd.f32 %v1519, %v1611
        %1613 = vmatmul.f32.gmra.mxu0 %v1550
        %v1614 = vpop.f32.mrf.mxu0
        %v1615 = vadd.f32 %v1519, %v1614
        %1616 = vmatmul.f32.gmra.mxu0 %v1553
        %v1617 = vpop.f32.mrf.mxu0
        %v1618 = vadd.f32 %v1519, %v1617
        %1619 = vmatmul.f32.gmra.mxu0 %v1556
        %v1620 = vpop.f32.mrf.mxu0
        %v1621 = vadd.f32 %v1519, %v1620
        %1622 = vmatmul.f32.gmra.mxu0 %v1559
        %v1623 = vpop.f32.mrf.mxu0
        %v1624 = vadd.f32 %v1519, %v1623
        %1625 = vmatmul.f32.gmra.mxu0 %v1562
        %v1626 = vpop.f32.mrf.mxu0
        %v1627 = vadd.f32 %v1519, %v1626
        %1628 = vmatmul.f32.gmra.mxu0 %v1565
        %v1629 = vpop.f32.mrf.mxu0
        %v1630 = vadd.f32 %v1519, %v1629
        %1631 = vmatmul.f32.gmra.mxu0 %v1568
        %v1632 = vpop.f32.mrf.mxu0
        %v1633 = vadd.f32 %v1519, %v1632
        %1634 = vdwg.mxu0
        %v1635 = vmul.f32 %v1588, %v1588
        %v1636 = vmul.f32 %v1591, %v1591
        %v1637 = vmul.f32 %v1594, %v1594
        %v1638 = vmul.f32 %v1597, %v1597
        %v1639 = vmul.f32 %v1600, %v1600
        %v1640 = vmul.f32 %v1603, %v1603
        %v1641 = vmul.f32 %v1606, %v1606
        %v1642 = vmul.f32 %v1609, %v1609
        %v1643 = vmul.f32 %v1612, %v1612
        %v1644 = vmul.f32 %v1615, %v1615
        %v1645 = vmul.f32 %v1618, %v1618
        %v1646 = vmul.f32 %v1621, %v1621
        %v1647 = vmul.f32 %v1624, %v1624
        %v1648 = vmul.f32 %v1627, %v1627
        %v1649 = vmul.f32 %v1630, %v1630
        %v1650 = vmul.f32 %v1633, %v1633
        %vm1651 = vcmask 261120
        %v1652 = vsel %vm1651, %v1635, 0.0
        %1653 = vadd.xlane.f32.xlu0 %v1652
        %v1654 = vpop.xlane.xlu0 %1653
        %v1655 = vsel %vm1651, %v1636, 0.0
        %1656 = vadd.xlane.f32.xlu0 %v1655
        %v1657 = vpop.xlane.xlu0 %1656
        %v1658 = vsel %vm1651, %v1637, 0.0
        %1659 = vadd.xlane.f32.xlu0 %v1658
        %v1660 = vpop.xlane.xlu0 %1659
        %v1661 = vsel %vm1651, %v1638, 0.0
        %1662 = vadd.xlane.f32.xlu0 %v1661
        %v1663 = vpop.xlane.xlu0 %1662
        %v1664 = vsel %vm1651, %v1639, 0.0
        %1665 = vadd.xlane.f32.xlu0 %v1664
        %v1666 = vpop.xlane.xlu0 %1665
        %v1667 = vsel %vm1651, %v1640, 0.0
        %1668 = vadd.xlane.f32.xlu0 %v1667
        %v1669 = vpop.xlane.xlu0 %1668
        %v1670 = vsel %vm1651, %v1641, 0.0
        %1671 = vadd.xlane.f32.xlu0 %v1670
        %v1672 = vpop.xlane.xlu0 %1671
        %v1673 = vsel %vm1651, %v1642, 0.0
        %1674 = vadd.xlane.f32.xlu0 %v1673
        %v1675 = vpop.xlane.xlu0 %1674
        %v1676 = vsel %vm1651, %v1643, 0.0
        %1677 = vadd.xlane.f32.xlu0 %v1676
        %v1678 = vpop.xlane.xlu0 %1677
        %v1679 = vsel %vm1651, %v1644, 0.0
        %1680 = vadd.xlane.f32.xlu0 %v1679
        %v1681 = vpop.xlane.xlu0 %1680
        %v1682 = vsel %vm1651, %v1645, 0.0
        %1683 = vadd.xlane.f32.xlu0 %v1682
        %v1684 = vpop.xlane.xlu0 %1683
        %v1685 = vsel %vm1651, %v1646, 0.0
        %1686 = vadd.xlane.f32.xlu0 %v1685
        %v1687 = vpop.xlane.xlu0 %1686
        %v1688 = vsel %vm1651, %v1647, 0.0
        %1689 = vadd.xlane.f32.xlu0 %v1688
        %v1690 = vpop.xlane.xlu0 %1689
        %v1691 = vsel %vm1651, %v1648, 0.0
        %1692 = vadd.xlane.f32.xlu0 %v1691
        %v1693 = vpop.xlane.xlu0 %1692
        %v1694 = vsel %vm1651, %v1649, 0.0
        %1695 = vadd.xlane.f32.xlu0 %v1694
        %v1696 = vpop.xlane.xlu0 %1695
        %v1697 = vsel %vm1651, %v1650, 0.0
        %1698 = vadd.xlane.f32.xlu0 %v1697
        %v1699 = vpop.xlane.xlu0 %1698
        %v1700 = vmax.f32 %v1654, 1e-24
        %v1701 = vmax.f32 %v1657, 1e-24
        %v1702 = vmax.f32 %v1660, 1e-24
        %v1703 = vmax.f32 %v1663, 1e-24
        %v1704 = vmax.f32 %v1666, 1e-24
        %v1705 = vmax.f32 %v1669, 1e-24
        %v1706 = vmax.f32 %v1672, 1e-24
        %v1707 = vmax.f32 %v1675, 1e-24
        %v1708 = vmax.f32 %v1678, 1e-24
        %v1709 = vmax.f32 %v1681, 1e-24
        %v1710 = vmax.f32 %v1684, 1e-24
        %v1711 = vmax.f32 %v1687, 1e-24
        %v1712 = vmax.f32 %v1690, 1e-24
        %v1713 = vmax.f32 %v1693, 1e-24
        %v1714 = vmax.f32 %v1696, 1e-24
        %v1715 = vmax.f32 %v1699, 1e-24
        %v1716 = vrsqrt.pop %v1700
        %v1717 = vmul.f32 %v1716, %v1700
        %v1718 = vmul.f32 %v1717, %v1716
        %v1719 = vmul.f32 0.5, %v1718
        %v1720 = vsub.f32 1.5, %v1719
        %v1721 = vmul.f32 %v1716, %v1720
        %vm1722 = vweird.f32 %v1700
        %vm1723 = vweird.f32 %v1716
        %vm1724 = vmor %vm1722, %vm1723
        %v1725 = vsel %vm1724, %v1716, %v1721
        %v1726 = vrsqrt.pop %v1701
        %v1727 = vmul.f32 %v1726, %v1701
        %v1728 = vmul.f32 %v1727, %v1726
        %v1729 = vmul.f32 0.5, %v1728
        %v1730 = vsub.f32 1.5, %v1729
        %v1731 = vmul.f32 %v1726, %v1730
        %vm1732 = vweird.f32 %v1701
        %vm1733 = vweird.f32 %v1726
        %vm1734 = vmor %vm1732, %vm1733
        %v1735 = vsel %vm1734, %v1726, %v1731
        %v1736 = vrsqrt.pop %v1702
        %v1737 = vmul.f32 %v1736, %v1702
        %v1738 = vmul.f32 %v1737, %v1736
        %v1739 = vmul.f32 0.5, %v1738
        %v1740 = vsub.f32 1.5, %v1739
        %v1741 = vmul.f32 %v1736, %v1740
        %vm1742 = vweird.f32 %v1702
        %vm1743 = vweird.f32 %v1736
        %vm1744 = vmor %vm1742, %vm1743
        %v1745 = vsel %vm1744, %v1736, %v1741
        %v1746 = vrsqrt.pop %v1703
        %v1747 = vmul.f32 %v1746, %v1703
        %v1748 = vmul.f32 %v1747, %v1746
        %v1749 = vmul.f32 0.5, %v1748
        %v1750 = vsub.f32 1.5, %v1749
        %v1751 = vmul.f32 %v1746, %v1750
        %vm1752 = vweird.f32 %v1703
        %vm1753 = vweird.f32 %v1746
        %vm1754 = vmor %vm1752, %vm1753
        %v1755 = vsel %vm1754, %v1746, %v1751
        %v1756 = vrsqrt.pop %v1704
        %v1757 = vmul.f32 %v1756, %v1704
        %v1758 = vmul.f32 %v1757, %v1756
        %v1759 = vmul.f32 0.5, %v1758
        %v1760 = vsub.f32 1.5, %v1759
        %v1761 = vmul.f32 %v1756, %v1760
        %vm1762 = vweird.f32 %v1704
        %vm1763 = vweird.f32 %v1756
        %vm1764 = vmor %vm1762, %vm1763
        %v1765 = vsel %vm1764, %v1756, %v1761
        %v1766 = vrsqrt.pop %v1705
        %v1767 = vmul.f32 %v1766, %v1705
        %v1768 = vmul.f32 %v1767, %v1766
        %v1769 = vmul.f32 0.5, %v1768
        %v1770 = vsub.f32 1.5, %v1769
        %v1771 = vmul.f32 %v1766, %v1770
        %vm1772 = vweird.f32 %v1705
        %vm1773 = vweird.f32 %v1766
        %vm1774 = vmor %vm1772, %vm1773
        %v1775 = vsel %vm1774, %v1766, %v1771
        %v1776 = vrsqrt.pop %v1706
        %v1777 = vmul.f32 %v1776, %v1706
        %v1778 = vmul.f32 %v1777, %v1776
        %v1779 = vmul.f32 0.5, %v1778
        %v1780 = vsub.f32 1.5, %v1779
        %v1781 = vmul.f32 %v1776, %v1780
        %vm1782 = vweird.f32 %v1706
        %vm1783 = vweird.f32 %v1776
        %vm1784 = vmor %vm1782, %vm1783
        %v1785 = vsel %vm1784, %v1776, %v1781
        %v1786 = vrsqrt.pop %v1707
        %v1787 = vmul.f32 %v1786, %v1707
        %v1788 = vmul.f32 %v1787, %v1786
        %v1789 = vmul.f32 0.5, %v1788
        %v1790 = vsub.f32 1.5, %v1789
        %v1791 = vmul.f32 %v1786, %v1790
        %vm1792 = vweird.f32 %v1707
        %vm1793 = vweird.f32 %v1786
        %vm1794 = vmor %vm1792, %vm1793
        %v1795 = vsel %vm1794, %v1786, %v1791
        %v1796 = vrsqrt.pop %v1708
        %v1797 = vmul.f32 %v1796, %v1708
        %v1798 = vmul.f32 %v1797, %v1796
        %v1799 = vmul.f32 0.5, %v1798
        %v1800 = vsub.f32 1.5, %v1799
        %v1801 = vmul.f32 %v1796, %v1800
        %vm1802 = vweird.f32 %v1708
        %vm1803 = vweird.f32 %v1796
        %vm1804 = vmor %vm1802, %vm1803
        %v1805 = vsel %vm1804, %v1796, %v1801
        %v1806 = vrsqrt.pop %v1709
        %v1807 = vmul.f32 %v1806, %v1709
        %v1808 = vmul.f32 %v1807, %v1806
        %v1809 = vmul.f32 0.5, %v1808
        %v1810 = vsub.f32 1.5, %v1809
        %v1811 = vmul.f32 %v1806, %v1810
        %vm1812 = vweird.f32 %v1709
        %vm1813 = vweird.f32 %v1806
        %vm1814 = vmor %vm1812, %vm1813
        %v1815 = vsel %vm1814, %v1806, %v1811
        %v1816 = vrsqrt.pop %v1710
        %v1817 = vmul.f32 %v1816, %v1710
        %v1818 = vmul.f32 %v1817, %v1816
        %v1819 = vmul.f32 0.5, %v1818
        %v1820 = vsub.f32 1.5, %v1819
        %v1821 = vmul.f32 %v1816, %v1820
        %vm1822 = vweird.f32 %v1710
        %vm1823 = vweird.f32 %v1816
        %vm1824 = vmor %vm1822, %vm1823
        %v1825 = vsel %vm1824, %v1816, %v1821
        %v1826 = vrsqrt.pop %v1711
        %v1827 = vmul.f32 %v1826, %v1711
        %v1828 = vmul.f32 %v1827, %v1826
        %v1829 = vmul.f32 0.5, %v1828
        %v1830 = vsub.f32 1.5, %v1829
        %v1831 = vmul.f32 %v1826, %v1830
        %vm1832 = vweird.f32 %v1711
        %vm1833 = vweird.f32 %v1826
        %vm1834 = vmor %vm1832, %vm1833
        %v1835 = vsel %vm1834, %v1826, %v1831
        %v1836 = vrsqrt.pop %v1712
        %v1837 = vmul.f32 %v1836, %v1712
        %v1838 = vmul.f32 %v1837, %v1836
        %v1839 = vmul.f32 0.5, %v1838
        %v1840 = vsub.f32 1.5, %v1839
        %v1841 = vmul.f32 %v1836, %v1840
        %vm1842 = vweird.f32 %v1712
        %vm1843 = vweird.f32 %v1836
        %vm1844 = vmor %vm1842, %vm1843
        %v1845 = vsel %vm1844, %v1836, %v1841
        %v1846 = vrsqrt.pop %v1713
        %v1847 = vmul.f32 %v1846, %v1713
        %v1848 = vmul.f32 %v1847, %v1846
        %v1849 = vmul.f32 0.5, %v1848
        %v1850 = vsub.f32 1.5, %v1849
        %v1851 = vmul.f32 %v1846, %v1850
        %vm1852 = vweird.f32 %v1713
        %vm1853 = vweird.f32 %v1846
        %vm1854 = vmor %vm1852, %vm1853
        %v1855 = vsel %vm1854, %v1846, %v1851
        %v1856 = vrsqrt.pop %v1714
        %v1857 = vmul.f32 %v1856, %v1714
        %v1858 = vmul.f32 %v1857, %v1856
        %v1859 = vmul.f32 0.5, %v1858
        %v1860 = vsub.f32 1.5, %v1859
        %v1861 = vmul.f32 %v1856, %v1860
        %vm1862 = vweird.f32 %v1714
        %vm1863 = vweird.f32 %v1856
        %vm1864 = vmor %vm1862, %vm1863
        %v1865 = vsel %vm1864, %v1856, %v1861
        %v1866 = vrsqrt.pop %v1715
        %v1867 = vmul.f32 %v1866, %v1715
        %v1868 = vmul.f32 %v1867, %v1866
        %v1869 = vmul.f32 0.5, %v1868
        %v1870 = vsub.f32 1.5, %v1869
        %v1871 = vmul.f32 %v1866, %v1870
        %vm1872 = vweird.f32 %v1715
        %vm1873 = vweird.f32 %v1866
        %vm1874 = vmor %vm1872, %vm1873
        %v1875 = vsel %vm1874, %v1866, %v1871
        %v1876 = vmul.f32 %v1588, %v1725
        %v1877 = vmul.f32 %v1591, %v1735
        %v1878 = vmul.f32 %v1594, %v1745
        %v1879 = vmul.f32 %v1597, %v1755
        %v1880 = vmul.f32 %v1600, %v1765
        %v1881 = vmul.f32 %v1603, %v1775
        %v1882 = vmul.f32 %v1606, %v1785
        %v1883 = vmul.f32 %v1609, %v1795
        %v1884 = vmul.f32 %v1612, %v1805
        %v1885 = vmul.f32 %v1615, %v1815
        %v1886 = vmul.f32 %v1618, %v1825
        %v1887 = vmul.f32 %v1621, %v1835
        %v1888 = vmul.f32 %v1624, %v1845
        %v1889 = vmul.f32 %v1627, %v1855
        %v1890 = vmul.f32 %v1630, %v1865
        %v1891 = vmul.f32 %v1633, %v1875
        %s1892 = sld [smem:[#allocation6]]
        %v1893 = vstv %s1892
        %v1894 = vmul.f32 %v1893, 1.442695
        %v1895 = vpow.pop %v1894
        %s1896 = vtos %v1895
        %s1897 = smax.f32 %s1896, 0.01
        %s1898 = smul.u32 %s25, 128
        %s1899 = scalar_lea.vmem [#allocation2], %s1898
        %v1900 = vld [vmem:[%s1899] sm:$0xff]
        %v1901 = vld [vmem:[%s1899 + $0x8] sm:$0xff]
        %v1902 = vld [vmem:[%s1899 + $0x10] sm:$0xff]
        %v1903 = vld [vmem:[%s1899 + $0x18] sm:$0xff]
        %v1904 = vld [vmem:[%s1899 + $0x20] sm:$0xff]
        %v1905 = vld [vmem:[%s1899 + $0x28] sm:$0xff]
        %v1906 = vld [vmem:[%s1899 + $0x30] sm:$0xff]
        %v1907 = vld [vmem:[%s1899 + $0x38] sm:$0xff]
        %v1908 = vld [vmem:[%s1899 + $0x40] sm:$0xff]
        %v1909 = vld [vmem:[%s1899 + $0x48] sm:$0xff]
        %v1910 = vld [vmem:[%s1899 + $0x50] sm:$0xff]
        %v1911 = vld [vmem:[%s1899 + $0x58] sm:$0xff]
        %v1912 = vld [vmem:[%s1899 + $0x60] sm:$0xff]
        %v1913 = vld [vmem:[%s1899 + $0x68] sm:$0xff]
        %v1914 = vld [vmem:[%s1899 + $0x70] sm:$0xff]
        %v1915 = vld [vmem:[%s1899 + $0x78] sm:$0xff]
        %v1916 = vld [vmem:[#allocation2] sm:$0xff]
        %v1917 = vld [vmem:[#allocation2 + $0x8] sm:$0xff]
        %v1918 = vld [vmem:[#allocation2 + $0x10] sm:$0xff]
        %v1919 = vld [vmem:[#allocation2 + $0x18] sm:$0xff]
        %v1920 = vld [vmem:[#allocation2 + $0x20] sm:$0xff]
        %v1921 = vld [vmem:[#allocation2 + $0x28] sm:$0xff]
        %v1922 = vld [vmem:[#allocation2 + $0x30] sm:$0xff]
        %v1923 = vld [vmem:[#allocation2 + $0x38] sm:$0xff]
        %v1924 = vld [vmem:[#allocation2 + $0x40] sm:$0xff]
        %v1925 = vld [vmem:[#allocation2 + $0x48] sm:$0xff]
        %v1926 = vld [vmem:[#allocation2 + $0x50] sm:$0xff]
        %v1927 = vld [vmem:[#allocation2 + $0x58] sm:$0xff]
        %v1928 = vld [vmem:[#allocation2 + $0x60] sm:$0xff]
        %v1929 = vld [vmem:[#allocation2 + $0x68] sm:$0xff]
        %v1930 = vld [vmem:[#allocation2 + $0x70] sm:$0xff]
        %v1931 = vld [vmem:[#allocation2 + $0x78] sm:$0xff]
        %v1932 = vld [vmem:[#allocation2 + $0x80] sm:$0xff]
        %v1933 = vld [vmem:[#allocation2 + $0x88] sm:$0xff]
        %v1934 = vld [vmem:[#allocation2 + $0x90] sm:$0xff]
        %v1935 = vld [vmem:[#allocation2 + $0x98] sm:$0xff]
        %v1936 = vld [vmem:[#allocation2 + $0xa0] sm:$0xff]
        %v1937 = vld [vmem:[#allocation2 + $0xa8] sm:$0xff]
        %v1938 = vld [vmem:[#allocation2 + $0xb0] sm:$0xff]
        %v1939 = vld [vmem:[#allocation2 + $0xb8] sm:$0xff]
        %v1940 = vld [vmem:[#allocation2 + $0xc0] sm:$0xff]
        %v1941 = vld [vmem:[#allocation2 + $0xc8] sm:$0xff]
        %v1942 = vld [vmem:[#allocation2 + $0xd0] sm:$0xff]
        %v1943 = vld [vmem:[#allocation2 + $0xd8] sm:$0xff]
        %v1944 = vld [vmem:[#allocation2 + $0xe0] sm:$0xff]
        %v1945 = vld [vmem:[#allocation2 + $0xe8] sm:$0xff]
        %v1946 = vld [vmem:[#allocation2 + $0xf0] sm:$0xff]
        %v1947 = vld [vmem:[#allocation2 + $0xf8] sm:$0xff]
        %v1948 = vld [vmem:[#allocation2 + $0x100] sm:$0xff]
        %v1949 = vld [vmem:[#allocation2 + $0x108] sm:$0xff]
        %v1950 = vld [vmem:[#allocation2 + $0x110] sm:$0xff]
        %v1951 = vld [vmem:[#allocation2 + $0x118] sm:$0xff]
        %v1952 = vld [vmem:[#allocation2 + $0x120] sm:$0xff]
        %v1953 = vld [vmem:[#allocation2 + $0x128] sm:$0xff]
        %v1954 = vld [vmem:[#allocation2 + $0x130] sm:$0xff]
        %v1955 = vld [vmem:[#allocation2 + $0x138] sm:$0xff]
        %v1956 = vld [vmem:[#allocation2 + $0x140] sm:$0xff]
        %v1957 = vld [vmem:[#allocation2 + $0x148] sm:$0xff]
        %v1958 = vld [vmem:[#allocation2 + $0x150] sm:$0xff]
        %v1959 = vld [vmem:[#allocation2 + $0x158] sm:$0xff]
        %v1960 = vld [vmem:[#allocation2 + $0x160] sm:$0xff]
        %v1961 = vld [vmem:[#allocation2 + $0x168] sm:$0xff]
        %v1962 = vld [vmem:[#allocation2 + $0x170] sm:$0xff]
        %v1963 = vld [vmem:[#allocation2 + $0x178] sm:$0xff]
        %v1965 = vsel %vm1651, %v1876, 0
        %v1968 = vsel %vm1651, %v1877, 0
        %v1971 = vsel %vm1651, %v1878, 0
        %v1974 = vsel %vm1651, %v1879, 0
        %v1977 = vsel %vm1651, %v1880, 0
        %v1980 = vsel %vm1651, %v1881, 0
        %v1983 = vsel %vm1651, %v1882, 0
        %v1986 = vsel %vm1651, %v1883, 0
        %v1989 = vsel %vm1651, %v1884, 0
        %v1992 = vsel %vm1651, %v1885, 0
        %v1995 = vsel %vm1651, %v1886, 0
        %v1998 = vsel %vm1651, %v1887, 0
        %v2001 = vsel %vm1651, %v1888, 0
        %v2004 = vsel %vm1651, %v1889, 0
        %v2007 = vsel %vm1651, %v1890, 0
        %v2010 = vsel %vm1651, %v1891, 0
        %v2013 = vsel %vm1651, %v1916, 0
        %v2016 = vsel %vm1651, %v1917, 0
        %v2019 = vsel %vm1651, %v1918, 0
        %v2022 = vsel %vm1651, %v1919, 0
        %v2025 = vsel %vm1651, %v1920, 0
        %v2028 = vsel %vm1651, %v1921, 0
        %v2031 = vsel %vm1651, %v1922, 0
        %v2034 = vsel %vm1651, %v1923, 0
        %v2037 = vsel %vm1651, %v1924, 0
        %v2040 = vsel %vm1651, %v1925, 0
        %v2043 = vsel %vm1651, %v1926, 0
        %v2046 = vsel %vm1651, %v1927, 0
        %v2049 = vsel %vm1651, %v1928, 0
        %v2052 = vsel %vm1651, %v1929, 0
        %v2055 = vsel %vm1651, %v1930, 0
        %v2058 = vsel %vm1651, %v1931, 0
        %v2061 = vsel %vm1651, %v1932, 0
        %v2064 = vsel %vm1651, %v1933, 0
        %v2067 = vsel %vm1651, %v1934, 0
        %v2070 = vsel %vm1651, %v1935, 0
        %v2073 = vsel %vm1651, %v1936, 0
        %v2076 = vsel %vm1651, %v1937, 0
        %v2079 = vsel %vm1651, %v1938, 0
        %v2082 = vsel %vm1651, %v1939, 0
        %v2085 = vsel %vm1651, %v1940, 0
        %v2088 = vsel %vm1651, %v1941, 0
        %v2091 = vsel %vm1651, %v1942, 0
        %v2094 = vsel %vm1651, %v1943, 0
        %v2097 = vsel %vm1651, %v1944, 0
        %v2100 = vsel %vm1651, %v1945, 0
        %v2103 = vsel %vm1651, %v1946, 0
        %v2106 = vsel %vm1651, %v1947, 0
        %v2109 = vsel %vm1651, %v1948, 0
        %v2112 = vsel %vm1651, %v1949, 0
        %v2115 = vsel %vm1651, %v1950, 0
        %v2118 = vsel %vm1651, %v1951, 0
        %v2121 = vsel %vm1651, %v1952, 0
        %v2124 = vsel %vm1651, %v1953, 0
        %v2127 = vsel %vm1651, %v1954, 0
        %v2130 = vsel %vm1651, %v1955, 0
        %v2133 = vsel %vm1651, %v1956, 0
        %v2136 = vsel %vm1651, %v1957, 0
        %v2139 = vsel %vm1651, %v1958, 0
        %v2142 = vsel %vm1651, %v1959, 0
        %v2145 = vsel %vm1651, %v1960, 0
        %v2148 = vsel %vm1651, %v1961, 0
        %v2151 = vsel %vm1651, %v1962, 0
        %v2154 = vsel %vm1651, %v1963, 0
        %2156 = vmatpush.xpose.msra.mxu0 %v2058
        %2157 = vmatpush.xpose.msra.mxu0 %v2055
        %2158 = vmatpush.xpose.msra.mxu0 %v2052
        %2159 = vmatpush.xpose.msra.mxu0 %v2049
        %2160 = vmatpush.xpose.msra.mxu0 %v2046
        %2161 = vmatpush.xpose.msra.mxu0 %v2043
        %2162 = vmatpush.xpose.msra.mxu0 %v2040
        %2163 = vmatpush.xpose.msra.mxu0 %v2037
        %2164 = vmatpush.xpose.msra.mxu0 %v2034
        %2165 = vmatpush.xpose.msra.mxu0 %v2031
        %2166 = vmatpush.xpose.msra.mxu0 %v2028
        %2167 = vmatpush.xpose.msra.mxu0 %v2025
        %2168 = vmatpush.xpose.msra.mxu0 %v2022
        %2169 = vmatpush.xpose.msra.mxu0 %v2019
        %2170 = vmatpush.xpose.msra.mxu0 %v2016
        %2171 = vmatpush.xpose.msra.mxu0 %v2013
        %2172 = vmatmul.f32.gmra.mxu0 %v1965
        %v2173 = vpop.f32.mrf.mxu0
        %v2174 = vadd.f32 0.0, %v2173
        %2175 = vmatmul.f32.gmra.mxu0 %v1968
        %v2176 = vpop.f32.mrf.mxu0
        %v2177 = vadd.f32 0.0, %v2176
        %2178 = vmatmul.f32.gmra.mxu0 %v1971
        %v2179 = vpop.f32.mrf.mxu0
        %v2180 = vadd.f32 0.0, %v2179
        %2181 = vmatmul.f32.gmra.mxu0 %v1974
        %v2182 = vpop.f32.mrf.mxu0
        %v2183 = vadd.f32 0.0, %v2182
        %2184 = vmatmul.f32.gmra.mxu0 %v1977
        %v2185 = vpop.f32.mrf.mxu0
        %v2186 = vadd.f32 0.0, %v2185
        %2187 = vmatmul.f32.gmra.mxu0 %v1980
        %v2188 = vpop.f32.mrf.mxu0
        %v2189 = vadd.f32 0.0, %v2188
        %2190 = vmatmul.f32.gmra.mxu0 %v1983
        %v2191 = vpop.f32.mrf.mxu0
        %v2192 = vadd.f32 0.0, %v2191
        %2193 = vmatmul.f32.gmra.mxu0 %v1986
        %v2194 = vpop.f32.mrf.mxu0
        %v2195 = vadd.f32 0.0, %v2194
        %2196 = vmatmul.f32.gmra.mxu0 %v1989
        %v2197 = vpop.f32.mrf.mxu0
        %v2198 = vadd.f32 0.0, %v2197
        %2199 = vmatmul.f32.gmra.mxu0 %v1992
        %v2200 = vpop.f32.mrf.mxu0
        %v2201 = vadd.f32 0.0, %v2200
        %2202 = vmatmul.f32.gmra.mxu0 %v1995
        %v2203 = vpop.f32.mrf.mxu0
        %v2204 = vadd.f32 0.0, %v2203
        %2205 = vmatmul.f32.gmra.mxu0 %v1998
        %v2206 = vpop.f32.mrf.mxu0
        %v2207 = vadd.f32 0.0, %v2206
        %2208 = vmatmul.f32.gmra.mxu0 %v2001
        %v2209 = vpop.f32.mrf.mxu0
        %v2210 = vadd.f32 0.0, %v2209
        %2211 = vmatmul.f32.gmra.mxu0 %v2004
        %v2212 = vpop.f32.mrf.mxu0
        %v2213 = vadd.f32 0.0, %v2212
        %2214 = vmatmul.f32.gmra.mxu0 %v2007
        %v2215 = vpop.f32.mrf.mxu0
        %v2216 = vadd.f32 0.0, %v2215
        %2217 = vmatmul.f32.gmra.mxu0 %v2010
        %v2218 = vpop.f32.mrf.mxu0
        %v2219 = vadd.f32 0.0, %v2218
        %2220 = vdwg.mxu0
        %2221 = vmatpush.xpose.msra.mxu0 %v2106
        %2222 = vmatpush.xpose.msra.mxu0 %v2103
        %2223 = vmatpush.xpose.msra.mxu0 %v2100
        %2224 = vmatpush.xpose.msra.mxu0 %v2097
        %2225 = vmatpush.xpose.msra.mxu0 %v2094
        %2226 = vmatpush.xpose.msra.mxu0 %v2091
        %2227 = vmatpush.xpose.msra.mxu0 %v2088
        %2228 = vmatpush.xpose.msra.mxu0 %v2085
        %2229 = vmatpush.xpose.msra.mxu0 %v2082
        %2230 = vmatpush.xpose.msra.mxu0 %v2079
        %2231 = vmatpush.xpose.msra.mxu0 %v2076
        %2232 = vmatpush.xpose.msra.mxu0 %v2073
        %2233 = vmatpush.xpose.msra.mxu0 %v2070
        %2234 = vmatpush.xpose.msra.mxu0 %v2067
        %2235 = vmatpush.xpose.msra.mxu0 %v2064
        %2236 = vmatpush.xpose.msra.mxu0 %v2061
        %2237 = vmatmul.f32.gmra.mxu0 %v1965
        %v2238 = vpop.f32.mrf.mxu0
        %v2239 = vadd.f32 0.0, %v2238
        %2240 = vmatmul.f32.gmra.mxu0 %v1968
        %v2241 = vpop.f32.mrf.mxu0
        %v2242 = vadd.f32 0.0, %v2241
        %2243 = vmatmul.f32.gmra.mxu0 %v1971
        %v2244 = vpop.f32.mrf.mxu0
        %v2245 = vadd.f32 0.0, %v2244
        %2246 = vmatmul.f32.gmra.mxu0 %v1974
        %v2247 = vpop.f32.mrf.mxu0
        %v2248 = vadd.f32 0.0, %v2247
        %2249 = vmatmul.f32.gmra.mxu0 %v1977
        %v2250 = vpop.f32.mrf.mxu0
        %v2251 = vadd.f32 0.0, %v2250
        %2252 = vmatmul.f32.gmra.mxu0 %v1980
        %v2253 = vpop.f32.mrf.mxu0
        %v2254 = vadd.f32 0.0, %v2253
        %2255 = vmatmul.f32.gmra.mxu0 %v1983
        %v2256 = vpop.f32.mrf.mxu0
        %v2257 = vadd.f32 0.0, %v2256
        %2258 = vmatmul.f32.gmra.mxu0 %v1986
        %v2259 = vpop.f32.mrf.mxu0
        %v2260 = vadd.f32 0.0, %v2259
        %2261 = vmatmul.f32.gmra.mxu0 %v1989
        %v2262 = vpop.f32.mrf.mxu0
        %v2263 = vadd.f32 0.0, %v2262
        %2264 = vmatmul.f32.gmra.mxu0 %v1992
        %v2265 = vpop.f32.mrf.mxu0
        %v2266 = vadd.f32 0.0, %v2265
        %2267 = vmatmul.f32.gmra.mxu0 %v1995
        %v2268 = vpop.f32.mrf.mxu0
        %v2269 = vadd.f32 0.0, %v2268
        %2270 = vmatmul.f32.gmra.mxu0 %v1998
        %v2271 = vpop.f32.mrf.mxu0
        %v2272 = vadd.f32 0.0, %v2271
        %2273 = vmatmul.f32.gmra.mxu0 %v2001
        %v2274 = vpop.f32.mrf.mxu0
        %v2275 = vadd.f32 0.0, %v2274
        %2276 = vmatmul.f32.gmra.mxu0 %v2004
        %v2277 = vpop.f32.mrf.mxu0
        %v2278 = vadd.f32 0.0, %v2277
        %2279 = vmatmul.f32.gmra.mxu0 %v2007
        %v2280 = vpop.f32.mrf.mxu0
        %v2281 = vadd.f32 0.0, %v2280
        %2282 = vmatmul.f32.gmra.mxu0 %v2010
        %v2283 = vpop.f32.mrf.mxu0
        %v2284 = vadd.f32 0.0, %v2283
        %2285 = vdwg.mxu0
        %2286 = vmatpush.xpose.msra.mxu0 %v2154
        %2287 = vmatpush.xpose.msra.mxu0 %v2151
        %2288 = vmatpush.xpose.msra.mxu0 %v2148
        %2289 = vmatpush.xpose.msra.mxu0 %v2145
        %2290 = vmatpush.xpose.msra.mxu0 %v2142
        %2291 = vmatpush.xpose.msra.mxu0 %v2139
        %2292 = vmatpush.xpose.msra.mxu0 %v2136
        %2293 = vmatpush.xpose.msra.mxu0 %v2133
        %2294 = vmatpush.xpose.msra.mxu0 %v2130
        %2295 = vmatpush.xpose.msra.mxu0 %v2127
        %2296 = vmatpush.xpose.msra.mxu0 %v2124
        %2297 = vmatpush.xpose.msra.mxu0 %v2121
        %2298 = vmatpush.xpose.msra.mxu0 %v2118
        %2299 = vmatpush.xpose.msra.mxu0 %v2115
        %2300 = vmatpush.xpose.msra.mxu0 %v2112
        %2301 = vmatpush.xpose.msra.mxu0 %v2109
        %2302 = vmatmul.f32.gmra.mxu0 %v1965
        %v2303 = vpop.f32.mrf.mxu0
        %v2304 = vadd.f32 0.0, %v2303
        %2305 = vmatmul.f32.gmra.mxu0 %v1968
        %v2306 = vpop.f32.mrf.mxu0
        %v2307 = vadd.f32 0.0, %v2306
        %2308 = vmatmul.f32.gmra.mxu0 %v1971
        %v2309 = vpop.f32.mrf.mxu0
        %v2310 = vadd.f32 0.0, %v2309
        %2311 = vmatmul.f32.gmra.mxu0 %v1974
        %v2312 = vpop.f32.mrf.mxu0
        %v2313 = vadd.f32 0.0, %v2312
        %2314 = vmatmul.f32.gmra.mxu0 %v1977
        %v2315 = vpop.f32.mrf.mxu0
        %v2316 = vadd.f32 0.0, %v2315
        %2317 = vmatmul.f32.gmra.mxu0 %v1980
        %v2318 = vpop.f32.mrf.mxu0
        %v2319 = vadd.f32 0.0, %v2318
        %2320 = vmatmul.f32.gmra.mxu0 %v1983
        %v2321 = vpop.f32.mrf.mxu0
        %v2322 = vadd.f32 0.0, %v2321
        %2323 = vmatmul.f32.gmra.mxu0 %v1986
        %v2324 = vpop.f32.mrf.mxu0
        %v2325 = vadd.f32 0.0, %v2324
        %2326 = vmatmul.f32.gmra.mxu0 %v1989
        %v2327 = vpop.f32.mrf.mxu0
        %v2328 = vadd.f32 0.0, %v2327
        %2329 = vmatmul.f32.gmra.mxu0 %v1992
        %v2330 = vpop.f32.mrf.mxu0
        %v2331 = vadd.f32 0.0, %v2330
        %2332 = vmatmul.f32.gmra.mxu0 %v1995
        %v2333 = vpop.f32.mrf.mxu0
        %v2334 = vadd.f32 0.0, %v2333
        %2335 = vmatmul.f32.gmra.mxu0 %v1998
        %v2336 = vpop.f32.mrf.mxu0
        %v2337 = vadd.f32 0.0, %v2336
        %2338 = vmatmul.f32.gmra.mxu0 %v2001
        %v2339 = vpop.f32.mrf.mxu0
        %v2340 = vadd.f32 0.0, %v2339
        %2341 = vmatmul.f32.gmra.mxu0 %v2004
        %v2342 = vpop.f32.mrf.mxu0
        %v2343 = vadd.f32 0.0, %v2342
        %2344 = vmatmul.f32.gmra.mxu0 %v2007
        %v2345 = vpop.f32.mrf.mxu0
        %v2346 = vadd.f32 0.0, %v2345
        %2347 = vmatmul.f32.gmra.mxu0 %v2010
        %v2348 = vpop.f32.mrf.mxu0
        %v2349 = vadd.f32 0.0, %v2348
        %2350 = vdwg.mxu0
        %v2351 = vstv %s1897
        %v2352 = vmul.f32 %v2351, %v2174
        %v2353 = vmul.f32 %v2351, %v2239
        %v2354 = vmul.f32 %v2351, %v2304
        %v2355 = vmul.f32 %v2351, %v2177
        %v2356 = vmul.f32 %v2351, %v2242
        %v2357 = vmul.f32 %v2351, %v2307
        %v2358 = vmul.f32 %v2351, %v2180
        %v2359 = vmul.f32 %v2351, %v2245
        %v2360 = vmul.f32 %v2351, %v2310
        %v2361 = vmul.f32 %v2351, %v2183
        %v2362 = vmul.f32 %v2351, %v2248
        %v2363 = vmul.f32 %v2351, %v2313
        %v2364 = vmul.f32 %v2351, %v2186
        %v2365 = vmul.f32 %v2351, %v2251
        %v2366 = vmul.f32 %v2351, %v2316
        %v2367 = vmul.f32 %v2351, %v2189
        %v2368 = vmul.f32 %v2351, %v2254
        %v2369 = vmul.f32 %v2351, %v2319
        %v2370 = vmul.f32 %v2351, %v2192
        %v2371 = vmul.f32 %v2351, %v2257
        %v2372 = vmul.f32 %v2351, %v2322
        %v2373 = vmul.f32 %v2351, %v2195
        %v2374 = vmul.f32 %v2351, %v2260
        %v2375 = vmul.f32 %v2351, %v2325
        %v2376 = vmul.f32 %v2351, %v2198
        %v2377 = vmul.f32 %v2351, %v2263
        %v2378 = vmul.f32 %v2351, %v2328
        %v2379 = vmul.f32 %v2351, %v2201
        %v2380 = vmul.f32 %v2351, %v2266
        %v2381 = vmul.f32 %v2351, %v2331
        %v2382 = vmul.f32 %v2351, %v2204
        %v2383 = vmul.f32 %v2351, %v2269
        %v2384 = vmul.f32 %v2351, %v2334
        %v2385 = vmul.f32 %v2351, %v2207
        %v2386 = vmul.f32 %v2351, %v2272
        %v2387 = vmul.f32 %v2351, %v2337
        %v2388 = vmul.f32 %v2351, %v2210
        %v2389 = vmul.f32 %v2351, %v2275
        %v2390 = vmul.f32 %v2351, %v2340
        %v2391 = vmul.f32 %v2351, %v2213
        %v2392 = vmul.f32 %v2351, %v2278
        %v2393 = vmul.f32 %v2351, %v2343
        %v2394 = vmul.f32 %v2351, %v2216
        %v2395 = vmul.f32 %v2351, %v2281
        %v2396 = vmul.f32 %v2351, %v2346
        %v2397 = vmul.f32 %v2351, %v2219
        %v2398 = vmul.f32 %v2351, %v2284
        %v2399 = vmul.f32 %v2351, %v2349
        %v2400 = vmul.f32 %v1876, %v1900
        %v2401 = vmul.f32 %v1877, %v1901
        %v2402 = vmul.f32 %v1878, %v1902
        %v2403 = vmul.f32 %v1879, %v1903
        %v2404 = vmul.f32 %v1880, %v1904
        %v2405 = vmul.f32 %v1881, %v1905
        %v2406 = vmul.f32 %v1882, %v1906
        %v2407 = vmul.f32 %v1883, %v1907
        %v2408 = vmul.f32 %v1884, %v1908
        %v2409 = vmul.f32 %v1885, %v1909
        %v2410 = vmul.f32 %v1886, %v1910
        %v2411 = vmul.f32 %v1887, %v1911
        %v2412 = vmul.f32 %v1888, %v1912
        %v2413 = vmul.f32 %v1889, %v1913
        %v2414 = vmul.f32 %v1890, %v1914
        %v2415 = vmul.f32 %v1891, %v1915
        %v2416 = vsel %vm1651, %v2400, 0.0
        %2417 = vadd.xlane.f32.xlu0 %v2416
        %v2418 = vpop.xlane.xlu0 %2417
        %v2419 = vsel %vm1651, %v2401, 0.0
        %2420 = vadd.xlane.f32.xlu0 %v2419
        %v2421 = vpop.xlane.xlu0 %2420
        %v2422 = vsel %vm1651, %v2402, 0.0
        %2423 = vadd.xlane.f32.xlu0 %v2422
        %v2424 = vpop.xlane.xlu0 %2423
        %v2425 = vsel %vm1651, %v2403, 0.0
        %2426 = vadd.xlane.f32.xlu0 %v2425
        %v2427 = vpop.xlane.xlu0 %2426
        %v2428 = vsel %vm1651, %v2404, 0.0
        %2429 = vadd.xlane.f32.xlu0 %v2428
        %v2430 = vpop.xlane.xlu0 %2429
        %v2431 = vsel %vm1651, %v2405, 0.0
        %2432 = vadd.xlane.f32.xlu0 %v2431
        %v2433 = vpop.xlane.xlu0 %2432
        %v2434 = vsel %vm1651, %v2406, 0.0
        %2435 = vadd.xlane.f32.xlu0 %v2434
        %v2436 = vpop.xlane.xlu0 %2435
        %v2437 = vsel %vm1651, %v2407, 0.0
        %2438 = vadd.xlane.f32.xlu0 %v2437
        %v2439 = vpop.xlane.xlu0 %2438
        %v2440 = vsel %vm1651, %v2408, 0.0
        %2441 = vadd.xlane.f32.xlu0 %v2440
        %v2442 = vpop.xlane.xlu0 %2441
        %v2443 = vsel %vm1651, %v2409, 0.0
        %2444 = vadd.xlane.f32.xlu0 %v2443
        %v2445 = vpop.xlane.xlu0 %2444
        %v2446 = vsel %vm1651, %v2410, 0.0
        %2447 = vadd.xlane.f32.xlu0 %v2446
        %v2448 = vpop.xlane.xlu0 %2447
        %v2449 = vsel %vm1651, %v2411, 0.0
        %2450 = vadd.xlane.f32.xlu0 %v2449
        %v2451 = vpop.xlane.xlu0 %2450
        %v2452 = vsel %vm1651, %v2412, 0.0
        %2453 = vadd.xlane.f32.xlu0 %v2452
        %v2454 = vpop.xlane.xlu0 %2453
        %v2455 = vsel %vm1651, %v2413, 0.0
        %2456 = vadd.xlane.f32.xlu0 %v2455
        %v2457 = vpop.xlane.xlu0 %2456
        %v2458 = vsel %vm1651, %v2414, 0.0
        %2459 = vadd.xlane.f32.xlu0 %v2458
        %v2460 = vpop.xlane.xlu0 %2459
        %v2461 = vsel %vm1651, %v2415, 0.0
        %2462 = vadd.xlane.f32.xlu0 %v2461
        %v2463 = vpop.xlane.xlu0 %2462
        %v2464 = vmul.f32 %v2351, %v2418
        %v2465 = vmul.f32 %v2351, %v2421
        %v2466 = vmul.f32 %v2351, %v2424
        %v2467 = vmul.f32 %v2351, %v2427
        %v2468 = vmul.f32 %v2351, %v2430
        %v2469 = vmul.f32 %v2351, %v2433
        %v2470 = vmul.f32 %v2351, %v2436
        %v2471 = vmul.f32 %v2351, %v2439
        %v2472 = vmul.f32 %v2351, %v2442
        %v2473 = vmul.f32 %v2351, %v2445
        %v2474 = vmul.f32 %v2351, %v2448
        %v2475 = vmul.f32 %v2351, %v2451
        %v2476 = vmul.f32 %v2351, %v2454
        %v2477 = vmul.f32 %v2351, %v2457
        %v2478 = vmul.f32 %v2351, %v2460
        %v2479 = vmul.f32 %v2351, %v2463
        %s2480 = scalar_lea.vmem [#allocation5], %s1898
        %vm2481 = vcmask 7168
        %2482 = vst.msk [vmem:[%s2480] sm:$0xff] %vm2481, %v2464
        %2483 = vst.msk [vmem:[%s2480 + $0x8] sm:$0xff] %vm2481, %v2465
        %2484 = vst.msk [vmem:[%s2480 + $0x10] sm:$0xff] %vm2481, %v2466
        %2485 = vst.msk [vmem:[%s2480 + $0x18] sm:$0xff] %vm2481, %v2467
        %2486 = vst.msk [vmem:[%s2480 + $0x20] sm:$0xff] %vm2481, %v2468
        %2487 = vst.msk [vmem:[%s2480 + $0x28] sm:$0xff] %vm2481, %v2469
        %2488 = vst.msk [vmem:[%s2480 + $0x30] sm:$0xff] %vm2481, %v2470
        %2489 = vst.msk [vmem:[%s2480 + $0x38] sm:$0xff] %vm2481, %v2471
        %2490 = vst.msk [vmem:[%s2480 + $0x40] sm:$0xff] %vm2481, %v2472
        %2491 = vst.msk [vmem:[%s2480 + $0x48] sm:$0xff] %vm2481, %v2473
        %2492 = vst.msk [vmem:[%s2480 + $0x50] sm:$0xff] %vm2481, %v2474
        %2493 = vst.msk [vmem:[%s2480 + $0x58] sm:$0xff] %vm2481, %v2475
        %2494 = vst.msk [vmem:[%s2480 + $0x60] sm:$0xff] %vm2481, %v2476
        %2495 = vst.msk [vmem:[%s2480 + $0x68] sm:$0xff] %vm2481, %v2477
        %2496 = vst.msk [vmem:[%s2480 + $0x70] sm:$0xff] %vm2481, %v2478
        %2497 = vst.msk [vmem:[%s2480 + $0x78] sm:$0xff] %vm2481, %v2479
        %v2498 = vlaneseq
        %v2499 = vand.u32 %v2498, 127
        %v2500 = vadd.s32 %v2499, 128
        %v2501 = vadd.s32 %v2499, 256
        %vm2502 = vcmp.lt.s32.totalorder %v2499, 300
        %vm2503 = vcmp.lt.s32.totalorder %v2500, 300
        %vm2504 = vcmp.lt.s32.totalorder %v2501, 300
        %v2505 = vsel %vm2502, 0.0, -1e+30
        %v2506 = vsel %vm2503, 0.0, -1e+30
        %v2507 = vsel %vm2504, 0.0, -1e+30
        %v2508 = vadd.f32 %v2352, %v2505
        %v2509 = vadd.f32 %v2353, %v2506
        %v2510 = vadd.f32 %v2354, %v2507
        %v2511 = vadd.f32 %v2355, %v2505
        %v2512 = vadd.f32 %v2356, %v2506
        %v2513 = vadd.f32 %v2357, %v2507
        %v2514 = vadd.f32 %v2358, %v2505
        %v2515 = vadd.f32 %v2359, %v2506
        %v2516 = vadd.f32 %v2360, %v2507
        %v2517 = vadd.f32 %v2361, %v2505
        %v2518 = vadd.f32 %v2362, %v2506
        %v2519 = vadd.f32 %v2363, %v2507
        %v2520 = vadd.f32 %v2364, %v2505
        %v2521 = vadd.f32 %v2365, %v2506
        %v2522 = vadd.f32 %v2366, %v2507
        %v2523 = vadd.f32 %v2367, %v2505
        %v2524 = vadd.f32 %v2368, %v2506
        %v2525 = vadd.f32 %v2369, %v2507
        %v2526 = vadd.f32 %v2370, %v2505
        %v2527 = vadd.f32 %v2371, %v2506
        %v2528 = vadd.f32 %v2372, %v2507
        %v2529 = vadd.f32 %v2373, %v2505
        %v2530 = vadd.f32 %v2374, %v2506
        %v2531 = vadd.f32 %v2375, %v2507
        %v2532 = vadd.f32 %v2376, %v2505
        %v2533 = vadd.f32 %v2377, %v2506
        %v2534 = vadd.f32 %v2378, %v2507
        %v2535 = vadd.f32 %v2379, %v2505
        %v2536 = vadd.f32 %v2380, %v2506
        %v2537 = vadd.f32 %v2381, %v2507
        %v2538 = vadd.f32 %v2382, %v2505
        %v2539 = vadd.f32 %v2383, %v2506
        %v2540 = vadd.f32 %v2384, %v2507
        %v2541 = vadd.f32 %v2385, %v2505
        %v2542 = vadd.f32 %v2386, %v2506
        %v2543 = vadd.f32 %v2387, %v2507
        %v2544 = vadd.f32 %v2388, %v2505
        %v2545 = vadd.f32 %v2389, %v2506
        %v2546 = vadd.f32 %v2390, %v2507
        %v2547 = vadd.f32 %v2391, %v2505
        %v2548 = vadd.f32 %v2392, %v2506
        %v2549 = vadd.f32 %v2393, %v2507
        %v2550 = vadd.f32 %v2394, %v2505
        %v2551 = vadd.f32 %v2395, %v2506
        %v2552 = vadd.f32 %v2396, %v2507
        %v2553 = vadd.f32 %v2397, %v2505
        %v2554 = vadd.f32 %v2398, %v2506
        %v2555 = vadd.f32 %v2399, %v2507
        %v2556 = vmax.f32 %v2508, %v2509
        %v2557 = vmax.f32 %v2556, %v2510
        %2558 = vmax.xlane.f32.xlu0 %v2557
        %v2559 = vpop.xlane.xlu0 %2558
        %v2560 = vmax.f32 %v2511, %v2512
        %v2561 = vmax.f32 %v2560, %v2513
        %2562 = vmax.xlane.f32.xlu0 %v2561
        %v2563 = vpop.xlane.xlu0 %2562
        %v2564 = vmax.f32 %v2514, %v2515
        %v2565 = vmax.f32 %v2564, %v2516
        %2566 = vmax.xlane.f32.xlu0 %v2565
        %v2567 = vpop.xlane.xlu0 %2566
        %v2568 = vmax.f32 %v2517, %v2518
        %v2569 = vmax.f32 %v2568, %v2519
        %2570 = vmax.xlane.f32.xlu0 %v2569
        %v2571 = vpop.xlane.xlu0 %2570
        %v2572 = vmax.f32 %v2520, %v2521
        %v2573 = vmax.f32 %v2572, %v2522
        %2574 = vmax.xlane.f32.xlu0 %v2573
        %v2575 = vpop.xlane.xlu0 %2574
        %v2576 = vmax.f32 %v2523, %v2524
        %v2577 = vmax.f32 %v2576, %v2525
        %2578 = vmax.xlane.f32.xlu0 %v2577
        %v2579 = vpop.xlane.xlu0 %2578
        %v2580 = vmax.f32 %v2526, %v2527
        %v2581 = vmax.f32 %v2580, %v2528
        %2582 = vmax.xlane.f32.xlu0 %v2581
        %v2583 = vpop.xlane.xlu0 %2582
        %v2584 = vmax.f32 %v2529, %v2530
        %v2585 = vmax.f32 %v2584, %v2531
        %2586 = vmax.xlane.f32.xlu0 %v2585
        %v2587 = vpop.xlane.xlu0 %2586
        %v2588 = vmax.f32 %v2532, %v2533
        %v2589 = vmax.f32 %v2588, %v2534
        %2590 = vmax.xlane.f32.xlu0 %v2589
        %v2591 = vpop.xlane.xlu0 %2590
        %v2592 = vmax.f32 %v2535, %v2536
        %v2593 = vmax.f32 %v2592, %v2537
        %2594 = vmax.xlane.f32.xlu0 %v2593
        %v2595 = vpop.xlane.xlu0 %2594
        %v2596 = vmax.f32 %v2538, %v2539
        %v2597 = vmax.f32 %v2596, %v2540
        %2598 = vmax.xlane.f32.xlu0 %v2597
        %v2599 = vpop.xlane.xlu0 %2598
        %v2600 = vmax.f32 %v2541, %v2542
        %v2601 = vmax.f32 %v2600, %v2543
        %2602 = vmax.xlane.f32.xlu0 %v2601
        %v2603 = vpop.xlane.xlu0 %2602
        %v2604 = vmax.f32 %v2544, %v2545
        %v2605 = vmax.f32 %v2604, %v2546
        %2606 = vmax.xlane.f32.xlu0 %v2605
        %v2607 = vpop.xlane.xlu0 %2606
        %v2608 = vmax.f32 %v2547, %v2548
        %v2609 = vmax.f32 %v2608, %v2549
        %2610 = vmax.xlane.f32.xlu0 %v2609
        %v2611 = vpop.xlane.xlu0 %2610
        %v2612 = vmax.f32 %v2550, %v2551
        %v2613 = vmax.f32 %v2612, %v2552
        %2614 = vmax.xlane.f32.xlu0 %v2613
        %v2615 = vpop.xlane.xlu0 %2614
        %v2616 = vmax.f32 %v2553, %v2554
        %v2617 = vmax.f32 %v2616, %v2555
        %2618 = vmax.xlane.f32.xlu0 %v2617
        %v2619 = vpop.xlane.xlu0 %2618
        %v2620 = vsub.f32 %v2508, %v2559
        %v2621 = vsub.f32 %v2509, %v2559
        %v2622 = vsub.f32 %v2510, %v2559
        %v2623 = vsub.f32 %v2511, %v2563
        %v2624 = vsub.f32 %v2512, %v2563
        %v2625 = vsub.f32 %v2513, %v2563
        %v2626 = vsub.f32 %v2514, %v2567
        %v2627 = vsub.f32 %v2515, %v2567
        %v2628 = vsub.f32 %v2516, %v2567
        %v2629 = vsub.f32 %v2517, %v2571
        %v2630 = vsub.f32 %v2518, %v2571
        %v2631 = vsub.f32 %v2519, %v2571
        %v2632 = vsub.f32 %v2520, %v2575
        %v2633 = vsub.f32 %v2521, %v2575
        %v2634 = vsub.f32 %v2522, %v2575
        %v2635 = vsub.f32 %v2523, %v2579
        %v2636 = vsub.f32 %v2524, %v2579
        %v2637 = vsub.f32 %v2525, %v2579
        %v2638 = vsub.f32 %v2526, %v2583
        %v2639 = vsub.f32 %v2527, %v2583
        %v2640 = vsub.f32 %v2528, %v2583
        %v2641 = vsub.f32 %v2529, %v2587
        %v2642 = vsub.f32 %v2530, %v2587
        %v2643 = vsub.f32 %v2531, %v2587
        %v2644 = vsub.f32 %v2532, %v2591
        %v2645 = vsub.f32 %v2533, %v2591
        %v2646 = vsub.f32 %v2534, %v2591
        %v2647 = vsub.f32 %v2535, %v2595
        %v2648 = vsub.f32 %v2536, %v2595
        %v2649 = vsub.f32 %v2537, %v2595
        %v2650 = vsub.f32 %v2538, %v2599
        %v2651 = vsub.f32 %v2539, %v2599
        %v2652 = vsub.f32 %v2540, %v2599
        %v2653 = vsub.f32 %v2541, %v2603
        %v2654 = vsub.f32 %v2542, %v2603
        %v2655 = vsub.f32 %v2543, %v2603
        %v2656 = vsub.f32 %v2544, %v2607
        %v2657 = vsub.f32 %v2545, %v2607
        %v2658 = vsub.f32 %v2546, %v2607
        %v2659 = vsub.f32 %v2547, %v2611
        %v2660 = vsub.f32 %v2548, %v2611
        %v2661 = vsub.f32 %v2549, %v2611
        %v2662 = vsub.f32 %v2550, %v2615
        %v2663 = vsub.f32 %v2551, %v2615
        %v2664 = vsub.f32 %v2552, %v2615
        %v2665 = vsub.f32 %v2553, %v2619
        %v2666 = vsub.f32 %v2554, %v2619
        %v2667 = vsub.f32 %v2555, %v2619
        %v2668 = vmul.f32 %v2620, 1.442695
        %v2669 = vpow.pop %v2668
        %v2670 = vmul.f32 %v2621, 1.442695
        %v2671 = vpow.pop %v2670
        %v2672 = vmul.f32 %v2622, 1.442695
        %v2673 = vpow.pop %v2672
        %v2674 = vmul.f32 %v2623, 1.442695
        %v2675 = vpow.pop %v2674
        %v2676 = vmul.f32 %v2624, 1.442695
        %v2677 = vpow.pop %v2676
        %v2678 = vmul.f32 %v2625, 1.442695
        %v2679 = vpow.pop %v2678
        %v2680 = vmul.f32 %v2626, 1.442695
        %v2681 = vpow.pop %v2680
        %v2682 = vmul.f32 %v2627, 1.442695
        %v2683 = vpow.pop %v2682
        %v2684 = vmul.f32 %v2628, 1.442695
        %v2685 = vpow.pop %v2684
        %v2686 = vmul.f32 %v2629, 1.442695
        %v2687 = vpow.pop %v2686
        %v2688 = vmul.f32 %v2630, 1.442695
        %v2689 = vpow.pop %v2688
        %v2690 = vmul.f32 %v2631, 1.442695
        %v2691 = vpow.pop %v2690
        %v2692 = vmul.f32 %v2632, 1.442695
        %v2693 = vpow.pop %v2692
        %v2694 = vmul.f32 %v2633, 1.442695
        %v2695 = vpow.pop %v2694
        %v2696 = vmul.f32 %v2634, 1.442695
        %v2697 = vpow.pop %v2696
        %v2698 = vmul.f32 %v2635, 1.442695
        %v2699 = vpow.pop %v2698
        %v2700 = vmul.f32 %v2636, 1.442695
        %v2701 = vpow.pop %v2700
        %v2702 = vmul.f32 %v2637, 1.442695
        %v2703 = vpow.pop %v2702
        %v2704 = vmul.f32 %v2638, 1.442695
        %v2705 = vpow.pop %v2704
        %v2706 = vmul.f32 %v2639, 1.442695
        %v2707 = vpow.pop %v2706
        %v2708 = vmul.f32 %v2640, 1.442695
        %v2709 = vpow.pop %v2708
        %v2710 = vmul.f32 %v2641, 1.442695
        %v2711 = vpow.pop %v2710
        %v2712 = vmul.f32 %v2642, 1.442695
        %v2713 = vpow.pop %v2712
        %v2714 = vmul.f32 %v2643, 1.442695
        %v2715 = vpow.pop %v2714
        %v2716 = vmul.f32 %v2644, 1.442695
        %v2717 = vpow.pop %v2716
        %v2718 = vmul.f32 %v2645, 1.442695
        %v2719 = vpow.pop %v2718
        %v2720 = vmul.f32 %v2646, 1.442695
        %v2721 = vpow.pop %v2720
        %v2722 = vmul.f32 %v2647, 1.442695
        %v2723 = vpow.pop %v2722
        %v2724 = vmul.f32 %v2648, 1.442695
        %v2725 = vpow.pop %v2724
        %v2726 = vmul.f32 %v2649, 1.442695
        %v2727 = vpow.pop %v2726
        %v2728 = vmul.f32 %v2650, 1.442695
        %v2729 = vpow.pop %v2728
        %v2730 = vmul.f32 %v2651, 1.442695
        %v2731 = vpow.pop %v2730
        %v2732 = vmul.f32 %v2652, 1.442695
        %v2733 = vpow.pop %v2732
        %v2734 = vmul.f32 %v2653, 1.442695
        %v2735 = vpow.pop %v2734
        %v2736 = vmul.f32 %v2654, 1.442695
        %v2737 = vpow.pop %v2736
        %v2738 = vmul.f32 %v2655, 1.442695
        %v2739 = vpow.pop %v2738
        %v2740 = vmul.f32 %v2656, 1.442695
        %v2741 = vpow.pop %v2740
        %v2742 = vmul.f32 %v2657, 1.442695
        %v2743 = vpow.pop %v2742
        %v2744 = vmul.f32 %v2658, 1.442695
        %v2745 = vpow.pop %v2744
        %v2746 = vmul.f32 %v2659, 1.442695
        %v2747 = vpow.pop %v2746
        %v2748 = vmul.f32 %v2660, 1.442695
        %v2749 = vpow.pop %v2748
        %v2750 = vmul.f32 %v2661, 1.442695
        %v2751 = vpow.pop %v2750
        %v2752 = vmul.f32 %v2662, 1.442695
        %v2753 = vpow.pop %v2752
        %v2754 = vmul.f32 %v2663, 1.442695
        %v2755 = vpow.pop %v2754
        %v2756 = vmul.f32 %v2664, 1.442695
        %v2757 = vpow.pop %v2756
        %v2758 = vmul.f32 %v2665, 1.442695
        %v2759 = vpow.pop %v2758
        %v2760 = vmul.f32 %v2666, 1.442695
        %v2761 = vpow.pop %v2760
        %v2762 = vmul.f32 %v2667, 1.442695
        %v2763 = vpow.pop %v2762
        %v2764 = vadd.f32 %v2669, %v2671
        %v2765 = vadd.f32 %v2764, %v2673
        %2766 = vadd.xlane.f32.xlu0 %v2765
        %v2767 = vpop.xlane.xlu0 %2766
        %v2768 = vadd.f32 %v2675, %v2677
        %v2769 = vadd.f32 %v2768, %v2679
        %2770 = vadd.xlane.f32.xlu0 %v2769
        %v2771 = vpop.xlane.xlu0 %2770
        %v2772 = vadd.f32 %v2681, %v2683
        %v2773 = vadd.f32 %v2772, %v2685
        %2774 = vadd.xlane.f32.xlu0 %v2773
        %v2775 = vpop.xlane.xlu0 %2774
        %v2776 = vadd.f32 %v2687, %v2689
        %v2777 = vadd.f32 %v2776, %v2691
        %2778 = vadd.xlane.f32.xlu0 %v2777
        %v2779 = vpop.xlane.xlu0 %2778
        %v2780 = vadd.f32 %v2693, %v2695
        %v2781 = vadd.f32 %v2780, %v2697
        %2782 = vadd.xlane.f32.xlu0 %v2781
        %v2783 = vpop.xlane.xlu0 %2782
        %v2784 = vadd.f32 %v2699, %v2701
        %v2785 = vadd.f32 %v2784, %v2703
        %2786 = vadd.xlane.f32.xlu0 %v2785
        %v2787 = vpop.xlane.xlu0 %2786
        %v2788 = vadd.f32 %v2705, %v2707
        %v2789 = vadd.f32 %v2788, %v2709
        %2790 = vadd.xlane.f32.xlu0 %v2789
        %v2791 = vpop.xlane.xlu0 %2790
        %v2792 = vadd.f32 %v2711, %v2713
        %v2793 = vadd.f32 %v2792, %v2715
        %2794 = vadd.xlane.f32.xlu0 %v2793
        %v2795 = vpop.xlane.xlu0 %2794
        %v2796 = vadd.f32 %v2717, %v2719
        %v2797 = vadd.f32 %v2796, %v2721
        %2798 = vadd.xlane.f32.xlu0 %v2797
        %v2799 = vpop.xlane.xlu0 %2798
        %v2800 = vadd.f32 %v2723, %v2725
        %v2801 = vadd.f32 %v2800, %v2727
        %2802 = vadd.xlane.f32.xlu0 %v2801
        %v2803 = vpop.xlane.xlu0 %2802
        %v2804 = vadd.f32 %v2729, %v2731
        %v2805 = vadd.f32 %v2804, %v2733
        %2806 = vadd.xlane.f32.xlu0 %v2805
        %v2807 = vpop.xlane.xlu0 %2806
        %v2808 = vadd.f32 %v2735, %v2737
        %v2809 = vadd.f32 %v2808, %v2739
        %2810 = vadd.xlane.f32.xlu0 %v2809
        %v2811 = vpop.xlane.xlu0 %2810
        %v2812 = vadd.f32 %v2741, %v2743
        %v2813 = vadd.f32 %v2812, %v2745
        %2814 = vadd.xlane.f32.xlu0 %v2813
        %v2815 = vpop.xlane.xlu0 %2814
        %v2816 = vadd.f32 %v2747, %v2749
        %v2817 = vadd.f32 %v2816, %v2751
        %2818 = vadd.xlane.f32.xlu0 %v2817
        %v2819 = vpop.xlane.xlu0 %2818
        %v2820 = vadd.f32 %v2753, %v2755
        %v2821 = vadd.f32 %v2820, %v2757
        %2822 = vadd.xlane.f32.xlu0 %v2821
        %v2823 = vpop.xlane.xlu0 %2822
        %v2824 = vadd.f32 %v2759, %v2761
        %v2825 = vadd.f32 %v2824, %v2763
        %2826 = vadd.xlane.f32.xlu0 %v2825
        %v2827 = vpop.xlane.xlu0 %2826
        %v2828 = vlog2.pop %v2767
        %v2829 = vmul.f32 %v2828, 0.6931472
        %v2830 = vlog2.pop %v2771
        %v2831 = vmul.f32 %v2830, 0.6931472
        %v2832 = vlog2.pop %v2775
        %v2833 = vmul.f32 %v2832, 0.6931472
        %v2834 = vlog2.pop %v2779
        %v2835 = vmul.f32 %v2834, 0.6931472
        %v2836 = vlog2.pop %v2783
        %v2837 = vmul.f32 %v2836, 0.6931472
        %v2838 = vlog2.pop %v2787
        %v2839 = vmul.f32 %v2838, 0.6931472
        %v2840 = vlog2.pop %v2791
        %v2841 = vmul.f32 %v2840, 0.6931472
        %v2842 = vlog2.pop %v2795
        %v2843 = vmul.f32 %v2842, 0.6931472
        %v2844 = vlog2.pop %v2799
        %v2845 = vmul.f32 %v2844, 0.6931472
        %v2846 = vlog2.pop %v2803
        %v2847 = vmul.f32 %v2846, 0.6931472
        %v2848 = vlog2.pop %v2807
        %v2849 = vmul.f32 %v2848, 0.6931472
        %v2850 = vlog2.pop %v2811
        %v2851 = vmul.f32 %v2850, 0.6931472
        %v2852 = vlog2.pop %v2815
        %v2853 = vmul.f32 %v2852, 0.6931472
        %v2854 = vlog2.pop %v2819
        %v2855 = vmul.f32 %v2854, 0.6931472
        %v2856 = vlog2.pop %v2823
        %v2857 = vmul.f32 %v2856, 0.6931472
        %v2858 = vlog2.pop %v2827
        %v2859 = vmul.f32 %v2858, 0.6931472
        %v2860 = vadd.f32 %v2559, %v2829
        %v2861 = vadd.f32 %v2563, %v2831
        %v2862 = vadd.f32 %v2567, %v2833
        %v2863 = vadd.f32 %v2571, %v2835
        %v2864 = vadd.f32 %v2575, %v2837
        %v2865 = vadd.f32 %v2579, %v2839
        %v2866 = vadd.f32 %v2583, %v2841
        %v2867 = vadd.f32 %v2587, %v2843
        %v2868 = vadd.f32 %v2591, %v2845
        %v2869 = vadd.f32 %v2595, %v2847
        %v2870 = vadd.f32 %v2599, %v2849
        %v2871 = vadd.f32 %v2603, %v2851
        %v2872 = vadd.f32 %v2607, %v2853
        %v2873 = vadd.f32 %v2611, %v2855
        %v2874 = vadd.f32 %v2615, %v2857
        %v2875 = vadd.f32 %v2619, %v2859
        %v2876 = vsub.f32 %v2860, %v2464
        %v2877 = vsub.f32 %v2861, %v2465
        %v2878 = vsub.f32 %v2862, %v2466
        %v2879 = vsub.f32 %v2863, %v2467
        %v2880 = vsub.f32 %v2864, %v2468
        %v2881 = vsub.f32 %v2865, %v2469
        %v2882 = vsub.f32 %v2866, %v2470
        %v2883 = vsub.f32 %v2867, %v2471
        %v2884 = vsub.f32 %v2868, %v2472
        %v2885 = vsub.f32 %v2869, %v2473
        %v2886 = vsub.f32 %v2870, %v2474
        %v2887 = vsub.f32 %v2871, %v2475
        %v2888 = vsub.f32 %v2872, %v2476
        %v2889 = vsub.f32 %v2873, %v2477
        %v2890 = vsub.f32 %v2874, %v2478
        %v2891 = vsub.f32 %v2875, %v2479
        %2892 = vxpose.xlu0.b32.start [1/16] %v2876, 128
        %2893 = vxpose.xlu0.b32.cont [2/16] %v2877, 128
        %2894 = vxpose.xlu0.b32.cont [3/16] %v2878, 128
        %2895 = vxpose.xlu0.b32.cont [4/16] %v2879, 128
        %2896 = vxpose.xlu0.b32.cont [5/16] %v2880, 128
        %2897 = vxpose.xlu0.b32.cont [6/16] %v2881, 128
        %2898 = vxpose.xlu0.b32.cont [7/16] %v2882, 128
        %2899 = vxpose.xlu0.b32.cont [8/16] %v2883, 128
        %2900 = vxpose.xlu0.b32.cont [9/16] %v2884, 128
        %2901 = vxpose.xlu0.b32.cont [10/16] %v2885, 128
        %2902 = vxpose.xlu0.b32.cont [11/16] %v2886, 128
        %2903 = vxpose.xlu0.b32.cont [12/16] %v2887, 128
        %2904 = vxpose.xlu0.b32.cont [13/16] %v2888, 128
        %2905 = vxpose.xlu0.b32.cont [14/16] %v2889, 128
        %2906 = vxpose.xlu0.b32.cont [15/16] %v2890, 128
        %2907 = vxpose.xlu0.b32.end [16/16] %v2891, 128
        %v2908 = vpop.trf.xlu0
        %v2909 = vpop.trf.xlu0
        %v2910 = vpop.trf.xlu0
        %v2911 = vpop.trf.xlu0
        %v2912 = vpop.trf.xlu0
        %v2913 = vpop.trf.xlu0
        %v2914 = vpop.trf.xlu0
        %v2915 = vpop.trf.xlu0
        %v2916 = vpop.trf.xlu0
        %v2917 = vpop.trf.xlu0
        %v2918 = vpop.trf.xlu0
        %v2919 = vpop.trf.xlu0
        %v2920 = vpop.trf.xlu0
        %v2921 = vpop.trf.xlu0
        %v2922 = vpop.trf.xlu0
        %v2923 = vpop.trf.xlu0
        %2924 = vst [vmem:[%s296] sm:$0x1] %v2908
        %v2925 = vmax.f32 %v2559, %v2575
        %v2926 = vmax.f32 %v2563, %v2579
        %v2927 = vmax.f32 %v2567, %v2583
        %v2928 = vmax.f32 %v2571, %v2587
        %v2929 = vmax.f32 %v2925, %v2591
        %v2930 = vmax.f32 %v2926, %v2595
        %v2931 = vmax.f32 %v2927, %v2599
        %v2932 = vmax.f32 %v2928, %v2603
        %v2933 = vmax.f32 %v2929, %v2607
        %v2934 = vmax.f32 %v2930, %v2611
        %v2935 = vmax.f32 %v2931, %v2615
        %v2936 = vmax.f32 %v2932, %v2619
        %v2937 = vmax.f32 %v2933, %v2934
        %v2938 = vmax.f32 %v2935, %v2936
        %v2939 = vmax.f32 %v2937, %v2938
        %v2940 = vrot.slane %v2939, 4
        %v2941 = vmax.f32 %v2939, %v2940
        %v2942 = vrot.slane %v2941, 2
        %v2943 = vmax.f32 %v2941, %v2942
        %v2944 = vrot.slane %v2943, 1
        %v2945 = vmax.f32 %v2943, %v2944
        %s2946 = vtos %v2945
        %v2947 = vstv %s2946
        %v2948 = vsub.f32 %v2559, %v2947
        %v2949 = vsub.f32 %v2563, %v2947
        %v2950 = vsub.f32 %v2567, %v2947
        %v2951 = vsub.f32 %v2571, %v2947
        %v2952 = vsub.f32 %v2575, %v2947
        %v2953 = vsub.f32 %v2579, %v2947
        %v2954 = vsub.f32 %v2583, %v2947
        %v2955 = vsub.f32 %v2587, %v2947
        %v2956 = vsub.f32 %v2591, %v2947
        %v2957 = vsub.f32 %v2595, %v2947
        %v2958 = vsub.f32 %v2599, %v2947
        %v2959 = vsub.f32 %v2603, %v2947
        %v2960 = vsub.f32 %v2607, %v2947
        %v2961 = vsub.f32 %v2611, %v2947
        %v2962 = vsub.f32 %v2615, %v2947
        %v2963 = vsub.f32 %v2619, %v2947
        %v2964 = vmul.f32 %v2948, 1.442695
        %v2965 = vpow.pop %v2964
        %v2966 = vmul.f32 %v2949, 1.442695
        %v2967 = vpow.pop %v2966
        %v2968 = vmul.f32 %v2950, 1.442695
        %v2969 = vpow.pop %v2968
        %v2970 = vmul.f32 %v2951, 1.442695
        %v2971 = vpow.pop %v2970
        %v2972 = vmul.f32 %v2952, 1.442695
        %v2973 = vpow.pop %v2972
        %v2974 = vmul.f32 %v2953, 1.442695
        %v2975 = vpow.pop %v2974
        %v2976 = vmul.f32 %v2954, 1.442695
        %v2977 = vpow.pop %v2976
        %v2978 = vmul.f32 %v2955, 1.442695
        %v2979 = vpow.pop %v2978
        %v2980 = vmul.f32 %v2956, 1.442695
        %v2981 = vpow.pop %v2980
        %v2982 = vmul.f32 %v2957, 1.442695
        %v2983 = vpow.pop %v2982
        %v2984 = vmul.f32 %v2958, 1.442695
        %v2985 = vpow.pop %v2984
        %v2986 = vmul.f32 %v2959, 1.442695
        %v2987 = vpow.pop %v2986
        %v2988 = vmul.f32 %v2960, 1.442695
        %v2989 = vpow.pop %v2988
        %v2990 = vmul.f32 %v2961, 1.442695
        %v2991 = vpow.pop %v2990
        %v2992 = vmul.f32 %v2962, 1.442695
        %v2993 = vpow.pop %v2992
        %v2994 = vmul.f32 %v2963, 1.442695
        %v2995 = vpow.pop %v2994
        %v2996 = vmul.f32 %v2965, %v2669
        %v2997 = vmul.f32 %v2965, %v2671
        %v2998 = vmul.f32 %v2965, %v2673
        %v2999 = vmul.f32 %v2967, %v2675
        %v3000 = vmul.f32 %v2967, %v2677
        %v3001 = vmul.f32 %v2967, %v2679
        %v3002 = vmul.f32 %v2969, %v2681
        %v3003 = vmul.f32 %v2969, %v2683
        %v3004 = vmul.f32 %v2969, %v2685
        %v3005 = vmul.f32 %v2971, %v2687
        %v3006 = vmul.f32 %v2971, %v2689
        %v3007 = vmul.f32 %v2971, %v2691
        %v3008 = vmul.f32 %v2973, %v2693
        %v3009 = vmul.f32 %v2973, %v2695
        %v3010 = vmul.f32 %v2973, %v2697
        %v3011 = vmul.f32 %v2975, %v2699
        %v3012 = vmul.f32 %v2975, %v2701
        %v3013 = vmul.f32 %v2975, %v2703
        %v3014 = vmul.f32 %v2977, %v2705
        %v3015 = vmul.f32 %v2977, %v2707
        %v3016 = vmul.f32 %v2977, %v2709
        %v3017 = vmul.f32 %v2979, %v2711
        %v3018 = vmul.f32 %v2979, %v2713
        %v3019 = vmul.f32 %v2979, %v2715
        %v3020 = vmul.f32 %v2981, %v2717
        %v3021 = vmul.f32 %v2981, %v2719
        %v3022 = vmul.f32 %v2981, %v2721
        %v3023 = vmul.f32 %v2983, %v2723
        %v3024 = vmul.f32 %v2983, %v2725
        %v3025 = vmul.f32 %v2983, %v2727
        %v3026 = vmul.f32 %v2985, %v2729
        %v3027 = vmul.f32 %v2985, %v2731
        %v3028 = vmul.f32 %v2985, %v2733
        %v3029 = vmul.f32 %v2987, %v2735
        %v3030 = vmul.f32 %v2987, %v2737
        %v3031 = vmul.f32 %v2987, %v2739
        %v3032 = vmul.f32 %v2989, %v2741
        %v3033 = vmul.f32 %v2989, %v2743
        %v3034 = vmul.f32 %v2989, %v2745
        %v3035 = vmul.f32 %v2991, %v2747
        %v3036 = vmul.f32 %v2991, %v2749
        %v3037 = vmul.f32 %v2991, %v2751
        %v3038 = vmul.f32 %v2993, %v2753
        %v3039 = vmul.f32 %v2993, %v2755
        %v3040 = vmul.f32 %v2993, %v2757
        %v3041 = vmul.f32 %v2995, %v2759
        %v3042 = vmul.f32 %v2995, %v2761
        %v3043 = vmul.f32 %v2995, %v2763
        %v3044 = vlaneseq
        %v3045 = vshrl.u32 %v3044, 7
        %v3046 = vadd.s32 %v3045, 8
        %v3047 = vadd.s32 %v3045, 16
        %v3048 = vadd.s32 %v3045, 24
        %v3049 = vadd.s32 %v3045, 32
        %v3050 = vadd.s32 %v3045, 40
        %v3051 = vadd.s32 %v3045, 48
        %v3052 = vadd.s32 %v3045, 56
        %v3053 = vadd.s32 %v3045, 64
        %v3054 = vadd.s32 %v3045, 72
        %v3055 = vadd.s32 %v3045, 80
        %v3056 = vadd.s32 %v3045, 88
        %v3057 = vadd.s32 %v3045, 96
        %v3058 = vadd.s32 %v3045, 104
        %v3059 = vadd.s32 %v3045, 112
        %v3060 = vadd.s32 %v3045, 120
        %v3061 = vstv %s1898
        %v3062 = vadd.s32 %v3061, %v3045
        %v3063 = vadd.s32 %v3061, %v3046
        %v3064 = vadd.s32 %v3061, %v3047
        %v3065 = vadd.s32 %v3061, %v3048
        %v3066 = vadd.s32 %v3061, %v3049
        %v3067 = vadd.s32 %v3061, %v3050
        %v3068 = vadd.s32 %v3061, %v3051
        %v3069 = vadd.s32 %v3061, %v3052
        %v3070 = vadd.s32 %v3061, %v3053
        %v3071 = vadd.s32 %v3061, %v3054
        %v3072 = vadd.s32 %v3061, %v3055
        %v3073 = vadd.s32 %v3061, %v3056
        %v3074 = vadd.s32 %v3061, %v3057
        %v3075 = vadd.s32 %v3061, %v3058
        %v3076 = vadd.s32 %v3061, %v3059
        %v3077 = vadd.s32 %v3061, %v3060
        %vm3078 = vcmp.lt.s32.totalorder %v3062, 300
        %vm3079 = vcmp.lt.s32.totalorder %v3063, 300
        %vm3080 = vcmp.lt.s32.totalorder %v3064, 300
        %vm3081 = vcmp.lt.s32.totalorder %v3065, 300
        %vm3082 = vcmp.lt.s32.totalorder %v3066, 300
        %vm3083 = vcmp.lt.s32.totalorder %v3067, 300
        %vm3084 = vcmp.lt.s32.totalorder %v3068, 300
        %vm3085 = vcmp.lt.s32.totalorder %v3069, 300
        %vm3086 = vcmp.lt.s32.totalorder %v3070, 300
        %vm3087 = vcmp.lt.s32.totalorder %v3071, 300
        %vm3088 = vcmp.lt.s32.totalorder %v3072, 300
        %vm3089 = vcmp.lt.s32.totalorder %v3073, 300
        %vm3090 = vcmp.lt.s32.totalorder %v3074, 300
        %vm3091 = vcmp.lt.s32.totalorder %v3075, 300
        %vm3092 = vcmp.lt.s32.totalorder %v3076, 300
        %vm3093 = vcmp.lt.s32.totalorder %v3077, 300
        %v3094 = vsel %vm3078, 1, 0
        %v3095 = vsel %vm3079, 1, 0
        %v3096 = vsel %vm3080, 1, 0
        %v3097 = vsel %vm3081, 1, 0
        %v3098 = vsel %vm3082, 1, 0
        %v3099 = vsel %vm3083, 1, 0
        %v3100 = vsel %vm3084, 1, 0
        %v3101 = vsel %vm3085, 1, 0
        %v3102 = vsel %vm3086, 1, 0
        %v3103 = vsel %vm3087, 1, 0
        %v3104 = vsel %vm3088, 1, 0
        %v3105 = vsel %vm3089, 1, 0
        %v3106 = vsel %vm3090, 1, 0
        %v3107 = vsel %vm3091, 1, 0
        %v3108 = vsel %vm3092, 1, 0
        %v3109 = vsel %vm3093, 1, 0
        %v3110 = vcvt.s32.f32 %v3094
        %v3111 = vcvt.s32.f32 %v3095
        %v3112 = vcvt.s32.f32 %v3096
        %v3113 = vcvt.s32.f32 %v3097
        %v3114 = vcvt.s32.f32 %v3098
        %v3115 = vcvt.s32.f32 %v3099
        %v3116 = vcvt.s32.f32 %v3100
        %v3117 = vcvt.s32.f32 %v3101
        %v3118 = vcvt.s32.f32 %v3102
        %v3119 = vcvt.s32.f32 %v3103
        %v3120 = vcvt.s32.f32 %v3104
        %v3121 = vcvt.s32.f32 %v3105
        %v3122 = vcvt.s32.f32 %v3106
        %v3123 = vcvt.s32.f32 %v3107
        %v3124 = vcvt.s32.f32 %v3108
        %v3125 = vcvt.s32.f32 %v3109
        %v3126 = vmul.f32 %v2996, %v3110
        %v3127 = vmul.f32 %v2997, %v3110
        %v3128 = vmul.f32 %v2998, %v3110
        %v3129 = vmul.f32 %v2999, %v3111
        %v3130 = vmul.f32 %v3000, %v3111
        %v3131 = vmul.f32 %v3001, %v3111
        %v3132 = vmul.f32 %v3002, %v3112
        %v3133 = vmul.f32 %v3003, %v3112
        %v3134 = vmul.f32 %v3004, %v3112
        %v3135 = vmul.f32 %v3005, %v3113
        %v3136 = vmul.f32 %v3006, %v3113
        %v3137 = vmul.f32 %v3007, %v3113
        %v3138 = vmul.f32 %v3008, %v3114
        %v3139 = vmul.f32 %v3009, %v3114
        %v3140 = vmul.f32 %v3010, %v3114
        %v3141 = vmul.f32 %v3011, %v3115
        %v3142 = vmul.f32 %v3012, %v3115
        %v3143 = vmul.f32 %v3013, %v3115
        %v3144 = vmul.f32 %v3014, %v3116
        %v3145 = vmul.f32 %v3015, %v3116
        %v3146 = vmul.f32 %v3016, %v3116
        %v3147 = vmul.f32 %v3017, %v3117
        %v3148 = vmul.f32 %v3018, %v3117
        %v3149 = vmul.f32 %v3019, %v3117
        %v3150 = vmul.f32 %v3020, %v3118
        %v3151 = vmul.f32 %v3021, %v3118
        %v3152 = vmul.f32 %v3022, %v3118
        %v3153 = vmul.f32 %v3023, %v3119
        %v3154 = vmul.f32 %v3024, %v3119
        %v3155 = vmul.f32 %v3025, %v3119
        %v3156 = vmul.f32 %v3026, %v3120
        %v3157 = vmul.f32 %v3027, %v3120
        %v3158 = vmul.f32 %v3028, %v3120
        %v3159 = vmul.f32 %v3029, %v3121
        %v3160 = vmul.f32 %v3030, %v3121
        %v3161 = vmul.f32 %v3031, %v3121
        %v3162 = vmul.f32 %v3032, %v3122
        %v3163 = vmul.f32 %v3033, %v3122
        %v3164 = vmul.f32 %v3034, %v3122
        %v3165 = vmul.f32 %v3035, %v3123
        %v3166 = vmul.f32 %v3036, %v3123
        %v3167 = vmul.f32 %v3037, %v3123
        %v3168 = vmul.f32 %v3038, %v3124
        %v3169 = vmul.f32 %v3039, %v3124
        %v3170 = vmul.f32 %v3040, %v3124
        %v3171 = vmul.f32 %v3041, %v3125
        %v3172 = vmul.f32 %v3042, %v3125
        %v3173 = vmul.f32 %v3043, %v3125
        %v3174 = vsel %vm3078, 0.0, -1e+30
        %v3175 = vsel %vm3079, 0.0, -1e+30
        %v3176 = vsel %vm3080, 0.0, -1e+30
        %v3177 = vsel %vm3081, 0.0, -1e+30
        %v3178 = vsel %vm3082, 0.0, -1e+30
        %v3179 = vsel %vm3083, 0.0, -1e+30
        %v3180 = vsel %vm3084, 0.0, -1e+30
        %v3181 = vsel %vm3085, 0.0, -1e+30
        %v3182 = vsel %vm3086, 0.0, -1e+30
        %v3183 = vsel %vm3087, 0.0, -1e+30
        %v3184 = vsel %vm3088, 0.0, -1e+30
        %v3185 = vsel %vm3089, 0.0, -1e+30
        %v3186 = vsel %vm3090, 0.0, -1e+30
        %v3187 = vsel %vm3091, 0.0, -1e+30
        %v3188 = vsel %vm3092, 0.0, -1e+30
        %v3189 = vsel %vm3093, 0.0, -1e+30
        %v3190 = vadd.f32 %v2508, %v3174
        %v3191 = vadd.f32 %v2509, %v3174
        %v3192 = vadd.f32 %v2510, %v3174
        %v3193 = vadd.f32 %v2511, %v3175
        %v3194 = vadd.f32 %v2512, %v3175
        %v3195 = vadd.f32 %v2513, %v3175
        %v3196 = vadd.f32 %v2514, %v3176
        %v3197 = vadd.f32 %v2515, %v3176
        %v3198 = vadd.f32 %v2516, %v3176
        %v3199 = vadd.f32 %v2517, %v3177
        %v3200 = vadd.f32 %v2518, %v3177
        %v3201 = vadd.f32 %v2519, %v3177
        %v3202 = vadd.f32 %v2520, %v3178
        %v3203 = vadd.f32 %v2521, %v3178
        %v3204 = vadd.f32 %v2522, %v3178
        %v3205 = vadd.f32 %v2523, %v3179
        %v3206 = vadd.f32 %v2524, %v3179
        %v3207 = vadd.f32 %v2525, %v3179
        %v3208 = vadd.f32 %v2526, %v3180
        %v3209 = vadd.f32 %v2527, %v3180
        %v3210 = vadd.f32 %v2528, %v3180
        %v3211 = vadd.f32 %v2529, %v3181
        %v3212 = vadd.f32 %v2530, %v3181
        %v3213 = vadd.f32 %v2531, %v3181
        %v3214 = vadd.f32 %v2532, %v3182
        %v3215 = vadd.f32 %v2533, %v3182
        %v3216 = vadd.f32 %v2534, %v3182
        %v3217 = vadd.f32 %v2535, %v3183
        %v3218 = vadd.f32 %v2536, %v3183
        %v3219 = vadd.f32 %v2537, %v3183
        %v3220 = vadd.f32 %v2538, %v3184
        %v3221 = vadd.f32 %v2539, %v3184
        %v3222 = vadd.f32 %v2540, %v3184
        %v3223 = vadd.f32 %v2541, %v3185
        %v3224 = vadd.f32 %v2542, %v3185
        %v3225 = vadd.f32 %v2543, %v3185
        %v3226 = vadd.f32 %v2544, %v3186
        %v3227 = vadd.f32 %v2545, %v3186
        %v3228 = vadd.f32 %v2546, %v3186
        %v3229 = vadd.f32 %v2547, %v3187
        %v3230 = vadd.f32 %v2548, %v3187
        %v3231 = vadd.f32 %v2549, %v3187
        %v3232 = vadd.f32 %v2550, %v3188
        %v3233 = vadd.f32 %v2551, %v3188
        %v3234 = vadd.f32 %v2552, %v3188
        %v3235 = vadd.f32 %v2553, %v3189
        %v3236 = vadd.f32 %v2554, %v3189
        %v3237 = vadd.f32 %v2555, %v3189
        %v3238 = vmax.f32 %v3190, %v3196
        %v3239 = vmax.f32 %v3193, %v3199
        %v3240 = vmax.f32 %v3238, %v3202
        %v3241 = vmax.f32 %v3239, %v3205
        %v3242 = vmax.f32 %v3240, %v3208
        %v3243 = vmax.f32 %v3241, %v3211
        %v3244 = vmax.f32 %v3242, %v3214
        %v3245 = vmax.f32 %v3243, %v3217
        %v3246 = vmax.f32 %v3244, %v3220
        %v3247 = vmax.f32 %v3245, %v3223
        %v3248 = vmax.f32 %v3246, %v3226
        %v3249 = vmax.f32 %v3247, %v3229
        %v3250 = vmax.f32 %v3248, %v3232
        %v3251 = vmax.f32 %v3249, %v3235
        %v3252 = vmax.f32 %v3250, %v3251
        %v3253 = vrot.slane %v3252, 4
        %v3254 = vmax.f32 %v3252, %v3253
        %v3255 = vrot.slane %v3254, 2
        %v3256 = vmax.f32 %v3254, %v3255
        %v3257 = vrot.slane %v3256, 1
        %v3258 = vmax.f32 %v3256, %v3257
        %v3259 = vmax.f32 %v3191, %v3197
        %v3260 = vmax.f32 %v3194, %v3200
        %v3261 = vmax.f32 %v3259, %v3203
        %v3262 = vmax.f32 %v3260, %v3206
        %v3263 = vmax.f32 %v3261, %v3209
        %v3264 = vmax.f32 %v3262, %v3212
        %v3265 = vmax.f32 %v3263, %v3215
        %v3266 = vmax.f32 %v3264, %v3218
        %v3267 = vmax.f32 %v3265, %v3221
        %v3268 = vmax.f32 %v3266, %v3224
        %v3269 = vmax.f32 %v3267, %v3227
        %v3270 = vmax.f32 %v3268, %v3230
        %v3271 = vmax.f32 %v3269, %v3233
        %v3272 = vmax.f32 %v3270, %v3236
        %v3273 = vmax.f32 %v3271, %v3272
        %v3274 = vrot.slane %v3273, 4
        %v3275 = vmax.f32 %v3273, %v3274
        %v3276 = vrot.slane %v3275, 2
        %v3277 = vmax.f32 %v3275, %v3276
        %v3278 = vrot.slane %v3277, 1
        %v3279 = vmax.f32 %v3277, %v3278
        %v3280 = vmax.f32 %v3192, %v3198
        %v3281 = vmax.f32 %v3195, %v3201
        %v3282 = vmax.f32 %v3280, %v3204
        %v3283 = vmax.f32 %v3281, %v3207
        %v3284 = vmax.f32 %v3282, %v3210
        %v3285 = vmax.f32 %v3283, %v3213
        %v3286 = vmax.f32 %v3284, %v3216
        %v3287 = vmax.f32 %v3285, %v3219
        %v3288 = vmax.f32 %v3286, %v3222
        %v3289 = vmax.f32 %v3287, %v3225
        %v3290 = vmax.f32 %v3288, %v3228
        %v3291 = vmax.f32 %v3289, %v3231
        %v3292 = vmax.f32 %v3290, %v3234
        %v3293 = vmax.f32 %v3291, %v3237
        %v3294 = vmax.f32 %v3292, %v3293
        %v3295 = vrot.slane %v3294, 4
        %v3296 = vmax.f32 %v3294, %v3295
        %v3297 = vrot.slane %v3296, 2
        %v3298 = vmax.f32 %v3296, %v3297
        %v3299 = vrot.slane %v3298, 1
        %v3300 = vmax.f32 %v3298, %v3299
        %v3301 = vadd.f32 %v3126, %v3129
        %v3302 = vadd.f32 %v3301, %v3132
        %v3303 = vadd.f32 %v3302, %v3135
        %v3304 = vadd.f32 %v3303, %v3138
        %v3305 = vadd.f32 %v3304, %v3141
        %v3306 = vadd.f32 %v3305, %v3144
        %v3307 = vadd.f32 %v3306, %v3147
        %v3308 = vadd.f32 %v3307, %v3150
        %v3309 = vadd.f32 %v3308, %v3153
        %v3310 = vadd.f32 %v3309, %v3156
        %v3311 = vadd.f32 %v3310, %v3159
        %v3312 = vadd.f32 %v3311, %v3162
        %v3313 = vadd.f32 %v3312, %v3165
        %v3314 = vadd.f32 %v3313, %v3168
        %v3315 = vadd.f32 %v3314, %v3171
        %v3316 = vrot.slane %v3315, 4
        %v3317 = vadd.f32 %v3315, %v3316
        %v3318 = vrot.slane %v3317, 2
        %v3319 = vadd.f32 %v3317, %v3318
        %v3320 = vrot.slane %v3319, 1
        %v3321 = vadd.f32 %v3319, %v3320
        %v3322 = vadd.f32 %v3127, %v3130
        %v3323 = vadd.f32 %v3322, %v3133
        %v3324 = vadd.f32 %v3323, %v3136
        %v3325 = vadd.f32 %v3324, %v3139
        %v3326 = vadd.f32 %v3325, %v3142
        %v3327 = vadd.f32 %v3326, %v3145
        %v3328 = vadd.f32 %v3327, %v3148
        %v3329 = vadd.f32 %v3328, %v3151
        %v3330 = vadd.f32 %v3329, %v3154
        %v3331 = vadd.f32 %v3330, %v3157
        %v3332 = vadd.f32 %v3331, %v3160
        %v3333 = vadd.f32 %v3332, %v3163
        %v3334 = vadd.f32 %v3333, %v3166
        %v3335 = vadd.f32 %v3334, %v3169
        %v3336 = vadd.f32 %v3335, %v3172
        %v3337 = vrot.slane %v3336, 4
        %v3338 = vadd.f32 %v3336, %v3337
        %v3339 = vrot.slane %v3338, 2
        %v3340 = vadd.f32 %v3338, %v3339
        %v3341 = vrot.slane %v3340, 1
        %v3342 = vadd.f32 %v3340, %v3341
        %v3343 = vadd.f32 %v3128, %v3131
        %v3344 = vadd.f32 %v3343, %v3134
        %v3345 = vadd.f32 %v3344, %v3137
        %v3346 = vadd.f32 %v3345, %v3140
        %v3347 = vadd.f32 %v3346, %v3143
        %v3348 = vadd.f32 %v3347, %v3146
        %v3349 = vadd.f32 %v3348, %v3149
        %v3350 = vadd.f32 %v3349, %v3152
        %v3351 = vadd.f32 %v3350, %v3155
        %v3352 = vadd.f32 %v3351, %v3158
        %v3353 = vadd.f32 %v3352, %v3161
        %v3354 = vadd.f32 %v3353, %v3164
        %v3355 = vadd.f32 %v3354, %v3167
        %v3356 = vadd.f32 %v3355, %v3170
        %v3357 = vadd.f32 %v3356, %v3173
        %v3358 = vrot.slane %v3357, 4
        %v3359 = vadd.f32 %v3357, %v3358
        %v3360 = vrot.slane %v3359, 2
        %v3361 = vadd.f32 %v3359, %v3360
        %v3362 = vrot.slane %v3361, 1
        %v3363 = vadd.f32 %v3361, %v3362
        %v3364 = vld [vmem:[#allocation3] sm:$0x7]
        %v3368 = vrot.slane %v3279, 7
        %v3369 = vrot.slane %v3300, 6
        %vm3370 = vcmask 1040384
        %v3371 = vsel %vm3370, %v3258, %v3368
        %vm3372 = vcmask 1041408
        %v3373 = vsel %vm3372, %v3371, %v3369
        %v3375 = vmax.f32 %v3364, %v3373
        %v3376 = vlog2.pop %v3321
        %v3377 = vmul.f32 %v3376, 0.6931472
        %v3378 = vlog2.pop %v3342
        %v3379 = vmul.f32 %v3378, 0.6931472
        %v3380 = vlog2.pop %v3363
        %v3381 = vmul.f32 %v3380, 0.6931472
        %v3382 = vadd.f32 %v2947, %v3377
        %v3383 = vadd.f32 %v2947, %v3379
        %v3384 = vadd.f32 %v2947, %v3381
        %v3386 = vperm.slane %v3375, 0
        %v3387 = vperm.slane %v3375, 1
        %v3388 = vperm.slane %v3375, 2
        %v3392 = vsub.f32 %v3382, %v3386
        %v3393 = vsub.f32 %v3383, %v3387
        %v3394 = vsub.f32 %v3384, %v3388
        %v3395 = vmul.f32 %v3392, 1.442695
        %v3396 = vpow.pop %v3395
        %v3397 = vmul.f32 %v3393, 1.442695
        %v3398 = vpow.pop %v3397
        %v3399 = vmul.f32 %v3394, 1.442695
        %v3400 = vpow.pop %v3399
        %v3401 = vld [vmem:[#allocation4] sm:$0x7]
        %v3402 = vsub.f32 %v3364, %v3375
        %v3403 = vmul.f32 %v3402, 1.442695
        %v3404 = vpow.pop %v3403
        %v3405 = vmul.f32 %v3401, %v3404
        %v3409 = vrot.slane %v3398, 7
        %v3410 = vrot.slane %v3400, 6
        %v3411 = vsel %vm3370, %v3396, %v3409
        %v3412 = vsel %vm3372, %v3411, %v3410
        %v3414 = vadd.f32 %v3405, %v3412
        %v3415 = vlaneseq
        %vm3416 = vcmp.ge.s32.totalorder %v3415, 0
        %vm3417 = vcmp.lt.s32.totalorder %v3415, 384
        %vm3418 = vmand %vm3416, %vm3417
        %3419 = vst.msk [vmem:[#allocation4] sm:$0x7] %vm3418, %v3414
        %3420 = vst.msk [vmem:[#allocation3] sm:$0x7] %vm3418, %v3375
        %p3421 = scmp.eq.s32.totalorder %s25, 2
        // Predicated region
        $region53: #{tpu_custom_call.1} parent=47 // pred_check
          %p3422 = pneg %p3421
        $region54: #{tpu_custom_call.1} parent=47 // pred_check_branch
          %3424 = sbr.rel (%p3422) target = $region56
        $region55: #{tpu_custom_call.1} parent=47 // pred_region
          %v3425 = vld [vmem:[#allocation3] sm:$0x7]
          %v3426 = vld [vmem:[#allocation4] sm:$0x7]
          %v3427 = vlog2.pop %v3426
          %v3428 = vmul.f32 %v3427, 0.6931472
          %v3429 = vadd.f32 %v3425, %v3428
          %v3430 = vld [vmem:[#allocation5] sm:$0xff]
          %v3431 = vld [vmem:[#allocation5 + $0x8] sm:$0xff]
          %v3432 = vld [vmem:[#allocation5 + $0x10] sm:$0xff]
          %v3433 = vld [vmem:[#allocation5 + $0x18] sm:$0xff]
          %v3434 = vld [vmem:[#allocation5 + $0x20] sm:$0xff]
          %v3435 = vld [vmem:[#allocation5 + $0x28] sm:$0xff]
          %v3436 = vld [vmem:[#allocation5 + $0x30] sm:$0xff]
          %v3437 = vld [vmem:[#allocation5 + $0x38] sm:$0xff]
          %v3438 = vld [vmem:[#allocation5 + $0x40] sm:$0xff]
          %v3439 = vld [vmem:[#allocation5 + $0x48] sm:$0xff]
          %v3440 = vld [vmem:[#allocation5 + $0x50] sm:$0xff]
          %v3441 = vld [vmem:[#allocation5 + $0x58] sm:$0xff]
          %v3442 = vld [vmem:[#allocation5 + $0x60] sm:$0xff]
          %v3443 = vld [vmem:[#allocation5 + $0x68] sm:$0xff]
          %v3444 = vld [vmem:[#allocation5 + $0x70] sm:$0xff]
          %v3445 = vld [vmem:[#allocation5 + $0x78] sm:$0xff]
          %v3446 = vld [vmem:[#allocation5 + $0x80] sm:$0xff]
          %v3447 = vld [vmem:[#allocation5 + $0x88] sm:$0xff]
          %v3448 = vld [vmem:[#allocation5 + $0x90] sm:$0xff]
          %v3449 = vld [vmem:[#allocation5 + $0x98] sm:$0xff]
          %v3450 = vld [vmem:[#allocation5 + $0xa0] sm:$0xff]
          %v3451 = vld [vmem:[#allocation5 + $0xa8] sm:$0xff]
          %v3452 = vld [vmem:[#allocation5 + $0xb0] sm:$0xff]
          %v3453 = vld [vmem:[#allocation5 + $0xb8] sm:$0xff]
          %v3454 = vld [vmem:[#allocation5 + $0xc0] sm:$0xff]
          %v3455 = vld [vmem:[#allocation5 + $0xc8] sm:$0xff]
          %v3456 = vld [vmem:[#allocation5 + $0xd0] sm:$0xff]
          %v3457 = vld [vmem:[#allocation5 + $0xd8] sm:$0xff]
          %v3458 = vld [vmem:[#allocation5 + $0xe0] sm:$0xff]
          %v3459 = vld [vmem:[#allocation5 + $0xe8] sm:$0xff]
          %v3460 = vld [vmem:[#allocation5 + $0xf0] sm:$0xff]
          %v3461 = vld [vmem:[#allocation5 + $0xf8] sm:$0xff]
          %v3462 = vld [vmem:[#allocation5 + $0x100] sm:$0xff]
          %v3463 = vld [vmem:[#allocation5 + $0x108] sm:$0xff]
          %v3464 = vld [vmem:[#allocation5 + $0x110] sm:$0xff]
          %v3465 = vld [vmem:[#allocation5 + $0x118] sm:$0xff]
          %v3466 = vld [vmem:[#allocation5 + $0x120] sm:$0xff]
          %v3467 = vld [vmem:[#allocation5 + $0x128] sm:$0xff]
          %v3468 = vld [vmem:[#allocation5 + $0x130] sm:$0xff]
          %v3469 = vld [vmem:[#allocation5 + $0x138] sm:$0xff]
          %v3470 = vld [vmem:[#allocation5 + $0x140] sm:$0xff]
          %v3471 = vld [vmem:[#allocation5 + $0x148] sm:$0xff]
          %v3472 = vld [vmem:[#allocation5 + $0x150] sm:$0xff]
          %v3473 = vld [vmem:[#allocation5 + $0x158] sm:$0xff]
          %v3474 = vld [vmem:[#allocation5 + $0x160] sm:$0xff]
          %v3475 = vld [vmem:[#allocation5 + $0x168] sm:$0xff]
          %v3476 = vld [vmem:[#allocation5 + $0x170] sm:$0xff]
          %v3477 = vld [vmem:[#allocation5 + $0x178] sm:$0xff]
          %3478 = vxpose.xlu0.b32.start [1/16] %v3430, 128
          %3479 = vxpose.xlu0.b32.cont [2/16] %v3431, 128
          %3480 = vxpose.xlu0.b32.cont [3/16] %v3432, 128
          %3481 = vxpose.xlu0.b32.cont [4/16] %v3433, 128
          %3482 = vxpose.xlu0.b32.cont [5/16] %v3434, 128
          %3483 = vxpose.xlu0.b32.cont [6/16] %v3435, 128
          %3484 = vxpose.xlu0.b32.cont [7/16] %v3436, 128
          %3485 = vxpose.xlu0.b32.cont [8/16] %v3437, 128
          %3486 = vxpose.xlu0.b32.cont [9/16] %v3438, 128
          %3487 = vxpose.xlu0.b32.cont [10/16] %v3439, 128
          %3488 = vxpose.xlu0.b32.cont [11/16] %v3440, 128
          %3489 = vxpose.xlu0.b32.cont [12/16] %v3441, 128
          %3490 = vxpose.xlu0.b32.cont [13/16] %v3442, 128
          %3491 = vxpose.xlu0.b32.cont [14/16] %v3443, 128
          %3492 = vxpose.xlu0.b32.cont [15/16] %v3444, 128
          %3493 = vxpose.xlu0.b32.end [16/16] %v3445, 128
          %v3494 = vpop.trf.xlu0
          %v3495 = vpop.trf.xlu0
          %v3496 = vpop.trf.xlu0
          %v3497 = vpop.trf.xlu0
          %v3498 = vpop.trf.xlu0
          %v3499 = vpop.trf.xlu0
          %v3500 = vpop.trf.xlu0
          %v3501 = vpop.trf.xlu0
          %v3502 = vpop.trf.xlu0
          %v3503 = vpop.trf.xlu0
          %v3504 = vpop.trf.xlu0
          %v3505 = vpop.trf.xlu0
          %v3506 = vpop.trf.xlu0
          %v3507 = vpop.trf.xlu0
          %v3508 = vpop.trf.xlu0
          %v3509 = vpop.trf.xlu0
          %3510 = vxpose.xlu0.b32.start [1/16] %v3446, 128
          %3511 = vxpose.xlu0.b32.cont [2/16] %v3447, 128
          %3512 = vxpose.xlu0.b32.cont [3/16] %v3448, 128
          %3513 = vxpose.xlu0.b32.cont [4/16] %v3449, 128
          %3514 = vxpose.xlu0.b32.cont [5/16] %v3450, 128
          %3515 = vxpose.xlu0.b32.cont [6/16] %v3451, 128
          %3516 = vxpose.xlu0.b32.cont [7/16] %v3452, 128
          %3517 = vxpose.xlu0.b32.cont [8/16] %v3453, 128
          %3518 = vxpose.xlu0.b32.cont [9/16] %v3454, 128
          %3519 = vxpose.xlu0.b32.cont [10/16] %v3455, 128
          %3520 = vxpose.xlu0.b32.cont [11/16] %v3456, 128
          %3521 = vxpose.xlu0.b32.cont [12/16] %v3457, 128
          %3522 = vxpose.xlu0.b32.cont [13/16] %v3458, 128
          %3523 = vxpose.xlu0.b32.cont [14/16] %v3459, 128
          %3524 = vxpose.xlu0.b32.cont [15/16] %v3460, 128
          %3525 = vxpose.xlu0.b32.end [16/16] %v3461, 128
          %v3526 = vpop.trf.xlu0
          %v3527 = vpop.trf.xlu0
          %v3528 = vpop.trf.xlu0
          %v3529 = vpop.trf.xlu0
          %v3530 = vpop.trf.xlu0
          %v3531 = vpop.trf.xlu0
          %v3532 = vpop.trf.xlu0
          %v3533 = vpop.trf.xlu0
          %v3534 = vpop.trf.xlu0
          %v3535 = vpop.trf.xlu0
          %v3536 = vpop.trf.xlu0
          %v3537 = vpop.trf.xlu0
          %v3538 = vpop.trf.xlu0
          %v3539 = vpop.trf.xlu0
          %v3540 = vpop.trf.xlu0
          %v3541 = vpop.trf.xlu0
          %3542 = vxpose.xlu0.b32.start [1/16] %v3462, 128
          %3543 = vxpose.xlu0.b32.cont [2/16] %v3463, 128
          %3544 = vxpose.xlu0.b32.cont [3/16] %v3464, 128
          %3545 = vxpose.xlu0.b32.cont [4/16] %v3465, 128
          %3546 = vxpose.xlu0.b32.cont [5/16] %v3466, 128
          %3547 = vxpose.xlu0.b32.cont [6/16] %v3467, 128
          %3548 = vxpose.xlu0.b32.cont [7/16] %v3468, 128
          %3549 = vxpose.xlu0.b32.cont [8/16] %v3469, 128
          %3550 = vxpose.xlu0.b32.cont [9/16] %v3470, 128
          %3551 = vxpose.xlu0.b32.cont [10/16] %v3471, 128
          %3552 = vxpose.xlu0.b32.cont [11/16] %v3472, 128
          %3553 = vxpose.xlu0.b32.cont [12/16] %v3473, 128
          %3554 = vxpose.xlu0.b32.cont [13/16] %v3474, 128
          %3555 = vxpose.xlu0.b32.cont [14/16] %v3475, 128
          %3556 = vxpose.xlu0.b32.cont [15/16] %v3476, 128
          %3557 = vxpose.xlu0.b32.end [16/16] %v3477, 128
          %v3558 = vpop.trf.xlu0
          %v3559 = vpop.trf.xlu0
          %v3560 = vpop.trf.xlu0
          %v3561 = vpop.trf.xlu0
          %v3562 = vpop.trf.xlu0
          %v3563 = vpop.trf.xlu0
          %v3564 = vpop.trf.xlu0
          %v3565 = vpop.trf.xlu0
          %v3566 = vpop.trf.xlu0
          %v3567 = vpop.trf.xlu0
          %v3568 = vpop.trf.xlu0
          %v3569 = vpop.trf.xlu0
          %v3570 = vpop.trf.xlu0
          %v3571 = vpop.trf.xlu0
          %v3572 = vpop.trf.xlu0
          %v3573 = vpop.trf.xlu0
          %v3577 = vrot.slane %v3526, 7
          %v3578 = vrot.slane %v3558, 6
          %v3579 = vsel %vm3370, %v3494, %v3577
          %v3580 = vsel %vm3372, %v3579, %v3578
          %v3582 = vsub.f32 %v3429, %v3580
          %3583 = vst.msk [vmem:[#allocation9] sm:$0x7] %vm3418, %v3582
        $region56: #{tpu_custom_call.1} parent=47 // pred_fallthru
          _
        %s3584 = sand.u32 %s185, 1
        %s3585 = scalar_lea.sflag [#allocation8], %s3584
        %s3586 = sand.u32 %s185, 1
        %s3587 = scalar_lea.vmem [#allocation7], %s3586
        // Predicated region
        $region57: #{tpu_custom_call.1} parent=47 // pred_check
          %p3588 = pneg %p195
        $region58: #{tpu_custom_call.1} parent=47 // pred_check_branch
          %3590 = sbr.rel (%p3588) target = $region60
        $region59: #{tpu_custom_call.1} parent=47 // pred_region
          %3592 = vsyncadd %s3585, 0
          %s3593 = scalar_lea.hbm %s7, %s25
          %s3595 = sshll.u32 %s3587, 4
          %s3596 = int_to_ptr.vmem [resolvable:$true] %s3595
          %s3597 = sshll.u32 %s3593, 4
          %s3598 = int_to_ptr.hbm [resolvable:$true] %s3597
          %3600 = dma.vmem_to_hbm [thread:$0]  %s3596, 16, %s3598, %s3585
        $region60: #{tpu_custom_call.1} parent=47 // pred_fallthru
          _
        // Predicated region
        $region61: #{tpu_custom_call.1} parent=47 // pred_check
          %p3601 = pneg %p216
        $region62: #{tpu_custom_call.1} parent=47 // pred_check_branch
          %3603 = sbr.rel (%p3601) target = $region64
        $region63: #{tpu_custom_call.1} parent=47 // pred_region
          %3605 = vsyncadd [#allocation10], 0
          %s3607 = sshll.u32 [#allocation9], 4
          %s3608 = int_to_ptr.vmem [resolvable:$true] %s3607
          %s3609 = sshll.u32 %s8, 4
          %s3610 = int_to_ptr.hbm [resolvable:$true] %s3609
          %3612 = dma.vmem_to_hbm [thread:$0]  %s3608, 48, %s3610, [#allocation10]
        $region64: #{tpu_custom_call.1} parent=47 // pred_fallthru
          _
        // Predicated region
        $region65: #{tpu_custom_call.1} parent=47 // pred_check
          %p3613 = pneg %p216
        $region66: #{tpu_custom_call.1} parent=47 // pred_check_branch
          %3615 = sbr.rel (%p3613) target = $region68
        $region67: #{tpu_custom_call.1} parent=47 // pred_region
          %3617 = dma.done [#allocation10], 48
        $region68: #{tpu_custom_call.1} parent=47 // pred_fallthru
          _
      $region48: #{tpu_custom_call.1} parent=5 // pred_fallthru
        _
      %p3618 = scmp.le.s32.totalorder 2, %s20
      // Predicated region
      $region69: #{tpu_custom_call.1} parent=5 // pred_check
        %p3619 = pneg %p3618
      $region70: #{tpu_custom_call.1} parent=5 // pred_check_branch
        %3621 = sbr.rel (%p3619) target = $region72
      $region71: #{tpu_custom_call.1} parent=5 // pred_region
        %s3622 = ssub.s32 %s20, 2
        // Predicated region
        $region73: #{tpu_custom_call.1} parent=71 // pred_check
          %p3623 = pneg %p201
        $region74: #{tpu_custom_call.1} parent=71 // pred_check_branch
          %3625 = sbr.rel (%p3623) target = $region76
        $region75: #{tpu_custom_call.1} parent=71 // pred_region
          %s3626 = sand.u32 %s186, 1
          %s3627 = scalar_lea.sflag [#allocation8], %s3626
          %s3628 = sand.u32 %s186, 1
          %s3629 = scalar_lea.vmem [#allocation7], %s3628
          %3631 = dma.done %s3627, 16
        $region76: #{tpu_custom_call.1} parent=71 // pred_fallthru
          _
      $region72: #{tpu_custom_call.1} parent=5 // pred_fallthru
        _
    $region6: #{tpu_custom_call.1} parent=1 // loop_footer
      %s24 = sadd.s32 1, %s20
    $region7: #{tpu_custom_call.1} parent=1 // loop_footer_branch
      %19 = sbr.rel target = $region3
    $region8: #{tpu_custom_call.1} parent=1 // loop_exit
      _
    %3632 = vsyncpa [#allocation8], 1
    %s3633 = scalar_lea.sflag [#allocation8], 1
    %3634 = vsyncpa %s3633, 1
    %3635 = vsyncpa [#allocation10], 1

</llo_original>
